<compile_context>
chip_gen: v7x
topology: tpu7x:2x2x1
jax: 0.10.0
libtpu: 0.0.40
codegen_flags: <defaults>
</compile_context>

<pallas_src>
import functools

import numpy as np
import jax
import jax.numpy as jnp
from jax import lax
from jax.experimental import pallas as pl
from jax.experimental.pallas import tpu as pltpu

COS_SIM_THRESHOLD = 0.4
LABEL_THRESHOLD = 0.5
BN_EPS = 1e-5
COS_EPS = 1e-8          # eps used by torch.nn.functional.cosine_similarity
KS = 7
PAD = KS // 2


# ----------------------------- host-side helpers -----------------------------
def _make_tap_masks(H, W):
    """(49, H*W) float32 validity masks for the 7x7 zero-padded conv taps.

    Tap k = (di+3)*7 + (dj+3) is 1.0 at flat pixel p=(h,w) iff (h+di, w+dj) is in
    bounds.  Computed once on the host (static H, W); no in-kernel iota/compare.
    """
    r = np.arange(H * W) // W
    c = np.arange(H * W) % W
    masks = []
    for di in range(-PAD, PAD + 1):
        for dj in range(-PAD, PAD + 1):
            valid = (r + di >= 0) & (r + di < H) & (c + dj >= 0) & (c + dj < W)
            masks.append(valid)
    return jnp.asarray(np.stack(masks).astype(np.float32))


# ------------------------------ kernel helpers --------------------------------
def _conv1x1_relu(w_ref, b_ref, x):
    """1x1 conv + bias + ReLU as one MXU matmul: (C,C) @ (C, B*H*W)."""
    y = jnp.dot(w_ref[...], x, preferred_element_type=jnp.float32) + b_ref[...]
    return jnp.maximum(y, 0.0)


# -------------------------------- main kernel ----------------------------------
def _sca_kernel(x_ref, xt1_ref, xt2_ref,
                w1_ref, b1_ref, w2_ref, b2_ref, w3_ref, b3_ref,
                wmask_ref, gamma_ref, beta_ref,
                casa_ref, saw_ref,
                stack_ref, *, W):
    C = x_ref.shape[0]
    BHW = x_ref.shape[1]     # lane axis holds the whole batch: B*H*W

    # ---- 1x1 convs (MXU) ------------------------------------------------------
    diff = jnp.abs(xt1_ref[...] - xt2_ref[...])                        # (C, BHW)
    sa1_in = _conv1x1_relu(w1_ref, b1_ref, diff)
    sa2_in = _conv1x1_relu(w2_ref, b2_ref, x_ref[...])

    # ---- dual SpatialAttention (both branches share the 49-tap loop) ----------
    # Stack [avg1, max1, avg2, max2] into one (4, BHW) slab so every 7x7 tap is a
    # single lane-roll + one multiply-add against the weight-folded mask slab.
    inv_c = 1.0 / float(C)
    stack_ref[0:1, :] = jnp.sum(sa1_in, axis=0, keepdims=True) * inv_c
    stack_ref[1:2, :] = jnp.max(sa1_in, axis=0, keepdims=True)
    stack_ref[2:3, :] = jnp.sum(sa2_in, axis=0, keepdims=True) * inv_c
    stack_ref[3:4, :] = jnp.max(sa2_in, axis=0, keepdims=True)
    stack = stack_ref[...]                                             # (4, BHW)

    # 4 partial accumulators break the serial add chain so the 4 VALUs can overlap.
    accs = [jnp.zeros((4, BHW), jnp.float32) for _ in range(4)]
    for k in range(KS * KS):
        di = k // KS - PAD
        dj = k % KS - PAD
        shift = (-(di * W + dj)) % BHW
        rolled = pltpu.roll(stack, shift=shift, axis=1) if shift else stack
        accs[k % 4] = accs[k % 4] + rolled * wmask_ref[k]
    acc = (accs[0] + accs[1]) + (accs[2] + accs[3])                    # (4, BHW)
    sa1_w = jax.nn.sigmoid(acc[0:1, :] + acc[1:2, :])                  # (1, BHW)
    sa2_w = jax.nn.sigmoid(acc[2:3, :] + acc[3:4, :])                  # (1, BHW)

    # ---- cosine similarity over channels (per-norm eps clamp, rsqrt -> EUP) ----
    dots = jnp.sum(sa1_in * sa2_in, axis=0, keepdims=True)
    ss1 = jnp.sum(sa1_in * sa1_in, axis=0, keepdims=True)
    ss2 = jnp.sum(sa2_in * sa2_in, axis=0, keepdims=True)
    eps2 = COS_EPS * COS_EPS      # sqrt(max(ss, eps^2)) == max(||.||, eps)
    cos_sim = dots * lax.rsqrt(jnp.maximum(ss1, eps2) * jnp.maximum(ss2, eps2))
    alpha = jnp.maximum(cos_sim, COS_SIM_THRESHOLD)

    # ---- change / no-change cross weighting (disjoint cases -> nested select) --
    c1 = sa1_w > LABEL_THRESHOLD
    c2 = sa2_w > LABEL_THRESHOLD
    cross = jnp.where(c1 & c2, 2.0 * alpha,
                      jnp.where(jnp.logical_or(c1, c2), COS_SIM_THRESHOLD,
                                COS_SIM_THRESHOLD * (1.0 - alpha)))
    sa_weights = 0.5 * (sa1_w + sa2_w) * cross
    # TODO(synk): pre_sa_weights branch (averaging with previous weights) skipped —
    #             the reference call uses pre_sa_weights=None.
    saw_ref[...] = sa_weights

    # ---- conv3 (1x1) + ReLU + BatchNorm2d (training-mode batch stats, fused) ----
    prebn = _conv1x1_relu(w3_ref, b3_ref, sa2_in * sa_weights)         # (C, BHW)
    inv_n = 1.0 / float(BHW)                     # stats over the full B*H*W lane axis
    mean = jnp.sum(prebn, axis=1, keepdims=True) * inv_n               # (C, 1)
    centered = prebn - mean
    var = jnp.sum(centered * centered, axis=1, keepdims=True) * inv_n  # biased (torch)
    scale = gamma_ref[...] * lax.rsqrt(var + BN_EPS)
    casa_ref[...] = centered * scale + beta_ref[...]
    # TODO(synk): running-stat (eval-mode BN) updates are not emitted.


# ---------------------------------- wrapper -------------------------------------
@jax.jit
def sca_forward(x, x_t1, x_t2, params):
    B, C, H, W = x.shape
    BHW = B * H * W

    # Fold the batch into the lane axis: (B, C, H, W) -> (C, B*H*W).
    fold = lambda a: jnp.transpose(a, (1, 0, 2, 3)).reshape(C, BHW)
    xf, x1f, x2f = fold(x), fold(x_t1), fold(x_t2)

    # Weight-folded tap masks: wmask[k] is (4, BHW) with rows
    # [wsa1_avg[k], wsa1_max[k], wsa2_avg[k], wsa2_max[k]] * valid_mask[k].
    masks = jnp.tile(_make_tap_masks(H, W), (1, B))                        # (49, BHW)
    w_stack = jnp.stack([params["wsa1"][0], params["wsa1"][1],
                         params["wsa2"][0], params["wsa2"][1]], axis=1)    # (49, 4)
    wmask = w_stack[:, :, None] * masks[:, None, :]                        # (49, 4, BHW)

    row = lambda v: v.reshape(C, 1)
    full2 = lambda s0, s1: pl.BlockSpec((s0, s1), lambda i: (0, 0))

    ca_f, saw_f = pl.pallas_call(
        functools.partial(_sca_kernel, W=W),
        grid=(1,),   # whole (folded) batch in a single step
        in_specs=[
            full2(C, BHW), full2(C, BHW), full2(C, BHW),           # x, x_t1, x_t2
            full2(C, C), full2(C, 1),                               # conv1 w, b
            full2(C, C), full2(C, 1),                               # conv2 w, b
            full2(C, C), full2(C, 1),                               # conv3 w, b
            pl.BlockSpec((KS * KS, 4, BHW), lambda i: (0, 0, 0)),   # weight-folded masks
            full2(C, 1), full2(C, 1),                               # bn gamma, beta
        ],
        out_specs=(full2(C, BHW), full2(1, BHW)),
        out_shape=(jax.ShapeDtypeStruct((C, BHW), jnp.float32),
                   jax.ShapeDtypeStruct((1, BHW), jnp.float32)),
        scratch_shapes=[pltpu.VMEM((4, BHW), jnp.float32)],
        compiler_params=pltpu.CompilerParams(dimension_semantics=("arbitrary",)),
    )(xf, x1f, x2f,
      params["w1"], row(params["b1"]),
      params["w2"], row(params["b2"]),
      params["w3"], row(params["b3"]),
      wmask, row(params["bn_gamma"]), row(params["bn_beta"]))

    ca_sa = jnp.transpose(ca_f.reshape(C, B, H, W), (1, 0, 2, 3))
    sa_weights = jnp.transpose(saw_f.reshape(1, B, H, W), (1, 0, 2, 3))
    return ca_sa, sa_weights


def init_params(key, C):
    ks = jax.random.split(key, 8)
    return {
        "w1": 0.2 * jax.random.normal(ks[0], (C, C), jnp.float32),
        "b1": 0.1 * jax.random.normal(ks[1], (C,), jnp.float32),
        "w2": 0.2 * jax.random.normal(ks[2], (C, C), jnp.float32),
        "b2": 0.1 * jax.random.normal(ks[3], (C,), jnp.float32),
        "w3": 0.2 * jax.random.normal(ks[4], (C, C), jnp.float32),
        "b3": 0.1 * jax.random.normal(ks[5], (C,), jnp.float32),
        # SpatialAttention conv weights: torch shape (1, 2, 7, 7) -> stored as (2, 49)
        "wsa1": 0.05 * jax.random.normal(ks[6], (1, 2, KS, KS), jnp.float32).reshape(2, KS * KS),
        "wsa2": 0.05 * jax.random.normal(ks[7], (1, 2, KS, KS), jnp.float32).reshape(2, KS * KS),
        # BatchNorm2d default init
        "bn_gamma": jnp.ones((C,), jnp.float32),
        "bn_beta": jnp.zeros((C,), jnp.float32),
    }


if __name__ == "__main__":
    B, C, H, W = 2, 4, 16, 16
    key = jax.random.PRNGKey(0)
    kx, k1, k2, kp = jax.random.split(key, 4)
    x = jax.random.normal(kx, (B, C, H, W), jnp.float32)
    x_t1 = jax.random.normal(k1, (B, C, H, W), jnp.float32)
    x_t2 = jax.random.normal(k2, (B, C, H, W), jnp.float32)
    params = init_params(kp, C)

    ca_sa, sa_weights = sca_forward(x, x_t1, x_t2, params)
    jax.block_until_ready((ca_sa, sa_weights))
    assert ca_sa.shape == (B, C, H, W) and sa_weights.shape == (B, 1, H, W)
    assert bool(jnp.all(jnp.isfinite(ca_sa))) and bool(jnp.all(jnp.isfinite(sa_weights)))
    print("KERNEL_OK")
</pallas_src>

<mosaic_0001>
module attributes {stable_mosaic.version = 11 : i64} {
  func.func @_sca_kernel(%arg0: i32, %arg1: memref<4x512xf32, #tpu.memory_space<vmem>>, %arg2: memref<4x512xf32, #tpu.memory_space<vmem>>, %arg3: memref<4x512xf32, #tpu.memory_space<vmem>>, %arg4: memref<4x4xf32, #tpu.memory_space<vmem>>, %arg5: memref<4x1xf32, #tpu.memory_space<vmem>>, %arg6: memref<4x4xf32, #tpu.memory_space<vmem>>, %arg7: memref<4x1xf32, #tpu.memory_space<vmem>>, %arg8: memref<4x4xf32, #tpu.memory_space<vmem>>, %arg9: memref<4x1xf32, #tpu.memory_space<vmem>>, %arg10: memref<49x4x512xf32, #tpu.memory_space<vmem>>, %arg11: memref<4x1xf32, #tpu.memory_space<vmem>>, %arg12: memref<4x1xf32, #tpu.memory_space<vmem>>, %arg13: memref<4x512xf32, #tpu.memory_space<vmem>>, %arg14: memref<1x512xf32, #tpu.memory_space<vmem>>, %arg15: memref<4x512xf32, #tpu.memory_space<vmem>>) attributes {dimension_semantics = [#tpu.dimension_semantics<arbitrary>], iteration_bounds = array<i64: 1>, scalar_prefetch = 0 : i64, scratch_operands = 1 : i64, tpu.core_type = #tpu.core_type<tc>, window_params = [{pipeline_mode = #tpu.pipeline_mode<synchronous>, transform_indices = @transform_0, window_bounds = array<i64: 4, 512>}, {pipeline_mode = #tpu.pipeline_mode<synchronous>, transform_indices = @transform_1, window_bounds = array<i64: 4, 512>}, {pipeline_mode = #tpu.pipeline_mode<synchronous>, transform_indices = @transform_2, window_bounds = array<i64: 4, 512>}, {pipeline_mode = #tpu.pipeline_mode<synchronous>, transform_indices = @transform_3, window_bounds = array<i64: 4, 4>}, {pipeline_mode = #tpu.pipeline_mode<synchronous>, transform_indices = @transform_4, window_bounds = array<i64: 4, 1>}, {pipeline_mode = #tpu.pipeline_mode<synchronous>, transform_indices = @transform_5, window_bounds = array<i64: 4, 4>}, {pipeline_mode = #tpu.pipeline_mode<synchronous>, transform_indices = @transform_6, window_bounds = array<i64: 4, 1>}, {pipeline_mode = #tpu.pipeline_mode<synchronous>, transform_indices = @transform_7, window_bounds = array<i64: 4, 4>}, {pipeline_mode = #tpu.pipeline_mode<synchronous>, transform_indices = @transform_8, window_bounds = array<i64: 4, 1>}, {pipeline_mode = #tpu.pipeline_mode<synchronous>, transform_indices = @transform_9, window_bounds = array<i64: 49, 4, 512>}, {pipeline_mode = #tpu.pipeline_mode<synchronous>, transform_indices = @transform_10, window_bounds = array<i64: 4, 1>}, {pipeline_mode = #tpu.pipeline_mode<synchronous>, transform_indices = @transform_11, window_bounds = array<i64: 4, 1>}, {pipeline_mode = #tpu.pipeline_mode<synchronous>, transform_indices = @transform_12, window_bounds = array<i64: 4, 512>}, {pipeline_mode = #tpu.pipeline_mode<synchronous>, transform_indices = @transform_13, window_bounds = array<i64: 1, 512>}]} {
    %c0 = arith.constant 0 : index
    %c0_0 = arith.constant 0 : index
    %0 = vector.load %arg2[%c0, %c0_0] : memref<4x512xf32, #tpu.memory_space<vmem>>, vector<4x512xf32>
    %c0_1 = arith.constant 0 : index
    %c0_2 = arith.constant 0 : index
    %1 = vector.load %arg3[%c0_1, %c0_2] : memref<4x512xf32, #tpu.memory_space<vmem>>, vector<4x512xf32>
    %2 = arith.subf %0, %1 : vector<4x512xf32>
    %3 = math.absf %2 : vector<4x512xf32>
    %c0_3 = arith.constant 0 : index
    %c0_4 = arith.constant 0 : index
    %4 = vector.load %arg4[%c0_3, %c0_4] : memref<4x4xf32, #tpu.memory_space<vmem>>, vector<4x4xf32>
    %cst = arith.constant dense<0.000000e+00> : vector<4x512xf32>
    %5 = tpu.matmul %4, %3, %cst {dimension_numbers = #tpu.dot_dimension_numbers<[1], [0], [0], [1], [0, 0, 1, 1], [], []>} : vector<4x4xf32>, vector<4x512xf32>, vector<4x512xf32> -> vector<4x512xf32>
    %c0_5 = arith.constant 0 : index
    %c0_6 = arith.constant 0 : index
    %6 = vector.load %arg5[%c0_5, %c0_6] : memref<4x1xf32, #tpu.memory_space<vmem>>, vector<4x1xf32>
    %7 = vector.broadcast %6 : vector<4x1xf32> to vector<4x512xf32>
    %8 = arith.addf %5, %7 : vector<4x512xf32>
    %cst_7 = arith.constant 0.000000e+00 : f32
    %9 = vector.broadcast %cst_7 : f32 to vector<4x512xf32>
    %10 = arith.maximumf %8, %9 : vector<4x512xf32>
    %c0_8 = arith.constant 0 : index
    %c0_9 = arith.constant 0 : index
    %11 = vector.load %arg1[%c0_8, %c0_9] : memref<4x512xf32, #tpu.memory_space<vmem>>, vector<4x512xf32>
    %c0_10 = arith.constant 0 : index
    %c0_11 = arith.constant 0 : index
    %12 = vector.load %arg6[%c0_10, %c0_11] : memref<4x4xf32, #tpu.memory_space<vmem>>, vector<4x4xf32>
    %cst_12 = arith.constant dense<0.000000e+00> : vector<4x512xf32>
    %13 = tpu.matmul %12, %11, %cst_12 {dimension_numbers = #tpu.dot_dimension_numbers<[1], [0], [0], [1], [0, 0, 1, 1], [], []>} : vector<4x4xf32>, vector<4x512xf32>, vector<4x512xf32> -> vector<4x512xf32>
    %c0_13 = arith.constant 0 : index
    %c0_14 = arith.constant 0 : index
    %14 = vector.load %arg7[%c0_13, %c0_14] : memref<4x1xf32, #tpu.memory_space<vmem>>, vector<4x1xf32>
    %15 = vector.broadcast %14 : vector<4x1xf32> to vector<4x512xf32>
    %16 = arith.addf %13, %15 : vector<4x512xf32>
    %cst_15 = arith.constant 0.000000e+00 : f32
    %17 = vector.broadcast %cst_15 : f32 to vector<4x512xf32>
    %18 = arith.maximumf %16, %17 : vector<4x512xf32>
    %cst_16 = arith.constant dense<0.000000e+00> : vector<512xf32>
    %19 = vector.multi_reduction <add>, %10, %cst_16 [0] : vector<4x512xf32> to vector<512xf32>
    %20 = vector.shape_cast %19 : vector<512xf32> to vector<1x512xf32>
    %cst_17 = arith.constant 2.500000e-01 : f32
    %21 = vector.broadcast %cst_17 : f32 to vector<1x512xf32>
    %22 = arith.mulf %20, %21 : vector<1x512xf32>
    %c0_18 = arith.constant 0 : index
    %c0_19 = arith.constant 0 : index
    %23 = vector.load %arg15[%c0_18, %c0_19] : memref<4x512xf32, #tpu.memory_space<vmem>>, vector<1x512xf32>
    tpu.vector_store %arg15[%c0_18, %c0_19], %22 {strides = array<i32>} : memref<4x512xf32, #tpu.memory_space<vmem>>, vector<1x512xf32>,
    %cst_20 = arith.constant dense<0xFF800000> : vector<512xf32>
    %24 = vector.multi_reduction <maximumf>, %10, %cst_20 [0] : vector<4x512xf32> to vector<512xf32>
    %25 = vector.shape_cast %24 : vector<512xf32> to vector<1x512xf32>
    %c1 = arith.constant 1 : index
    %c0_21 = arith.constant 0 : index
    %26 = vector.load %arg15[%c1, %c0_21] : memref<4x512xf32, #tpu.memory_space<vmem>>, vector<1x512xf32>
    tpu.vector_store %arg15[%c1, %c0_21], %25 {strides = array<i32>} : memref<4x512xf32, #tpu.memory_space<vmem>>, vector<1x512xf32>,
    %cst_22 = arith.constant dense<0.000000e+00> : vector<512xf32>
    %27 = vector.multi_reduction <add>, %18, %cst_22 [0] : vector<4x512xf32> to vector<512xf32>
    %28 = vector.shape_cast %27 : vector<512xf32> to vector<1x512xf32>
    %cst_23 = arith.constant 2.500000e-01 : f32
    %29 = vector.broadcast %cst_23 : f32 to vector<1x512xf32>
    %30 = arith.mulf %28, %29 : vector<1x512xf32>
    %c2 = arith.constant 2 : index
    %c0_24 = arith.constant 0 : index
    %31 = vector.load %arg15[%c2, %c0_24] : memref<4x512xf32, #tpu.memory_space<vmem>>, vector<1x512xf32>
    tpu.vector_store %arg15[%c2, %c0_24], %30 {strides = array<i32>} : memref<4x512xf32, #tpu.memory_space<vmem>>, vector<1x512xf32>,
    %cst_25 = arith.constant dense<0xFF800000> : vector<512xf32>
    %32 = vector.multi_reduction <maximumf>, %18, %cst_25 [0] : vector<4x512xf32> to vector<512xf32>
    %33 = vector.shape_cast %32 : vector<512xf32> to vector<1x512xf32>
    %c3 = arith.constant 3 : index
    %c0_26 = arith.constant 0 : index
    %34 = vector.load %arg15[%c3, %c0_26] : memref<4x512xf32, #tpu.memory_space<vmem>>, vector<1x512xf32>
    tpu.vector_store %arg15[%c3, %c0_26], %33 {strides = array<i32>} : memref<4x512xf32, #tpu.memory_space<vmem>>, vector<1x512xf32>,
    %c0_27 = arith.constant 0 : index
    %c0_28 = arith.constant 0 : index
    %35 = vector.load %arg15[%c0_27, %c0_28] : memref<4x512xf32, #tpu.memory_space<vmem>>, vector<4x512xf32>
    %cst_29 = arith.constant 0.000000e+00 : f32
    %36 = vector.broadcast %cst_29 : f32 to vector<4x512xf32>
    %cst_30 = arith.constant 0.000000e+00 : f32
    %37 = vector.broadcast %cst_30 : f32 to vector<4x512xf32>
    %cst_31 = arith.constant 0.000000e+00 : f32
    %38 = vector.broadcast %cst_31 : f32 to vector<4x512xf32>
    %cst_32 = arith.constant 0.000000e+00 : f32
    %39 = vector.broadcast %cst_32 : f32 to vector<4x512xf32>
    %c51_i32 = arith.constant 51 : i32
    %40 = tpu.dynamic_rotate %35 by %c51_i32 dim 1 : vector<4x512xf32>, i32 -> vector<4x512xf32>
    %c0_33 = arith.constant 0 : index
    %c0_34 = arith.constant 0 : index
    %c0_35 = arith.constant 0 : index
    %41 = vector.load %arg10[%c0_33, %c0_34, %c0_35] : memref<49x4x512xf32, #tpu.memory_space<vmem>>, vector<1x4x512xf32>
    %42 = vector.shape_cast %41 : vector<1x4x512xf32> to vector<4x512xf32>
    %43 = arith.mulf %40, %42 : vector<4x512xf32>
    %44 = arith.addf %36, %43 : vector<4x512xf32>
    %c50_i32 = arith.constant 50 : i32
    %45 = tpu.dynamic_rotate %35 by %c50_i32 dim 1 : vector<4x512xf32>, i32 -> vector<4x512xf32>
    %c1_36 = arith.constant 1 : index
    %c0_37 = arith.constant 0 : index
    %c0_38 = arith.constant 0 : index
    %46 = vector.load %arg10[%c1_36, %c0_37, %c0_38] : memref<49x4x512xf32, #tpu.memory_space<vmem>>, vector<1x4x512xf32>
    %47 = vector.shape_cast %46 : vector<1x4x512xf32> to vector<4x512xf32>
    %48 = arith.mulf %45, %47 : vector<4x512xf32>
    %49 = arith.addf %37, %48 : vector<4x512xf32>
    %c49_i32 = arith.constant 49 : i32
    %50 = tpu.dynamic_rotate %35 by %c49_i32 dim 1 : vector<4x512xf32>, i32 -> vector<4x512xf32>
    %c2_39 = arith.constant 2 : index
    %c0_40 = arith.constant 0 : index
    %c0_41 = arith.constant 0 : index
    %51 = vector.load %arg10[%c2_39, %c0_40, %c0_41] : memref<49x4x512xf32, #tpu.memory_space<vmem>>, vector<1x4x512xf32>
    %52 = vector.shape_cast %51 : vector<1x4x512xf32> to vector<4x512xf32>
    %53 = arith.mulf %50, %52 : vector<4x512xf32>
    %54 = arith.addf %38, %53 : vector<4x512xf32>
    %c48_i32 = arith.constant 48 : i32
    %55 = tpu.dynamic_rotate %35 by %c48_i32 dim 1 : vector<4x512xf32>, i32 -> vector<4x512xf32>
    %c3_42 = arith.constant 3 : index
    %c0_43 = arith.constant 0 : index
    %c0_44 = arith.constant 0 : index
    %56 = vector.load %arg10[%c3_42, %c0_43, %c0_44] : memref<49x4x512xf32, #tpu.memory_space<vmem>>, vector<1x4x512xf32>
    %57 = vector.shape_cast %56 : vector<1x4x512xf32> to vector<4x512xf32>
    %58 = arith.mulf %55, %57 : vector<4x512xf32>
    %59 = arith.addf %39, %58 : vector<4x512xf32>
    %c47_i32 = arith.constant 47 : i32
    %60 = tpu.dynamic_rotate %35 by %c47_i32 dim 1 : vector<4x512xf32>, i32 -> vector<4x512xf32>
    %c4 = arith.constant 4 : index
    %c0_45 = arith.constant 0 : index
    %c0_46 = arith.constant 0 : index
    %61 = vector.load %arg10[%c4, %c0_45, %c0_46] : memref<49x4x512xf32, #tpu.memory_space<vmem>>, vector<1x4x512xf32>
    %62 = vector.shape_cast %61 : vector<1x4x512xf32> to vector<4x512xf32>
    %63 = arith.mulf %60, %62 : vector<4x512xf32>
    %64 = arith.addf %44, %63 : vector<4x512xf32>
    %c46_i32 = arith.constant 46 : i32
    %65 = tpu.dynamic_rotate %35 by %c46_i32 dim 1 : vector<4x512xf32>, i32 -> vector<4x512xf32>
    %c5 = arith.constant 5 : index
    %c0_47 = arith.constant 0 : index
    %c0_48 = arith.constant 0 : index
    %66 = vector.load %arg10[%c5, %c0_47, %c0_48] : memref<49x4x512xf32, #tpu.memory_space<vmem>>, vector<1x4x512xf32>
    %67 = vector.shape_cast %66 : vector<1x4x512xf32> to vector<4x512xf32>
    %68 = arith.mulf %65, %67 : vector<4x512xf32>
    %69 = arith.addf %49, %68 : vector<4x512xf32>
    %c45_i32 = arith.constant 45 : i32
    %70 = tpu.dynamic_rotate %35 by %c45_i32 dim 1 : vector<4x512xf32>, i32 -> vector<4x512xf32>
    %c6 = arith.constant 6 : index
    %c0_49 = arith.constant 0 : index
    %c0_50 = arith.constant 0 : index
    %71 = vector.load %arg10[%c6, %c0_49, %c0_50] : memref<49x4x512xf32, #tpu.memory_space<vmem>>, vector<1x4x512xf32>
    %72 = vector.shape_cast %71 : vector<1x4x512xf32> to vector<4x512xf32>
    %73 = arith.mulf %70, %72 : vector<4x512xf32>
    %74 = arith.addf %54, %73 : vector<4x512xf32>
    %c35_i32 = arith.constant 35 : i32
    %75 = tpu.dynamic_rotate %35 by %c35_i32 dim 1 : vector<4x512xf32>, i32 -> vector<4x512xf32>
    %c7 = arith.constant 7 : index
    %c0_51 = arith.constant 0 : index
    %c0_52 = arith.constant 0 : index
    %76 = vector.load %arg10[%c7, %c0_51, %c0_52] : memref<49x4x512xf32, #tpu.memory_space<vmem>>, vector<1x4x512xf32>
    %77 = vector.shape_cast %76 : vector<1x4x512xf32> to vector<4x512xf32>
    %78 = arith.mulf %75, %77 : vector<4x512xf32>
    %79 = arith.addf %59, %78 : vector<4x512xf32>
    %c34_i32 = arith.constant 34 : i32
    %80 = tpu.dynamic_rotate %35 by %c34_i32 dim 1 : vector<4x512xf32>, i32 -> vector<4x512xf32>
    %c8 = arith.constant 8 : index
    %c0_53 = arith.constant 0 : index
    %c0_54 = arith.constant 0 : index
    %81 = vector.load %arg10[%c8, %c0_53, %c0_54] : memref<49x4x512xf32, #tpu.memory_space<vmem>>, vector<1x4x512xf32>
    %82 = vector.shape_cast %81 : vector<1x4x512xf32> to vector<4x512xf32>
    %83 = arith.mulf %80, %82 : vector<4x512xf32>
    %84 = arith.addf %64, %83 : vector<4x512xf32>
    %c33_i32 = arith.constant 33 : i32
    %85 = tpu.dynamic_rotate %35 by %c33_i32 dim 1 : vector<4x512xf32>, i32 -> vector<4x512xf32>
    %c9 = arith.constant 9 : index
    %c0_55 = arith.constant 0 : index
    %c0_56 = arith.constant 0 : index
    %86 = vector.load %arg10[%c9, %c0_55, %c0_56] : memref<49x4x512xf32, #tpu.memory_space<vmem>>, vector<1x4x512xf32>
    %87 = vector.shape_cast %86 : vector<1x4x512xf32> to vector<4x512xf32>
    %88 = arith.mulf %85, %87 : vector<4x512xf32>
    %89 = arith.addf %69, %88 : vector<4x512xf32>
    %c32_i32 = arith.constant 32 : i32
    %90 = tpu.dynamic_rotate %35 by %c32_i32 dim 1 : vector<4x512xf32>, i32 -> vector<4x512xf32>
    %c10 = arith.constant 10 : index
    %c0_57 = arith.constant 0 : index
    %c0_58 = arith.constant 0 : index
    %91 = vector.load %arg10[%c10, %c0_57, %c0_58] : memref<49x4x512xf32, #tpu.memory_space<vmem>>, vector<1x4x512xf32>
    %92 = vector.shape_cast %91 : vector<1x4x512xf32> to vector<4x512xf32>
    %93 = arith.mulf %90, %92 : vector<4x512xf32>
    %94 = arith.addf %74, %93 : vector<4x512xf32>
    %c31_i32 = arith.constant 31 : i32
    %95 = tpu.dynamic_rotate %35 by %c31_i32 dim 1 : vector<4x512xf32>, i32 -> vector<4x512xf32>
    %c11 = arith.constant 11 : index
    %c0_59 = arith.constant 0 : index
    %c0_60 = arith.constant 0 : index
    %96 = vector.load %arg10[%c11, %c0_59, %c0_60] : memref<49x4x512xf32, #tpu.memory_space<vmem>>, vector<1x4x512xf32>
    %97 = vector.shape_cast %96 : vector<1x4x512xf32> to vector<4x512xf32>
    %98 = arith.mulf %95, %97 : vector<4x512xf32>
    %99 = arith.addf %79, %98 : vector<4x512xf32>
    %c30_i32 = arith.constant 30 : i32
    %100 = tpu.dynamic_rotate %35 by %c30_i32 dim 1 : vector<4x512xf32>, i32 -> vector<4x512xf32>
    %c12 = arith.constant 12 : index
    %c0_61 = arith.constant 0 : index
    %c0_62 = arith.constant 0 : index
    %101 = vector.load %arg10[%c12, %c0_61, %c0_62] : memref<49x4x512xf32, #tpu.memory_space<vmem>>, vector<1x4x512xf32>
    %102 = vector.shape_cast %101 : vector<1x4x512xf32> to vector<4x512xf32>
    %103 = arith.mulf %100, %102 : vector<4x512xf32>
    %104 = arith.addf %84, %103 : vector<4x512xf32>
    %c29_i32 = arith.constant 29 : i32
    %105 = tpu.dynamic_rotate %35 by %c29_i32 dim 1 : vector<4x512xf32>, i32 -> vector<4x512xf32>
    %c13 = arith.constant 13 : index
    %c0_63 = arith.constant 0 : index
    %c0_64 = arith.constant 0 : index
    %106 = vector.load %arg10[%c13, %c0_63, %c0_64] : memref<49x4x512xf32, #tpu.memory_space<vmem>>, vector<1x4x512xf32>
    %107 = vector.shape_cast %106 : vector<1x4x512xf32> to vector<4x512xf32>
    %108 = arith.mulf %105, %107 : vector<4x512xf32>
    %109 = arith.addf %89, %108 : vector<4x512xf32>
    %c19_i32 = arith.constant 19 : i32
    %110 = tpu.dynamic_rotate %35 by %c19_i32 dim 1 : vector<4x512xf32>, i32 -> vector<4x512xf32>
    %c14 = arith.constant 14 : index
    %c0_65 = arith.constant 0 : index
    %c0_66 = arith.constant 0 : index
    %111 = vector.load %arg10[%c14, %c0_65, %c0_66] : memref<49x4x512xf32, #tpu.memory_space<vmem>>, vector<1x4x512xf32>
    %112 = vector.shape_cast %111 : vector<1x4x512xf32> to vector<4x512xf32>
    %113 = arith.mulf %110, %112 : vector<4x512xf32>
    %114 = arith.addf %94, %113 : vector<4x512xf32>
    %c18_i32 = arith.constant 18 : i32
    %115 = tpu.dynamic_rotate %35 by %c18_i32 dim 1 : vector<4x512xf32>, i32 -> vector<4x512xf32>
    %c15 = arith.constant 15 : index
    %c0_67 = arith.constant 0 : index
    %c0_68 = arith.constant 0 : index
    %116 = vector.load %arg10[%c15, %c0_67, %c0_68] : memref<49x4x512xf32, #tpu.memory_space<vmem>>, vector<1x4x512xf32>
    %117 = vector.shape_cast %116 : vector<1x4x512xf32> to vector<4x512xf32>
    %118 = arith.mulf %115, %117 : vector<4x512xf32>
    %119 = arith.addf %99, %118 : vector<4x512xf32>
    %c17_i32 = arith.constant 17 : i32
    %120 = tpu.dynamic_rotate %35 by %c17_i32 dim 1 : vector<4x512xf32>, i32 -> vector<4x512xf32>
    %c16 = arith.constant 16 : index
    %c0_69 = arith.constant 0 : index
    %c0_70 = arith.constant 0 : index
    %121 = vector.load %arg10[%c16, %c0_69, %c0_70] : memref<49x4x512xf32, #tpu.memory_space<vmem>>, vector<1x4x512xf32>
    %122 = vector.shape_cast %121 : vector<1x4x512xf32> to vector<4x512xf32>
    %123 = arith.mulf %120, %122 : vector<4x512xf32>
    %124 = arith.addf %104, %123 : vector<4x512xf32>
    %c16_i32 = arith.constant 16 : i32
    %125 = tpu.dynamic_rotate %35 by %c16_i32 dim 1 : vector<4x512xf32>, i32 -> vector<4x512xf32>
    %c17 = arith.constant 17 : index
    %c0_71 = arith.constant 0 : index
    %c0_72 = arith.constant 0 : index
    %126 = vector.load %arg10[%c17, %c0_71, %c0_72] : memref<49x4x512xf32, #tpu.memory_space<vmem>>, vector<1x4x512xf32>
    %127 = vector.shape_cast %126 : vector<1x4x512xf32> to vector<4x512xf32>
    %128 = arith.mulf %125, %127 : vector<4x512xf32>
    %129 = arith.addf %109, %128 : vector<4x512xf32>
    %c15_i32 = arith.constant 15 : i32
    %130 = tpu.dynamic_rotate %35 by %c15_i32 dim 1 : vector<4x512xf32>, i32 -> vector<4x512xf32>
    %c18 = arith.constant 18 : index
    %c0_73 = arith.constant 0 : index
    %c0_74 = arith.constant 0 : index
    %131 = vector.load %arg10[%c18, %c0_73, %c0_74] : memref<49x4x512xf32, #tpu.memory_space<vmem>>, vector<1x4x512xf32>
    %132 = vector.shape_cast %131 : vector<1x4x512xf32> to vector<4x512xf32>
    %133 = arith.mulf %130, %132 : vector<4x512xf32>
    %134 = arith.addf %114, %133 : vector<4x512xf32>
    %c14_i32 = arith.constant 14 : i32
    %135 = tpu.dynamic_rotate %35 by %c14_i32 dim 1 : vector<4x512xf32>, i32 -> vector<4x512xf32>
    %c19 = arith.constant 19 : index
    %c0_75 = arith.constant 0 : index
    %c0_76 = arith.constant 0 : index
    %136 = vector.load %arg10[%c19, %c0_75, %c0_76] : memref<49x4x512xf32, #tpu.memory_space<vmem>>, vector<1x4x512xf32>
    %137 = vector.shape_cast %136 : vector<1x4x512xf32> to vector<4x512xf32>
    %138 = arith.mulf %135, %137 : vector<4x512xf32>
    %139 = arith.addf %119, %138 : vector<4x512xf32>
    %c13_i32 = arith.constant 13 : i32
    %140 = tpu.dynamic_rotate %35 by %c13_i32 dim 1 : vector<4x512xf32>, i32 -> vector<4x512xf32>
    %c20 = arith.constant 20 : index
    %c0_77 = arith.constant 0 : index
    %c0_78 = arith.constant 0 : index
    %141 = vector.load %arg10[%c20, %c0_77, %c0_78] : memref<49x4x512xf32, #tpu.memory_space<vmem>>, vector<1x4x512xf32>
    %142 = vector.shape_cast %141 : vector<1x4x512xf32> to vector<4x512xf32>
    %143 = arith.mulf %140, %142 : vector<4x512xf32>
    %144 = arith.addf %124, %143 : vector<4x512xf32>
    %c3_i32 = arith.constant 3 : i32
    %145 = tpu.dynamic_rotate %35 by %c3_i32 dim 1 : vector<4x512xf32>, i32 -> vector<4x512xf32>
    %c21 = arith.constant 21 : index
    %c0_79 = arith.constant 0 : index
    %c0_80 = arith.constant 0 : index
    %146 = vector.load %arg10[%c21, %c0_79, %c0_80] : memref<49x4x512xf32, #tpu.memory_space<vmem>>, vector<1x4x512xf32>
    %147 = vector.shape_cast %146 : vector<1x4x512xf32> to vector<4x512xf32>
    %148 = arith.mulf %145, %147 : vector<4x512xf32>
    %149 = arith.addf %129, %148 : vector<4x512xf32>
    %c2_i32 = arith.constant 2 : i32
    %150 = tpu.dynamic_rotate %35 by %c2_i32 dim 1 : vector<4x512xf32>, i32 -> vector<4x512xf32>
    %c22 = arith.constant 22 : index
    %c0_81 = arith.constant 0 : index
    %c0_82 = arith.constant 0 : index
    %151 = vector.load %arg10[%c22, %c0_81, %c0_82] : memref<49x4x512xf32, #tpu.memory_space<vmem>>, vector<1x4x512xf32>
    %152 = vector.shape_cast %151 : vector<1x4x512xf32> to vector<4x512xf32>
    %153 = arith.mulf %150, %152 : vector<4x512xf32>
    %154 = arith.addf %134, %153 : vector<4x512xf32>
    %c1_i32 = arith.constant 1 : i32
    %155 = tpu.dynamic_rotate %35 by %c1_i32 dim 1 : vector<4x512xf32>, i32 -> vector<4x512xf32>
    %c23 = arith.constant 23 : index
    %c0_83 = arith.constant 0 : index
    %c0_84 = arith.constant 0 : index
    %156 = vector.load %arg10[%c23, %c0_83, %c0_84] : memref<49x4x512xf32, #tpu.memory_space<vmem>>, vector<1x4x512xf32>
    %157 = vector.shape_cast %156 : vector<1x4x512xf32> to vector<4x512xf32>
    %158 = arith.mulf %155, %157 : vector<4x512xf32>
    %159 = arith.addf %139, %158 : vector<4x512xf32>
    %c24 = arith.constant 24 : index
    %c0_85 = arith.constant 0 : index
    %c0_86 = arith.constant 0 : index
    %160 = vector.load %arg10[%c24, %c0_85, %c0_86] : memref<49x4x512xf32, #tpu.memory_space<vmem>>, vector<1x4x512xf32>
    %161 = vector.shape_cast %160 : vector<1x4x512xf32> to vector<4x512xf32>
    %162 = arith.mulf %35, %161 : vector<4x512xf32>
    %163 = arith.addf %144, %162 : vector<4x512xf32>
    %c511_i32 = arith.constant 511 : i32
    %164 = tpu.dynamic_rotate %35 by %c511_i32 dim 1 : vector<4x512xf32>, i32 -> vector<4x512xf32>
    %c25 = arith.constant 25 : index
    %c0_87 = arith.constant 0 : index
    %c0_88 = arith.constant 0 : index
    %165 = vector.load %arg10[%c25, %c0_87, %c0_88] : memref<49x4x512xf32, #tpu.memory_space<vmem>>, vector<1x4x512xf32>
    %166 = vector.shape_cast %165 : vector<1x4x512xf32> to vector<4x512xf32>
    %167 = arith.mulf %164, %166 : vector<4x512xf32>
    %168 = arith.addf %149, %167 : vector<4x512xf32>
    %c510_i32 = arith.constant 510 : i32
    %169 = tpu.dynamic_rotate %35 by %c510_i32 dim 1 : vector<4x512xf32>, i32 -> vector<4x512xf32>
    %c26 = arith.constant 26 : index
    %c0_89 = arith.constant 0 : index
    %c0_90 = arith.constant 0 : index
    %170 = vector.load %arg10[%c26, %c0_89, %c0_90] : memref<49x4x512xf32, #tpu.memory_space<vmem>>, vector<1x4x512xf32>
    %171 = vector.shape_cast %170 : vector<1x4x512xf32> to vector<4x512xf32>
    %172 = arith.mulf %169, %171 : vector<4x512xf32>
    %173 = arith.addf %154, %172 : vector<4x512xf32>
    %c509_i32 = arith.constant 509 : i32
    %174 = tpu.dynamic_rotate %35 by %c509_i32 dim 1 : vector<4x512xf32>, i32 -> vector<4x512xf32>
    %c27 = arith.constant 27 : index
    %c0_91 = arith.constant 0 : index
    %c0_92 = arith.constant 0 : index
    %175 = vector.load %arg10[%c27, %c0_91, %c0_92] : memref<49x4x512xf32, #tpu.memory_space<vmem>>, vector<1x4x512xf32>
    %176 = vector.shape_cast %175 : vector<1x4x512xf32> to vector<4x512xf32>
    %177 = arith.mulf %174, %176 : vector<4x512xf32>
    %178 = arith.addf %159, %177 : vector<4x512xf32>
    %c499_i32 = arith.constant 499 : i32
    %179 = tpu.dynamic_rotate %35 by %c499_i32 dim 1 : vector<4x512xf32>, i32 -> vector<4x512xf32>
    %c28 = arith.constant 28 : index
    %c0_93 = arith.constant 0 : index
    %c0_94 = arith.constant 0 : index
    %180 = vector.load %arg10[%c28, %c0_93, %c0_94] : memref<49x4x512xf32, #tpu.memory_space<vmem>>, vector<1x4x512xf32>
    %181 = vector.shape_cast %180 : vector<1x4x512xf32> to vector<4x512xf32>
    %182 = arith.mulf %179, %181 : vector<4x512xf32>
    %183 = arith.addf %163, %182 : vector<4x512xf32>
    %c498_i32 = arith.constant 498 : i32
    %184 = tpu.dynamic_rotate %35 by %c498_i32 dim 1 : vector<4x512xf32>, i32 -> vector<4x512xf32>
    %c29 = arith.constant 29 : index
    %c0_95 = arith.constant 0 : index
    %c0_96 = arith.constant 0 : index
    %185 = vector.load %arg10[%c29, %c0_95, %c0_96] : memref<49x4x512xf32, #tpu.memory_space<vmem>>, vector<1x4x512xf32>
    %186 = vector.shape_cast %185 : vector<1x4x512xf32> to vector<4x512xf32>
    %187 = arith.mulf %184, %186 : vector<4x512xf32>
    %188 = arith.addf %168, %187 : vector<4x512xf32>
    %c497_i32 = arith.constant 497 : i32
    %189 = tpu.dynamic_rotate %35 by %c497_i32 dim 1 : vector<4x512xf32>, i32 -> vector<4x512xf32>
    %c30 = arith.constant 30 : index
    %c0_97 = arith.constant 0 : index
    %c0_98 = arith.constant 0 : index
    %190 = vector.load %arg10[%c30, %c0_97, %c0_98] : memref<49x4x512xf32, #tpu.memory_space<vmem>>, vector<1x4x512xf32>
    %191 = vector.shape_cast %190 : vector<1x4x512xf32> to vector<4x512xf32>
    %192 = arith.mulf %189, %191 : vector<4x512xf32>
    %193 = arith.addf %173, %192 : vector<4x512xf32>
    %c496_i32 = arith.constant 496 : i32
    %194 = tpu.dynamic_rotate %35 by %c496_i32 dim 1 : vector<4x512xf32>, i32 -> vector<4x512xf32>
    %c31 = arith.constant 31 : index
    %c0_99 = arith.constant 0 : index
    %c0_100 = arith.constant 0 : index
    %195 = vector.load %arg10[%c31, %c0_99, %c0_100] : memref<49x4x512xf32, #tpu.memory_space<vmem>>, vector<1x4x512xf32>
    %196 = vector.shape_cast %195 : vector<1x4x512xf32> to vector<4x512xf32>
    %197 = arith.mulf %194, %196 : vector<4x512xf32>
    %198 = arith.addf %178, %197 : vector<4x512xf32>
    %c495_i32 = arith.constant 495 : i32
    %199 = tpu.dynamic_rotate %35 by %c495_i32 dim 1 : vector<4x512xf32>, i32 -> vector<4x512xf32>
    %c32 = arith.constant 32 : index
    %c0_101 = arith.constant 0 : index
    %c0_102 = arith.constant 0 : index
    %200 = vector.load %arg10[%c32, %c0_101, %c0_102] : memref<49x4x512xf32, #tpu.memory_space<vmem>>, vector<1x4x512xf32>
    %201 = vector.shape_cast %200 : vector<1x4x512xf32> to vector<4x512xf32>
    %202 = arith.mulf %199, %201 : vector<4x512xf32>
    %203 = arith.addf %183, %202 : vector<4x512xf32>
    %c494_i32 = arith.constant 494 : i32
    %204 = tpu.dynamic_rotate %35 by %c494_i32 dim 1 : vector<4x512xf32>, i32 -> vector<4x512xf32>
    %c33 = arith.constant 33 : index
    %c0_103 = arith.constant 0 : index
    %c0_104 = arith.constant 0 : index
    %205 = vector.load %arg10[%c33, %c0_103, %c0_104] : memref<49x4x512xf32, #tpu.memory_space<vmem>>, vector<1x4x512xf32>
    %206 = vector.shape_cast %205 : vector<1x4x512xf32> to vector<4x512xf32>
    %207 = arith.mulf %204, %206 : vector<4x512xf32>
    %208 = arith.addf %188, %207 : vector<4x512xf32>
    %c493_i32 = arith.constant 493 : i32
    %209 = tpu.dynamic_rotate %35 by %c493_i32 dim 1 : vector<4x512xf32>, i32 -> vector<4x512xf32>
    %c34 = arith.constant 34 : index
    %c0_105 = arith.constant 0 : index
    %c0_106 = arith.constant 0 : index
    %210 = vector.load %arg10[%c34, %c0_105, %c0_106] : memref<49x4x512xf32, #tpu.memory_space<vmem>>, vector<1x4x512xf32>
    %211 = vector.shape_cast %210 : vector<1x4x512xf32> to vector<4x512xf32>
    %212 = arith.mulf %209, %211 : vector<4x512xf32>
    %213 = arith.addf %193, %212 : vector<4x512xf32>
    %c483_i32 = arith.constant 483 : i32
    %214 = tpu.dynamic_rotate %35 by %c483_i32 dim 1 : vector<4x512xf32>, i32 -> vector<4x512xf32>
    %c35 = arith.constant 35 : index
    %c0_107 = arith.constant 0 : index
    %c0_108 = arith.constant 0 : index
    %215 = vector.load %arg10[%c35, %c0_107, %c0_108] : memref<49x4x512xf32, #tpu.memory_space<vmem>>, vector<1x4x512xf32>
    %216 = vector.shape_cast %215 : vector<1x4x512xf32> to vector<4x512xf32>
    %217 = arith.mulf %214, %216 : vector<4x512xf32>
    %218 = arith.addf %198, %217 : vector<4x512xf32>
    %c482_i32 = arith.constant 482 : i32
    %219 = tpu.dynamic_rotate %35 by %c482_i32 dim 1 : vector<4x512xf32>, i32 -> vector<4x512xf32>
    %c36 = arith.constant 36 : index
    %c0_109 = arith.constant 0 : index
    %c0_110 = arith.constant 0 : index
    %220 = vector.load %arg10[%c36, %c0_109, %c0_110] : memref<49x4x512xf32, #tpu.memory_space<vmem>>, vector<1x4x512xf32>
    %221 = vector.shape_cast %220 : vector<1x4x512xf32> to vector<4x512xf32>
    %222 = arith.mulf %219, %221 : vector<4x512xf32>
    %223 = arith.addf %203, %222 : vector<4x512xf32>
    %c481_i32 = arith.constant 481 : i32
    %224 = tpu.dynamic_rotate %35 by %c481_i32 dim 1 : vector<4x512xf32>, i32 -> vector<4x512xf32>
    %c37 = arith.constant 37 : index
    %c0_111 = arith.constant 0 : index
    %c0_112 = arith.constant 0 : index
    %225 = vector.load %arg10[%c37, %c0_111, %c0_112] : memref<49x4x512xf32, #tpu.memory_space<vmem>>, vector<1x4x512xf32>
    %226 = vector.shape_cast %225 : vector<1x4x512xf32> to vector<4x512xf32>
    %227 = arith.mulf %224, %226 : vector<4x512xf32>
    %228 = arith.addf %208, %227 : vector<4x512xf32>
    %c480_i32 = arith.constant 480 : i32
    %229 = tpu.dynamic_rotate %35 by %c480_i32 dim 1 : vector<4x512xf32>, i32 -> vector<4x512xf32>
    %c38 = arith.constant 38 : index
    %c0_113 = arith.constant 0 : index
    %c0_114 = arith.constant 0 : index
    %230 = vector.load %arg10[%c38, %c0_113, %c0_114] : memref<49x4x512xf32, #tpu.memory_space<vmem>>, vector<1x4x512xf32>
    %231 = vector.shape_cast %230 : vector<1x4x512xf32> to vector<4x512xf32>
    %232 = arith.mulf %229, %231 : vector<4x512xf32>
    %233 = arith.addf %213, %232 : vector<4x512xf32>
    %c479_i32 = arith.constant 479 : i32
    %234 = tpu.dynamic_rotate %35 by %c479_i32 dim 1 : vector<4x512xf32>, i32 -> vector<4x512xf32>
    %c39 = arith.constant 39 : index
    %c0_115 = arith.constant 0 : index
    %c0_116 = arith.constant 0 : index
    %235 = vector.load %arg10[%c39, %c0_115, %c0_116] : memref<49x4x512xf32, #tpu.memory_space<vmem>>, vector<1x4x512xf32>
    %236 = vector.shape_cast %235 : vector<1x4x512xf32> to vector<4x512xf32>
    %237 = arith.mulf %234, %236 : vector<4x512xf32>
    %238 = arith.addf %218, %237 : vector<4x512xf32>
    %c478_i32 = arith.constant 478 : i32
    %239 = tpu.dynamic_rotate %35 by %c478_i32 dim 1 : vector<4x512xf32>, i32 -> vector<4x512xf32>
    %c40 = arith.constant 40 : index
    %c0_117 = arith.constant 0 : index
    %c0_118 = arith.constant 0 : index
    %240 = vector.load %arg10[%c40, %c0_117, %c0_118] : memref<49x4x512xf32, #tpu.memory_space<vmem>>, vector<1x4x512xf32>
    %241 = vector.shape_cast %240 : vector<1x4x512xf32> to vector<4x512xf32>
    %242 = arith.mulf %239, %241 : vector<4x512xf32>
    %243 = arith.addf %223, %242 : vector<4x512xf32>
    %c477_i32 = arith.constant 477 : i32
    %244 = tpu.dynamic_rotate %35 by %c477_i32 dim 1 : vector<4x512xf32>, i32 -> vector<4x512xf32>
    %c41 = arith.constant 41 : index
    %c0_119 = arith.constant 0 : index
    %c0_120 = arith.constant 0 : index
    %245 = vector.load %arg10[%c41, %c0_119, %c0_120] : memref<49x4x512xf32, #tpu.memory_space<vmem>>, vector<1x4x512xf32>
    %246 = vector.shape_cast %245 : vector<1x4x512xf32> to vector<4x512xf32>
    %247 = arith.mulf %244, %246 : vector<4x512xf32>
    %248 = arith.addf %228, %247 : vector<4x512xf32>
    %c467_i32 = arith.constant 467 : i32
    %249 = tpu.dynamic_rotate %35 by %c467_i32 dim 1 : vector<4x512xf32>, i32 -> vector<4x512xf32>
    %c42 = arith.constant 42 : index
    %c0_121 = arith.constant 0 : index
    %c0_122 = arith.constant 0 : index
    %250 = vector.load %arg10[%c42, %c0_121, %c0_122] : memref<49x4x512xf32, #tpu.memory_space<vmem>>, vector<1x4x512xf32>
    %251 = vector.shape_cast %250 : vector<1x4x512xf32> to vector<4x512xf32>
    %252 = arith.mulf %249, %251 : vector<4x512xf32>
    %253 = arith.addf %233, %252 : vector<4x512xf32>
    %c466_i32 = arith.constant 466 : i32
    %254 = tpu.dynamic_rotate %35 by %c466_i32 dim 1 : vector<4x512xf32>, i32 -> vector<4x512xf32>
    %c43 = arith.constant 43 : index
    %c0_123 = arith.constant 0 : index
    %c0_124 = arith.constant 0 : index
    %255 = vector.load %arg10[%c43, %c0_123, %c0_124] : memref<49x4x512xf32, #tpu.memory_space<vmem>>, vector<1x4x512xf32>
    %256 = vector.shape_cast %255 : vector<1x4x512xf32> to vector<4x512xf32>
    %257 = arith.mulf %254, %256 : vector<4x512xf32>
    %258 = arith.addf %238, %257 : vector<4x512xf32>
    %c465_i32 = arith.constant 465 : i32
    %259 = tpu.dynamic_rotate %35 by %c465_i32 dim 1 : vector<4x512xf32>, i32 -> vector<4x512xf32>
    %c44 = arith.constant 44 : index
    %c0_125 = arith.constant 0 : index
    %c0_126 = arith.constant 0 : index
    %260 = vector.load %arg10[%c44, %c0_125, %c0_126] : memref<49x4x512xf32, #tpu.memory_space<vmem>>, vector<1x4x512xf32>
    %261 = vector.shape_cast %260 : vector<1x4x512xf32> to vector<4x512xf32>
    %262 = arith.mulf %259, %261 : vector<4x512xf32>
    %263 = arith.addf %243, %262 : vector<4x512xf32>
    %c464_i32 = arith.constant 464 : i32
    %264 = tpu.dynamic_rotate %35 by %c464_i32 dim 1 : vector<4x512xf32>, i32 -> vector<4x512xf32>
    %c45 = arith.constant 45 : index
    %c0_127 = arith.constant 0 : index
    %c0_128 = arith.constant 0 : index
    %265 = vector.load %arg10[%c45, %c0_127, %c0_128] : memref<49x4x512xf32, #tpu.memory_space<vmem>>, vector<1x4x512xf32>
    %266 = vector.shape_cast %265 : vector<1x4x512xf32> to vector<4x512xf32>
    %267 = arith.mulf %264, %266 : vector<4x512xf32>
    %268 = arith.addf %248, %267 : vector<4x512xf32>
    %c463_i32 = arith.constant 463 : i32
    %269 = tpu.dynamic_rotate %35 by %c463_i32 dim 1 : vector<4x512xf32>, i32 -> vector<4x512xf32>
    %c46 = arith.constant 46 : index
    %c0_129 = arith.constant 0 : index
    %c0_130 = arith.constant 0 : index
    %270 = vector.load %arg10[%c46, %c0_129, %c0_130] : memref<49x4x512xf32, #tpu.memory_space<vmem>>, vector<1x4x512xf32>
    %271 = vector.shape_cast %270 : vector<1x4x512xf32> to vector<4x512xf32>
    %272 = arith.mulf %269, %271 : vector<4x512xf32>
    %273 = arith.addf %253, %272 : vector<4x512xf32>
    %c462_i32 = arith.constant 462 : i32
    %274 = tpu.dynamic_rotate %35 by %c462_i32 dim 1 : vector<4x512xf32>, i32 -> vector<4x512xf32>
    %c47 = arith.constant 47 : index
    %c0_131 = arith.constant 0 : index
    %c0_132 = arith.constant 0 : index
    %275 = vector.load %arg10[%c47, %c0_131, %c0_132] : memref<49x4x512xf32, #tpu.memory_space<vmem>>, vector<1x4x512xf32>
    %276 = vector.shape_cast %275 : vector<1x4x512xf32> to vector<4x512xf32>
    %277 = arith.mulf %274, %276 : vector<4x512xf32>
    %278 = arith.addf %258, %277 : vector<4x512xf32>
    %c461_i32 = arith.constant 461 : i32
    %279 = tpu.dynamic_rotate %35 by %c461_i32 dim 1 : vector<4x512xf32>, i32 -> vector<4x512xf32>
    %c48 = arith.constant 48 : index
    %c0_133 = arith.constant 0 : index
    %c0_134 = arith.constant 0 : index
    %280 = vector.load %arg10[%c48, %c0_133, %c0_134] : memref<49x4x512xf32, #tpu.memory_space<vmem>>, vector<1x4x512xf32>
    %281 = vector.shape_cast %280 : vector<1x4x512xf32> to vector<4x512xf32>
    %282 = arith.mulf %279, %281 : vector<4x512xf32>
    %283 = arith.addf %263, %282 : vector<4x512xf32>
    %284 = arith.addf %283, %268 : vector<4x512xf32>
    %285 = arith.addf %273, %278 : vector<4x512xf32>
    %286 = arith.addf %284, %285 : vector<4x512xf32>
    %287 = vector.extract_strided_slice %286 {offsets = [0, 0], sizes = [1, 512], strides = [1, 1]} : vector<4x512xf32> to vector<1x512xf32>
    %288 = vector.extract_strided_slice %286 {offsets = [1, 0], sizes = [1, 512], strides = [1, 1]} : vector<4x512xf32> to vector<1x512xf32>
    %289 = arith.addf %287, %288 : vector<1x512xf32>
    %290 = arith.negf %289 : vector<1x512xf32>
    %291 = math.exp %290 : vector<1x512xf32>
    %cst_135 = arith.constant 1.000000e+00 : f32
    %292 = vector.broadcast %cst_135 : f32 to vector<1x512xf32>
    %293 = arith.addf %292, %291 : vector<1x512xf32>
    %294 = arith.divf %292, %293 : vector<1x512xf32>
    %295 = vector.extract_strided_slice %286 {offsets = [2, 0], sizes = [1, 512], strides = [1, 1]} : vector<4x512xf32> to vector<1x512xf32>
    %296 = vector.extract_strided_slice %286 {offsets = [3, 0], sizes = [1, 512], strides = [1, 1]} : vector<4x512xf32> to vector<1x512xf32>
    %297 = arith.addf %295, %296 : vector<1x512xf32>
    %298 = arith.negf %297 : vector<1x512xf32>
    %299 = math.exp %298 : vector<1x512xf32>
    %cst_136 = arith.constant 1.000000e+00 : f32
    %300 = vector.broadcast %cst_136 : f32 to vector<1x512xf32>
    %301 = arith.addf %300, %299 : vector<1x512xf32>
    %302 = arith.divf %300, %301 : vector<1x512xf32>
    %303 = arith.mulf %10, %18 : vector<4x512xf32>
    %cst_137 = arith.constant dense<0.000000e+00> : vector<512xf32>
    %304 = vector.multi_reduction <add>, %303, %cst_137 [0] : vector<4x512xf32> to vector<512xf32>
    %305 = vector.shape_cast %304 : vector<512xf32> to vector<1x512xf32>
    %306 = arith.mulf %10, %10 : vector<4x512xf32>
    %cst_138 = arith.constant dense<0.000000e+00> : vector<512xf32>
    %307 = vector.multi_reduction <add>, %306, %cst_138 [0] : vector<4x512xf32> to vector<512xf32>
    %308 = vector.shape_cast %307 : vector<512xf32> to vector<1x512xf32>
    %309 = arith.mulf %18, %18 : vector<4x512xf32>
    %cst_139 = arith.constant dense<0.000000e+00> : vector<512xf32>
    %310 = vector.multi_reduction <add>, %309, %cst_139 [0] : vector<4x512xf32> to vector<512xf32>
    %311 = vector.shape_cast %310 : vector<512xf32> to vector<1x512xf32>
    %cst_140 = arith.constant 1.000000e-16 : f32
    %312 = vector.broadcast %cst_140 : f32 to vector<1x512xf32>
    %313 = arith.maximumf %308, %312 : vector<1x512xf32>
    %cst_141 = arith.constant 1.000000e-16 : f32
    %314 = vector.broadcast %cst_141 : f32 to vector<1x512xf32>
    %315 = arith.maximumf %311, %314 : vector<1x512xf32>
    %316 = arith.mulf %313, %315 : vector<1x512xf32>
    %317 = math.rsqrt %316 : vector<1x512xf32>
    %318 = arith.mulf %305, %317 : vector<1x512xf32>
    %cst_142 = arith.constant 4.000000e-01 : f32
    %319 = vector.broadcast %cst_142 : f32 to vector<1x512xf32>
    %320 = arith.maximumf %318, %319 : vector<1x512xf32>
    %cst_143 = arith.constant 5.000000e-01 : f32
    %321 = vector.broadcast %cst_143 : f32 to vector<1x512xf32>
    %322 = arith.cmpf ogt, %294, %321 : vector<1x512xf32>
    %cst_144 = arith.constant 5.000000e-01 : f32
    %323 = vector.broadcast %cst_144 : f32 to vector<1x512xf32>
    %324 = arith.cmpf ogt, %302, %323 : vector<1x512xf32>
    %325 = arith.andi %322, %324 : vector<1x512xi1>
    %cst_145 = arith.constant 2.000000e+00 : f32
    %326 = vector.broadcast %cst_145 : f32 to vector<1x512xf32>
    %327 = arith.mulf %326, %320 : vector<1x512xf32>
    %328 = arith.ori %322, %324 : vector<1x512xi1>
    %cst_146 = arith.constant 1.000000e+00 : f32
    %329 = vector.broadcast %cst_146 : f32 to vector<1x512xf32>
    %330 = arith.subf %329, %320 : vector<1x512xf32>
    %cst_147 = arith.constant 4.000000e-01 : f32
    %331 = vector.broadcast %cst_147 : f32 to vector<1x512xf32>
    %332 = arith.mulf %331, %330 : vector<1x512xf32>
    %cst_148 = arith.constant 4.000000e-01 : f32
    %333 = vector.broadcast %cst_148 : f32 to vector<1x512xf32>
    %334 = arith.select %328, %333, %332 : vector<1x512xi1>, vector<1x512xf32>
    %335 = arith.select %325, %327, %334 : vector<1x512xi1>, vector<1x512xf32>
    %336 = arith.addf %294, %302 : vector<1x512xf32>
    %cst_149 = arith.constant 5.000000e-01 : f32
    %337 = vector.broadcast %cst_149 : f32 to vector<1x512xf32>
    %338 = arith.mulf %337, %336 : vector<1x512xf32>
    %339 = arith.mulf %338, %335 : vector<1x512xf32>
    %c0_150 = arith.constant 0 : index
    %c0_151 = arith.constant 0 : index
    %340 = vector.load %arg14[%c0_150, %c0_151] : memref<1x512xf32, #tpu.memory_space<vmem>>, vector<1x512xf32>
    tpu.vector_store %arg14[%c0_150, %c0_151], %339 {strides = array<i32>} : memref<1x512xf32, #tpu.memory_space<vmem>>, vector<1x512xf32>,
    %341 = vector.broadcast %339 : vector<1x512xf32> to vector<4x512xf32>
    %342 = arith.mulf %18, %341 : vector<4x512xf32>
    %c0_152 = arith.constant 0 : index
    %c0_153 = arith.constant 0 : index
    %343 = vector.load %arg8[%c0_152, %c0_153] : memref<4x4xf32, #tpu.memory_space<vmem>>, vector<4x4xf32>
    %cst_154 = arith.constant dense<0.000000e+00> : vector<4x512xf32>
    %344 = tpu.matmul %343, %342, %cst_154 {dimension_numbers = #tpu.dot_dimension_numbers<[1], [0], [0], [1], [0, 0, 1, 1], [], []>} : vector<4x4xf32>, vector<4x512xf32>, vector<4x512xf32> -> vector<4x512xf32>
    %c0_155 = arith.constant 0 : index
    %c0_156 = arith.constant 0 : index
    %345 = vector.load %arg9[%c0_155, %c0_156] : memref<4x1xf32, #tpu.memory_space<vmem>>, vector<4x1xf32>
    %346 = vector.broadcast %345 : vector<4x1xf32> to vector<4x512xf32>
    %347 = arith.addf %344, %346 : vector<4x512xf32>
    %cst_157 = arith.constant 0.000000e+00 : f32
    %348 = vector.broadcast %cst_157 : f32 to vector<4x512xf32>
    %349 = arith.maximumf %347, %348 : vector<4x512xf32>
    %cst_158 = arith.constant dense<0.000000e+00> : vector<4xf32>
    %350 = vector.multi_reduction <add>, %349, %cst_158 [1] : vector<4x512xf32> to vector<4xf32>
    %351 = vector.shape_cast %350 : vector<4xf32> to vector<4x1xf32>
    %cst_159 = arith.constant 0.001953125 : f32
    %352 = vector.broadcast %cst_159 : f32 to vector<4x1xf32>
    %353 = arith.mulf %351, %352 : vector<4x1xf32>
    %354 = vector.broadcast %353 : vector<4x1xf32> to vector<4x512xf32>
    %355 = arith.subf %349, %354 : vector<4x512xf32>
    %356 = arith.mulf %355, %355 : vector<4x512xf32>
    %cst_160 = arith.constant dense<0.000000e+00> : vector<4xf32>
    %357 = vector.multi_reduction <add>, %356, %cst_160 [1] : vector<4x512xf32> to vector<4xf32>
    %358 = vector.shape_cast %357 : vector<4xf32> to vector<4x1xf32>
    %cst_161 = arith.constant 0.001953125 : f32
    %359 = vector.broadcast %cst_161 : f32 to vector<4x1xf32>
    %360 = arith.mulf %358, %359 : vector<4x1xf32>
    %c0_162 = arith.constant 0 : index
    %c0_163 = arith.constant 0 : index
    %361 = vector.load %arg11[%c0_162, %c0_163] : memref<4x1xf32, #tpu.memory_space<vmem>>, vector<4x1xf32>
    %cst_164 = arith.constant 9.99999974E-6 : f32
    %362 = vector.broadcast %cst_164 : f32 to vector<4x1xf32>
    %363 = arith.addf %360, %362 : vector<4x1xf32>
    %364 = math.rsqrt %363 : vector<4x1xf32>
    %365 = arith.mulf %361, %364 : vector<4x1xf32>
    %366 = vector.broadcast %365 : vector<4x1xf32> to vector<4x512xf32>
    %367 = arith.mulf %355, %366 : vector<4x512xf32>
    %c0_165 = arith.constant 0 : index
    %c0_166 = arith.constant 0 : index
    %368 = vector.load %arg12[%c0_165, %c0_166] : memref<4x1xf32, #tpu.memory_space<vmem>>, vector<4x1xf32>
    %369 = vector.broadcast %368 : vector<4x1xf32> to vector<4x512xf32>
    %370 = arith.addf %367, %369 : vector<4x512xf32>
    %c0_167 = arith.constant 0 : index
    %c0_168 = arith.constant 0 : index
    %371 = vector.load %arg13[%c0_167, %c0_168] : memref<4x512xf32, #tpu.memory_space<vmem>>, vector<4x512xf32>
    tpu.vector_store %arg13[%c0_167, %c0_168], %370 {strides = array<i32>} : memref<4x512xf32, #tpu.memory_space<vmem>>, vector<4x512xf32>,
    return
  }
  func.func @transform_0(%arg0: i32) -> (i32, i32) {
    %c0_i32 = arith.constant 0 : i32
    %c0_i32_0 = arith.constant 0 : i32
    %c0_i32_1 = arith.constant 0 : i32
    return %c0_i32, %c0_i32_0 : i32, i32
  }
  func.func @transform_1(%arg0: i32) -> (i32, i32) {
    %c0_i32 = arith.constant 0 : i32
    %c0_i32_0 = arith.constant 0 : i32
    %c0_i32_1 = arith.constant 0 : i32
    return %c0_i32, %c0_i32_0 : i32, i32
  }
  func.func @transform_2(%arg0: i32) -> (i32, i32) {
    %c0_i32 = arith.constant 0 : i32
    %c0_i32_0 = arith.constant 0 : i32
    %c0_i32_1 = arith.constant 0 : i32
    return %c0_i32, %c0_i32_0 : i32, i32
  }
  func.func @transform_3(%arg0: i32) -> (i32, i32) {
    %c0_i32 = arith.constant 0 : i32
    %c0_i32_0 = arith.constant 0 : i32
    %c0_i32_1 = arith.constant 0 : i32
    return %c0_i32, %c0_i32_0 : i32, i32
  }
  func.func @transform_4(%arg0: i32) -> (i32, i32) {
    %c0_i32 = arith.constant 0 : i32
    %c0_i32_0 = arith.constant 0 : i32
    %c0_i32_1 = arith.constant 0 : i32
    return %c0_i32, %c0_i32_0 : i32, i32
  }
  func.func @transform_5(%arg0: i32) -> (i32, i32) {
    %c0_i32 = arith.constant 0 : i32
    %c0_i32_0 = arith.constant 0 : i32
    %c0_i32_1 = arith.constant 0 : i32
    return %c0_i32, %c0_i32_0 : i32, i32
  }
  func.func @transform_6(%arg0: i32) -> (i32, i32) {
    %c0_i32 = arith.constant 0 : i32
    %c0_i32_0 = arith.constant 0 : i32
    %c0_i32_1 = arith.constant 0 : i32
    return %c0_i32, %c0_i32_0 : i32, i32
  }
  func.func @transform_7(%arg0: i32) -> (i32, i32) {
    %c0_i32 = arith.constant 0 : i32
    %c0_i32_0 = arith.constant 0 : i32
    %c0_i32_1 = arith.constant 0 : i32
    return %c0_i32, %c0_i32_0 : i32, i32
  }
  func.func @transform_8(%arg0: i32) -> (i32, i32) {
    %c0_i32 = arith.constant 0 : i32
    %c0_i32_0 = arith.constant 0 : i32
    %c0_i32_1 = arith.constant 0 : i32
    return %c0_i32, %c0_i32_0 : i32, i32
  }
  func.func @transform_9(%arg0: i32) -> (i32, i32, i32) {
    %c0_i32 = arith.constant 0 : i32
    %c0_i32_0 = arith.constant 0 : i32
    %c0_i32_1 = arith.constant 0 : i32
    %c0_i32_2 = arith.constant 0 : i32
    return %c0_i32, %c0_i32_0, %c0_i32_1 : i32, i32, i32
  }
  func.func @transform_10(%arg0: i32) -> (i32, i32) {
    %c0_i32 = arith.constant 0 : i32
    %c0_i32_0 = arith.constant 0 : i32
    %c0_i32_1 = arith.constant 0 : i32
    return %c0_i32, %c0_i32_0 : i32, i32
  }
  func.func @transform_11(%arg0: i32) -> (i32, i32) {
    %c0_i32 = arith.constant 0 : i32
    %c0_i32_0 = arith.constant 0 : i32
    %c0_i32_1 = arith.constant 0 : i32
    return %c0_i32, %c0_i32_0 : i32, i32
  }
  func.func @transform_12(%arg0: i32) -> (i32, i32) {
    %c0_i32 = arith.constant 0 : i32
    %c0_i32_0 = arith.constant 0 : i32
    %c0_i32_1 = arith.constant 0 : i32
    return %c0_i32, %c0_i32_0 : i32, i32
  }
  func.func @transform_13(%arg0: i32) -> (i32, i32) {
    %c0_i32 = arith.constant 0 : i32
    %c0_i32_0 = arith.constant 0 : i32
    %c0_i32_1 = arith.constant 0 : i32
    return %c0_i32, %c0_i32_0 : i32, i32
  }
}

</mosaic_0001>

<llo_original>
// kernel: sca_forward.1
$region0: #{sca_forward.1}
  #allocation0 [shape = 'u32[]', space=smem, size = 0x4, offset = 0x4, fixed_abs, tag = 'smem constant byte address 0x4 - core index']
  #allocation1 [shape = 'u32[144,128]{1,0:T(1,128)}', space=vmem, size = 0x12000, scoped, tag = 'internal scratch']
  #allocation2 [shape = 'f32[4,512]{1,0:T(4,128)}', space=vmem, size = 0x2000, scoped, tag = 'scratch operand']
  %s0 = inlined_call_operand.vmem [shape: f32[4,512], index: 0, kind: input, shape index: {}]
  %s1 = inlined_call_operand.vmem [shape: f32[4,512], index: 1, kind: input, shape index: {}]
  %s2 = inlined_call_operand.vmem [shape: f32[4,512], index: 2, kind: input, shape index: {}]
  %s3 = inlined_call_operand.vmem [shape: f32[4,4], index: 3, kind: input, shape index: {}]
  %s4 = inlined_call_operand.vmem [shape: f32[4,1], index: 4, kind: input, shape index: {}]
  %s5 = inlined_call_operand.vmem [shape: f32[4,4], index: 5, kind: input, shape index: {}]
  %s6 = inlined_call_operand.vmem [shape: f32[4,1], index: 6, kind: input, shape index: {}]
  %s7 = inlined_call_operand.vmem [shape: f32[4,4], index: 7, kind: input, shape index: {}]
  %s8 = inlined_call_operand.vmem [shape: f32[4,1], index: 8, kind: input, shape index: {}]
  %s9 = inlined_call_operand.vmem [shape: f32[49,4,512], index: 9, kind: input, shape index: {}]
  %s10 = inlined_call_operand.vmem [shape: f32[4,1], index: 10, kind: input, shape index: {}]
  %s11 = inlined_call_operand.vmem [shape: f32[4,1], index: 11, kind: input, shape index: {}]
  %s12 = inlined_call_operand.vmem [shape: f32[4,512], index: 12, kind: output, shape index: {0}]
  %s13 = inlined_call_operand.vmem [shape: f32[1,512], index: 13, kind: output, shape index: {1}]
  %14 = xla_tuple %s12, %s13
  %s15 = sld [smem:[#allocation0]]
  $region66: #{sca_forward.1} parent=0
    _
  %s17 = ssub.s32 1, %s15
  %s18 = scalar_select 0, %s17, %s15
  // Predicated region
  $region2: #{sca_forward.1} parent=0 // pred_check
    _
  $region3: #{sca_forward.1} parent=0 // pred_check_branch
    %20 = sbr.rel (0) target = $region5
  $region4: #{sca_forward.1} parent=0 // pred_region
    _
  $region5: #{sca_forward.1} parent=0 // pred_fallthru
    _
  // Predicated region
  $region6: #{sca_forward.1} parent=0 // pred_check
    _
  $region7: #{sca_forward.1} parent=0 // pred_check_branch
    %22 = sbr.rel (0) target = $region9
  $region8: #{sca_forward.1} parent=0 // pred_region
    _
  $region9: #{sca_forward.1} parent=0 // pred_fallthru
    _
  // Predicated region
  $region10: #{sca_forward.1} parent=0 // pred_check
    _
  $region11: #{sca_forward.1} parent=0 // pred_check_branch
    %24 = sbr.rel (0) target = $region13
  $region12: #{sca_forward.1} parent=0 // pred_region
    _
  $region13: #{sca_forward.1} parent=0 // pred_fallthru
    _
  // Predicated region
  $region14: #{sca_forward.1} parent=0 // pred_check
    _
  $region15: #{sca_forward.1} parent=0 // pred_check_branch
    %26 = sbr.rel (0) target = $region17
  $region16: #{sca_forward.1} parent=0 // pred_region
    _
  $region17: #{sca_forward.1} parent=0 // pred_fallthru
    _
  // Predicated region
  $region18: #{sca_forward.1} parent=0 // pred_check
    _
  $region19: #{sca_forward.1} parent=0 // pred_check_branch
    %28 = sbr.rel (0) target = $region21
  $region20: #{sca_forward.1} parent=0 // pred_region
    _
  $region21: #{sca_forward.1} parent=0 // pred_fallthru
    _
  // Predicated region
  $region22: #{sca_forward.1} parent=0 // pred_check
    _
  $region23: #{sca_forward.1} parent=0 // pred_check_branch
    %30 = sbr.rel (0) target = $region25
  $region24: #{sca_forward.1} parent=0 // pred_region
    _
  $region25: #{sca_forward.1} parent=0 // pred_fallthru
    _
  // Predicated region
  $region26: #{sca_forward.1} parent=0 // pred_check
    _
  $region27: #{sca_forward.1} parent=0 // pred_check_branch
    %32 = sbr.rel (0) target = $region29
  $region28: #{sca_forward.1} parent=0 // pred_region
    _
  $region29: #{sca_forward.1} parent=0 // pred_fallthru
    _
  // Predicated region
  $region30: #{sca_forward.1} parent=0 // pred_check
    _
  $region31: #{sca_forward.1} parent=0 // pred_check_branch
    %34 = sbr.rel (0) target = $region33
  $region32: #{sca_forward.1} parent=0 // pred_region
    _
  $region33: #{sca_forward.1} parent=0 // pred_fallthru
    _
  // Predicated region
  $region34: #{sca_forward.1} parent=0 // pred_check
    _
  $region35: #{sca_forward.1} parent=0 // pred_check_branch
    %36 = sbr.rel (0) target = $region37
  $region36: #{sca_forward.1} parent=0 // pred_region
    _
  $region37: #{sca_forward.1} parent=0 // pred_fallthru
    _
  // Predicated region
  $region38: #{sca_forward.1} parent=0 // pred_check
    _
  $region39: #{sca_forward.1} parent=0 // pred_check_branch
    %38 = sbr.rel (0) target = $region41
  $region40: #{sca_forward.1} parent=0 // pred_region
    _
  $region41: #{sca_forward.1} parent=0 // pred_fallthru
    _
  // Predicated region
  $region42: #{sca_forward.1} parent=0 // pred_check
    _
  $region43: #{sca_forward.1} parent=0 // pred_check_branch
    %40 = sbr.rel (0) target = $region45
  $region44: #{sca_forward.1} parent=0 // pred_region
    _
  $region45: #{sca_forward.1} parent=0 // pred_fallthru
    _
  // Predicated region
  $region46: #{sca_forward.1} parent=0 // pred_check
    _
  $region47: #{sca_forward.1} parent=0 // pred_check_branch
    %42 = sbr.rel (0) target = $region49
  $region48: #{sca_forward.1} parent=0 // pred_region
    _
  $region49: #{sca_forward.1} parent=0 // pred_fallthru
    _
  %v43 = vld [vmem:[%s1] sm:$0xff]
  %v44 = vld [vmem:[%s1 + $0x8] sm:$0xff]
  %v45 = vld [vmem:[%s2] sm:$0xff]
  %v46 = vld [vmem:[%s2 + $0x8] sm:$0xff]
  %v47 = vsub.f32 %v43, %v45
  %v48 = vsub.f32 %v44, %v46
  %v49 = vand.u32 2147483647, %v47
  %v50 = vand.u32 2147483647, %v48
  %v51 = vld [vmem:[%s3] sm:$0xf]
  %v52 = vld [vmem:[%s4] sm:$0xf]
  %54 = vset.pattern.permute.xlu0 0
  %55 = vperm.xlu0 %54, %v52
  %v56 = vpop.permute.xlu0 %55
  %v60 = vcombine.high %v49, %v49
  %v61 = vcombine.high %v50, %v50
  %vm62 = vcmask 31744
  %v64 = vsel %vm62, %v51, 0
  %vm66 = vcmask 1043456
  %v67 = vsel %vm66, %v49, 0
  %v69 = vsel %vm66, %v60, 0
  %v71 = vsel %vm66, %v50, 0
  %v73 = vsel %vm66, %v61, 0
  %75 = vmatprep.subr.mxu0 %v69
  %76 = vmatpush1.msra.mxu0 %v67
  %77 = vmatprep.subr.mxu0 0.0
  %78 = vmatpush1.msra.mxu0 0.0
  %79 = vmatprep.subr.mxu0 0.0
  %80 = vmatpush1.msra.mxu0 0.0
  %81 = vmatprep.subr.mxu0 0.0
  %82 = vmatpush1.msra.mxu0 0.0
  %83 = vmatprep.subr.mxu0 0.0
  %84 = vmatpush1.msra.mxu0 0.0
  %85 = vmatprep.subr.mxu0 0.0
  %86 = vmatpush1.msra.mxu0 0.0
  %87 = vmatprep.subr.mxu0 0.0
  %88 = vmatpush1.msra.mxu0 0.0
  %89 = vmatprep.subr.mxu0 0.0
  %90 = vmatpush1.msra.mxu0 0.0
  %91 = vmatprep.subr.mxu0 0.0
  %92 = vmatpush1.msra.mxu0 0.0
  %93 = vmatprep.subr.mxu0 0.0
  %94 = vmatpush1.msra.mxu0 0.0
  %95 = vmatprep.subr.mxu0 0.0
  %96 = vmatpush1.msra.mxu0 0.0
  %97 = vmatprep.subr.mxu0 0.0
  %98 = vmatpush1.msra.mxu0 0.0
  %99 = vmatprep.subr.mxu0 0.0
  %100 = vmatpush1.msra.mxu0 0.0
  %101 = vmatprep.subr.mxu0 0.0
  %102 = vmatpush1.msra.mxu0 0.0
  %103 = vmatprep.subr.mxu0 0.0
  %104 = vmatpush1.msra.mxu0 0.0
  %105 = vmatprep.subr.mxu0 0.0
  %106 = vmatpush1.msra.mxu0 0.0
  %107 = vmatprep.subr.mxu0 0.0
  %108 = vmatpush1.msra.mxu0 0.0
  %109 = vmatprep.subr.mxu0 0.0
  %110 = vmatpush1.msra.mxu0 0.0
  %111 = vmatprep.subr.mxu0 0.0
  %112 = vmatpush1.msra.mxu0 0.0
  %113 = vmatprep.subr.mxu0 0.0
  %114 = vmatpush1.msra.mxu0 0.0
  %115 = vmatprep.subr.mxu0 0.0
  %116 = vmatpush1.msra.mxu0 0.0
  %117 = vmatprep.subr.mxu0 0.0
  %118 = vmatpush1.msra.mxu0 0.0
  %119 = vmatprep.subr.mxu0 0.0
  %120 = vmatpush1.msra.mxu0 0.0
  %121 = vmatprep.subr.mxu0 0.0
  %122 = vmatpush1.msra.mxu0 0.0
  %123 = vmatprep.subr.mxu0 0.0
  %124 = vmatpush1.msra.mxu0 0.0
  %125 = vmatprep.subr.mxu0 0.0
  %126 = vmatpush1.msra.mxu0 0.0
  %127 = vmatprep.subr.mxu0 0.0
  %128 = vmatpush1.msra.mxu0 0.0
  %129 = vmatprep.subr.mxu0 0.0
  %130 = vmatpush1.msra.mxu0 0.0
  %131 = vmatprep.subr.mxu0 0.0
  %132 = vmatpush1.msra.mxu0 0.0
  %133 = vmatprep.subr.mxu0 0.0
  %134 = vmatpush1.msra.mxu0 0.0
  %135 = vmatprep.subr.mxu0 0.0
  %136 = vmatpush1.msra.mxu0 0.0
  %137 = vmatprep.subr.mxu0 0.0
  %138 = vmatpush1.msra.mxu0 0.0
  %139 = vmatprep.mubr.f32.mxu0 0.0
  %140 = vmatmul.mubr.f32.gmra.mrb[0].mxu0 %v64
  %v141 = vpop.f32.mrb[0].mxu0
  %v142 = vadd.f32 %v56, %v141
  %v143 = vpop.f32.mrb[0].mxu0
  %v144 = vadd.f32 %v56, %v143
  %145 = vdwg.mxu0
  %146 = vmatprep.subr.mxu0 %v73
  %147 = vmatpush1.msra.mxu0 %v71
  %148 = vmatprep.subr.mxu0 0.0
  %149 = vmatpush1.msra.mxu0 0.0
  %150 = vmatprep.subr.mxu0 0.0
  %151 = vmatpush1.msra.mxu0 0.0
  %152 = vmatprep.subr.mxu0 0.0
  %153 = vmatpush1.msra.mxu0 0.0
  %154 = vmatprep.subr.mxu0 0.0
  %155 = vmatpush1.msra.mxu0 0.0
  %156 = vmatprep.subr.mxu0 0.0
  %157 = vmatpush1.msra.mxu0 0.0
  %158 = vmatprep.subr.mxu0 0.0
  %159 = vmatpush1.msra.mxu0 0.0
  %160 = vmatprep.subr.mxu0 0.0
  %161 = vmatpush1.msra.mxu0 0.0
  %162 = vmatprep.subr.mxu0 0.0
  %163 = vmatpush1.msra.mxu0 0.0
  %164 = vmatprep.subr.mxu0 0.0
  %165 = vmatpush1.msra.mxu0 0.0
  %166 = vmatprep.subr.mxu0 0.0
  %167 = vmatpush1.msra.mxu0 0.0
  %168 = vmatprep.subr.mxu0 0.0
  %169 = vmatpush1.msra.mxu0 0.0
  %170 = vmatprep.subr.mxu0 0.0
  %171 = vmatpush1.msra.mxu0 0.0
  %172 = vmatprep.subr.mxu0 0.0
  %173 = vmatpush1.msra.mxu0 0.0
  %174 = vmatprep.subr.mxu0 0.0
  %175 = vmatpush1.msra.mxu0 0.0
  %176 = vmatprep.subr.mxu0 0.0
  %177 = vmatpush1.msra.mxu0 0.0
  %178 = vmatprep.subr.mxu0 0.0
  %179 = vmatpush1.msra.mxu0 0.0
  %180 = vmatprep.subr.mxu0 0.0
  %181 = vmatpush1.msra.mxu0 0.0
  %182 = vmatprep.subr.mxu0 0.0
  %183 = vmatpush1.msra.mxu0 0.0
  %184 = vmatprep.subr.mxu0 0.0
  %185 = vmatpush1.msra.mxu0 0.0
  %186 = vmatprep.subr.mxu0 0.0
  %187 = vmatpush1.msra.mxu0 0.0
  %188 = vmatprep.subr.mxu0 0.0
  %189 = vmatpush1.msra.mxu0 0.0
  %190 = vmatprep.subr.mxu0 0.0
  %191 = vmatpush1.msra.mxu0 0.0
  %192 = vmatprep.subr.mxu0 0.0
  %193 = vmatpush1.msra.mxu0 0.0
  %194 = vmatprep.subr.mxu0 0.0
  %195 = vmatpush1.msra.mxu0 0.0
  %196 = vmatprep.subr.mxu0 0.0
  %197 = vmatpush1.msra.mxu0 0.0
  %198 = vmatprep.subr.mxu0 0.0
  %199 = vmatpush1.msra.mxu0 0.0
  %200 = vmatprep.subr.mxu0 0.0
  %201 = vmatpush1.msra.mxu0 0.0
  %202 = vmatprep.subr.mxu0 0.0
  %203 = vmatpush1.msra.mxu0 0.0
  %204 = vmatprep.subr.mxu0 0.0
  %205 = vmatpush1.msra.mxu0 0.0
  %206 = vmatprep.subr.mxu0 0.0
  %207 = vmatpush1.msra.mxu0 0.0
  %208 = vmatprep.subr.mxu0 0.0
  %209 = vmatpush1.msra.mxu0 0.0
  %210 = vmatprep.mubr.f32.mxu0 0.0
  %211 = vmatmul.mubr.f32.gmra.mrb[0].mxu0 %v64
  %v212 = vpop.f32.mrb[0].mxu0
  %v213 = vadd.f32 %v56, %v212
  %v214 = vpop.f32.mrb[0].mxu0
  %v215 = vadd.f32 %v56, %v214
  %216 = vdwg.mxu0
  %v217 = vmax.f32 %v142, 0.0
  %v218 = vmax.f32 %v144, 0.0
  %v219 = vmax.f32 %v213, 0.0
  %v220 = vmax.f32 %v215, 0.0
  %v221 = vld [vmem:[%s0] sm:$0xff]
  %v222 = vld [vmem:[%s0 + $0x8] sm:$0xff]
  %v223 = vld [vmem:[%s5] sm:$0xf]
  %v224 = vld [vmem:[%s6] sm:$0xf]
  %226 = vset.pattern.permute.xlu0 0
  %227 = vperm.xlu0 %226, %v224
  %v228 = vpop.permute.xlu0 %227
  %v232 = vcombine.high %v221, %v221
  %v233 = vcombine.high %v222, %v222
  %v235 = vsel %vm62, %v223, 0
  %v237 = vsel %vm66, %v221, 0
  %v239 = vsel %vm66, %v232, 0
  %v241 = vsel %vm66, %v222, 0
  %v243 = vsel %vm66, %v233, 0
  %245 = vmatprep.subr.mxu0 %v239
  %246 = vmatpush1.msra.mxu0 %v237
  %247 = vmatprep.subr.mxu0 0.0
  %248 = vmatpush1.msra.mxu0 0.0
  %249 = vmatprep.subr.mxu0 0.0
  %250 = vmatpush1.msra.mxu0 0.0
  %251 = vmatprep.subr.mxu0 0.0
  %252 = vmatpush1.msra.mxu0 0.0
  %253 = vmatprep.subr.mxu0 0.0
  %254 = vmatpush1.msra.mxu0 0.0
  %255 = vmatprep.subr.mxu0 0.0
  %256 = vmatpush1.msra.mxu0 0.0
  %257 = vmatprep.subr.mxu0 0.0
  %258 = vmatpush1.msra.mxu0 0.0
  %259 = vmatprep.subr.mxu0 0.0
  %260 = vmatpush1.msra.mxu0 0.0
  %261 = vmatprep.subr.mxu0 0.0
  %262 = vmatpush1.msra.mxu0 0.0
  %263 = vmatprep.subr.mxu0 0.0
  %264 = vmatpush1.msra.mxu0 0.0
  %265 = vmatprep.subr.mxu0 0.0
  %266 = vmatpush1.msra.mxu0 0.0
  %267 = vmatprep.subr.mxu0 0.0
  %268 = vmatpush1.msra.mxu0 0.0
  %269 = vmatprep.subr.mxu0 0.0
  %270 = vmatpush1.msra.mxu0 0.0
  %271 = vmatprep.subr.mxu0 0.0
  %272 = vmatpush1.msra.mxu0 0.0
  %273 = vmatprep.subr.mxu0 0.0
  %274 = vmatpush1.msra.mxu0 0.0
  %275 = vmatprep.subr.mxu0 0.0
  %276 = vmatpush1.msra.mxu0 0.0
  %277 = vmatprep.subr.mxu0 0.0
  %278 = vmatpush1.msra.mxu0 0.0
  %279 = vmatprep.subr.mxu0 0.0
  %280 = vmatpush1.msra.mxu0 0.0
  %281 = vmatprep.subr.mxu0 0.0
  %282 = vmatpush1.msra.mxu0 0.0
  %283 = vmatprep.subr.mxu0 0.0
  %284 = vmatpush1.msra.mxu0 0.0
  %285 = vmatprep.subr.mxu0 0.0
  %286 = vmatpush1.msra.mxu0 0.0
  %287 = vmatprep.subr.mxu0 0.0
  %288 = vmatpush1.msra.mxu0 0.0
  %289 = vmatprep.subr.mxu0 0.0
  %290 = vmatpush1.msra.mxu0 0.0
  %291 = vmatprep.subr.mxu0 0.0
  %292 = vmatpush1.msra.mxu0 0.0
  %293 = vmatprep.subr.mxu0 0.0
  %294 = vmatpush1.msra.mxu0 0.0
  %295 = vmatprep.subr.mxu0 0.0
  %296 = vmatpush1.msra.mxu0 0.0
  %297 = vmatprep.subr.mxu0 0.0
  %298 = vmatpush1.msra.mxu0 0.0
  %299 = vmatprep.subr.mxu0 0.0
  %300 = vmatpush1.msra.mxu0 0.0
  %301 = vmatprep.subr.mxu0 0.0
  %302 = vmatpush1.msra.mxu0 0.0
  %303 = vmatprep.subr.mxu0 0.0
  %304 = vmatpush1.msra.mxu0 0.0
  %305 = vmatprep.subr.mxu0 0.0
  %306 = vmatpush1.msra.mxu0 0.0
  %307 = vmatprep.subr.mxu0 0.0
  %308 = vmatpush1.msra.mxu0 0.0
  %309 = vmatprep.mubr.f32.mxu0 0.0
  %310 = vmatmul.mubr.f32.gmra.mrb[0].mxu0 %v235
  %v311 = vpop.f32.mrb[0].mxu0
  %v312 = vadd.f32 %v228, %v311
  %v313 = vpop.f32.mrb[0].mxu0
  %v314 = vadd.f32 %v228, %v313
  %315 = vdwg.mxu0
  %316 = vmatprep.subr.mxu0 %v243
  %317 = vmatpush1.msra.mxu0 %v241
  %318 = vmatprep.subr.mxu0 0.0
  %319 = vmatpush1.msra.mxu0 0.0
  %320 = vmatprep.subr.mxu0 0.0
  %321 = vmatpush1.msra.mxu0 0.0
  %322 = vmatprep.subr.mxu0 0.0
  %323 = vmatpush1.msra.mxu0 0.0
  %324 = vmatprep.subr.mxu0 0.0
  %325 = vmatpush1.msra.mxu0 0.0
  %326 = vmatprep.subr.mxu0 0.0
  %327 = vmatpush1.msra.mxu0 0.0
  %328 = vmatprep.subr.mxu0 0.0
  %329 = vmatpush1.msra.mxu0 0.0
  %330 = vmatprep.subr.mxu0 0.0
  %331 = vmatpush1.msra.mxu0 0.0
  %332 = vmatprep.subr.mxu0 0.0
  %333 = vmatpush1.msra.mxu0 0.0
  %334 = vmatprep.subr.mxu0 0.0
  %335 = vmatpush1.msra.mxu0 0.0
  %336 = vmatprep.subr.mxu0 0.0
  %337 = vmatpush1.msra.mxu0 0.0
  %338 = vmatprep.subr.mxu0 0.0
  %339 = vmatpush1.msra.mxu0 0.0
  %340 = vmatprep.subr.mxu0 0.0
  %341 = vmatpush1.msra.mxu0 0.0
  %342 = vmatprep.subr.mxu0 0.0
  %343 = vmatpush1.msra.mxu0 0.0
  %344 = vmatprep.subr.mxu0 0.0
  %345 = vmatpush1.msra.mxu0 0.0
  %346 = vmatprep.subr.mxu0 0.0
  %347 = vmatpush1.msra.mxu0 0.0
  %348 = vmatprep.subr.mxu0 0.0
  %349 = vmatpush1.msra.mxu0 0.0
  %350 = vmatprep.subr.mxu0 0.0
  %351 = vmatpush1.msra.mxu0 0.0
  %352 = vmatprep.subr.mxu0 0.0
  %353 = vmatpush1.msra.mxu0 0.0
  %354 = vmatprep.subr.mxu0 0.0
  %355 = vmatpush1.msra.mxu0 0.0
  %356 = vmatprep.subr.mxu0 0.0
  %357 = vmatpush1.msra.mxu0 0.0
  %358 = vmatprep.subr.mxu0 0.0
  %359 = vmatpush1.msra.mxu0 0.0
  %360 = vmatprep.subr.mxu0 0.0
  %361 = vmatpush1.msra.mxu0 0.0
  %362 = vmatprep.subr.mxu0 0.0
  %363 = vmatpush1.msra.mxu0 0.0
  %364 = vmatprep.subr.mxu0 0.0
  %365 = vmatpush1.msra.mxu0 0.0
  %366 = vmatprep.subr.mxu0 0.0
  %367 = vmatpush1.msra.mxu0 0.0
  %368 = vmatprep.subr.mxu0 0.0
  %369 = vmatpush1.msra.mxu0 0.0
  %370 = vmatprep.subr.mxu0 0.0
  %371 = vmatpush1.msra.mxu0 0.0
  %372 = vmatprep.subr.mxu0 0.0
  %373 = vmatpush1.msra.mxu0 0.0
  %374 = vmatprep.subr.mxu0 0.0
  %375 = vmatpush1.msra.mxu0 0.0
  %376 = vmatprep.subr.mxu0 0.0
  %377 = vmatpush1.msra.mxu0 0.0
  %378 = vmatprep.subr.mxu0 0.0
  %379 = vmatpush1.msra.mxu0 0.0
  %380 = vmatprep.mubr.f32.mxu0 0.0
  %381 = vmatmul.mubr.f32.gmra.mrb[0].mxu0 %v235
  %v382 = vpop.f32.mrb[0].mxu0
  %v383 = vadd.f32 %v228, %v382
  %v384 = vpop.f32.mrb[0].mxu0
  %v385 = vadd.f32 %v228, %v384
  %386 = vdwg.mxu0
  %v387 = vmax.f32 %v312, 0.0
  %v388 = vmax.f32 %v314, 0.0
  %v389 = vmax.f32 %v383, 0.0
  %v390 = vmax.f32 %v385, 0.0
  %v391 = vsel %vm66, %v217, 0.0
  %v392 = vrot.slane %v391, 4
  %v393 = vadd.f32 %v391, %v392
  %v394 = vrot.slane %v393, 2
  %v395 = vadd.f32 %v393, %v394
  %v396 = vrot.slane %v395, 1
  %v397 = vadd.f32 %v395, %v396
  %v398 = vsel %vm66, %v218, 0.0
  %v399 = vrot.slane %v398, 4
  %v400 = vadd.f32 %v398, %v399
  %v401 = vrot.slane %v400, 2
  %v402 = vadd.f32 %v400, %v401
  %v403 = vrot.slane %v402, 1
  %v404 = vadd.f32 %v402, %v403
  %v405 = vsel %vm66, %v219, 0.0
  %v406 = vrot.slane %v405, 4
  %v407 = vadd.f32 %v405, %v406
  %v408 = vrot.slane %v407, 2
  %v409 = vadd.f32 %v407, %v408
  %v410 = vrot.slane %v409, 1
  %v411 = vadd.f32 %v409, %v410
  %v412 = vsel %vm66, %v220, 0.0
  %v413 = vrot.slane %v412, 4
  %v414 = vadd.f32 %v412, %v413
  %v415 = vrot.slane %v414, 2
  %v416 = vadd.f32 %v414, %v415
  %v417 = vrot.slane %v416, 1
  %v418 = vadd.f32 %v416, %v417
  %v419 = vmul.f32 %v397, 0.25
  %v420 = vmul.f32 %v404, 0.25
  %v421 = vmul.f32 %v411, 0.25
  %v422 = vmul.f32 %v418, 0.25
  %v427 = vcombine.low %v419, %v420
  %v428 = vcombine.low %v421, %v422
  %v430 = vunpack.c.l.s4 1966171168
  %v431 = vunpack.c.0.s8 %v430
  %v432 = vlaneseq
  %v433 = vshrl.u32 %v432, 7
  %v434 = vsub.s32 %v431, %v433
  %v435 = vrot.slane %v427, %v434
  %v437 = vunpack.c.l.s4 1966171168
  %v438 = vunpack.c.0.s8 %v437
  %v439 = vlaneseq
  %v440 = vshrl.u32 %v439, 7
  %v441 = vsub.s32 %v438, %v440
  %v442 = vrot.slane %v428, %v441
  %v443 = vcombine.low %v435, %v442
  %v445 = vunpack.c.l.s4 1966171168
  %v446 = vunpack.c.0.s8 %v445
  %v447 = vlaneseq
  %v448 = vshrl.u32 %v447, 7
  %v449 = vsub.s32 %v446, %v448
  %v450 = vrot.slane %v443, %v449
  %v452 = vlaneseq
  %vm453 = vcmp.ge.s32.totalorder %v452, 0
  %vm454 = vcmp.lt.s32.totalorder %v452, 512
  %vm455 = vmand %vm453, %vm454
  %456 = vst.msk [vmem:[#allocation2] ss:$4 sm:$0xf] %vm455, %v450
  %v457 = vsel %vm66, %v217, -inf
  %v458 = vrot.slane %v457, 4
  %v459 = vmax.f32 %v457, %v458
  %v460 = vrot.slane %v459, 2
  %v461 = vmax.f32 %v459, %v460
  %v462 = vrot.slane %v461, 1
  %v463 = vmax.f32 %v461, %v462
  %v464 = vsel %vm66, %v218, -inf
  %v465 = vrot.slane %v464, 4
  %v466 = vmax.f32 %v464, %v465
  %v467 = vrot.slane %v466, 2
  %v468 = vmax.f32 %v466, %v467
  %v469 = vrot.slane %v468, 1
  %v470 = vmax.f32 %v468, %v469
  %v471 = vsel %vm66, %v219, -inf
  %v472 = vrot.slane %v471, 4
  %v473 = vmax.f32 %v471, %v472
  %v474 = vrot.slane %v473, 2
  %v475 = vmax.f32 %v473, %v474
  %v476 = vrot.slane %v475, 1
  %v477 = vmax.f32 %v475, %v476
  %v478 = vsel %vm66, %v220, -inf
  %v479 = vrot.slane %v478, 4
  %v480 = vmax.f32 %v478, %v479
  %v481 = vrot.slane %v480, 2
  %v482 = vmax.f32 %v480, %v481
  %v483 = vrot.slane %v482, 1
  %v484 = vmax.f32 %v482, %v483
  %v489 = vcombine.low %v463, %v470
  %v490 = vcombine.low %v477, %v484
  %v492 = vunpack.c.l.s4 1966171168
  %v493 = vunpack.c.0.s8 %v492
  %v494 = vlaneseq
  %v495 = vshrl.u32 %v494, 7
  %v496 = vsub.s32 %v493, %v495
  %v497 = vrot.slane %v489, %v496
  %v499 = vunpack.c.l.s4 1966171168
  %v500 = vunpack.c.0.s8 %v499
  %v501 = vlaneseq
  %v502 = vshrl.u32 %v501, 7
  %v503 = vsub.s32 %v500, %v502
  %v504 = vrot.slane %v490, %v503
  %v505 = vcombine.low %v497, %v504
  %v507 = vunpack.c.l.s4 1966171168
  %v508 = vunpack.c.0.s8 %v507
  %v509 = vlaneseq
  %v510 = vshrl.u32 %v509, 7
  %v511 = vsub.s32 %v508, %v510
  %v512 = vrot.slane %v505, %v511
  %s514 = scalar_lea.vmem [#allocation2], 1
  %515 = vst.msk [vmem:[%s514] ss:$4 sm:$0xf] %vm455, %v512
  %v516 = vsel %vm66, %v387, 0.0
  %v517 = vrot.slane %v516, 4
  %v518 = vadd.f32 %v516, %v517
  %v519 = vrot.slane %v518, 2
  %v520 = vadd.f32 %v518, %v519
  %v521 = vrot.slane %v520, 1
  %v522 = vadd.f32 %v520, %v521
  %v523 = vsel %vm66, %v388, 0.0
  %v524 = vrot.slane %v523, 4
  %v525 = vadd.f32 %v523, %v524
  %v526 = vrot.slane %v525, 2
  %v527 = vadd.f32 %v525, %v526
  %v528 = vrot.slane %v527, 1
  %v529 = vadd.f32 %v527, %v528
  %v530 = vsel %vm66, %v389, 0.0
  %v531 = vrot.slane %v530, 4
  %v532 = vadd.f32 %v530, %v531
  %v533 = vrot.slane %v532, 2
  %v534 = vadd.f32 %v532, %v533
  %v535 = vrot.slane %v534, 1
  %v536 = vadd.f32 %v534, %v535
  %v537 = vsel %vm66, %v390, 0.0
  %v538 = vrot.slane %v537, 4
  %v539 = vadd.f32 %v537, %v538
  %v540 = vrot.slane %v539, 2
  %v541 = vadd.f32 %v539, %v540
  %v542 = vrot.slane %v541, 1
  %v543 = vadd.f32 %v541, %v542
  %v544 = vmul.f32 %v522, 0.25
  %v545 = vmul.f32 %v529, 0.25
  %v546 = vmul.f32 %v536, 0.25
  %v547 = vmul.f32 %v543, 0.25
  %v552 = vcombine.low %v544, %v545
  %v553 = vcombine.low %v546, %v547
  %v555 = vunpack.c.l.s4 1966171168
  %v556 = vunpack.c.0.s8 %v555
  %v557 = vlaneseq
  %v558 = vshrl.u32 %v557, 7
  %v559 = vsub.s32 %v556, %v558
  %v560 = vrot.slane %v552, %v559
  %v562 = vunpack.c.l.s4 1966171168
  %v563 = vunpack.c.0.s8 %v562
  %v564 = vlaneseq
  %v565 = vshrl.u32 %v564, 7
  %v566 = vsub.s32 %v563, %v565
  %v567 = vrot.slane %v553, %v566
  %v568 = vcombine.low %v560, %v567
  %v570 = vunpack.c.l.s4 1966171168
  %v571 = vunpack.c.0.s8 %v570
  %v572 = vlaneseq
  %v573 = vshrl.u32 %v572, 7
  %v574 = vsub.s32 %v571, %v573
  %v575 = vrot.slane %v568, %v574
  %s577 = scalar_lea.vmem [#allocation2], 2
  %578 = vst.msk [vmem:[%s577] ss:$4 sm:$0xf] %vm455, %v575
  %v579 = vsel %vm66, %v387, -inf
  %v580 = vrot.slane %v579, 4
  %v581 = vmax.f32 %v579, %v580
  %v582 = vrot.slane %v581, 2
  %v583 = vmax.f32 %v581, %v582
  %v584 = vrot.slane %v583, 1
  %v585 = vmax.f32 %v583, %v584
  %v586 = vsel %vm66, %v388, -inf
  %v587 = vrot.slane %v586, 4
  %v588 = vmax.f32 %v586, %v587
  %v589 = vrot.slane %v588, 2
  %v590 = vmax.f32 %v588, %v589
  %v591 = vrot.slane %v590, 1
  %v592 = vmax.f32 %v590, %v591
  %v593 = vsel %vm66, %v389, -inf
  %v594 = vrot.slane %v593, 4
  %v595 = vmax.f32 %v593, %v594
  %v596 = vrot.slane %v595, 2
  %v597 = vmax.f32 %v595, %v596
  %v598 = vrot.slane %v597, 1
  %v599 = vmax.f32 %v597, %v598
  %v600 = vsel %vm66, %v390, -inf
  %v601 = vrot.slane %v600, 4
  %v602 = vmax.f32 %v600, %v601
  %v603 = vrot.slane %v602, 2
  %v604 = vmax.f32 %v602, %v603
  %v605 = vrot.slane %v604, 1
  %v606 = vmax.f32 %v604, %v605
  %v611 = vcombine.low %v585, %v592
  %v612 = vcombine.low %v599, %v606
  %v614 = vunpack.c.l.s4 1966171168
  %v615 = vunpack.c.0.s8 %v614
  %v616 = vlaneseq
  %v617 = vshrl.u32 %v616, 7
  %v618 = vsub.s32 %v615, %v617
  %v619 = vrot.slane %v611, %v618
  %v621 = vunpack.c.l.s4 1966171168
  %v622 = vunpack.c.0.s8 %v621
  %v623 = vlaneseq
  %v624 = vshrl.u32 %v623, 7
  %v625 = vsub.s32 %v622, %v624
  %v626 = vrot.slane %v612, %v625
  %v627 = vcombine.low %v619, %v626
  %v629 = vunpack.c.l.s4 1966171168
  %v630 = vunpack.c.0.s8 %v629
  %v631 = vlaneseq
  %v632 = vshrl.u32 %v631, 7
  %v633 = vsub.s32 %v630, %v632
  %v634 = vrot.slane %v627, %v633
  %s636 = scalar_lea.vmem [#allocation2], 3
  %637 = vst.msk [vmem:[%s636] ss:$4 sm:$0xf] %vm455, %v634
  %v638 = vld [vmem:[#allocation2] sm:$0xff]
  %v639 = vld [vmem:[#allocation2 + $0x8] sm:$0xff]
  %v642 = vcombine.high %v638, %v638
  %v643 = vcombine.high %v639, %v639
  %646 = vrot.lane.b32.xlu0 %v638, 51
  %v647 = vpop.permute.xlu0 %646
  %648 = vrot.lane.b32.xlu0 %v642, 51
  %v649 = vpop.permute.xlu0 %648
  %650 = vrot.lane.b32.xlu0 %v639, 51
  %v651 = vpop.permute.xlu0 %650
  %652 = vrot.lane.b32.xlu0 %v643, 51
  %v653 = vpop.permute.xlu0 %652
  %v654 = vlaneseq
  %v655 = vand.u32 %v654, 127
  %vm656 = vcmp.lt.s32.totalorder %v655, 51
  %v657 = vsel %vm656, %v651, %v653
  %v658 = vsel %vm656, %v649, %v651
  %v659 = vsel %vm656, %v647, %v649
  %v660 = vsel %vm656, %v653, %v647
  %v661 = vld [vmem:[%s9] sm:$0xff]
  %v662 = vld [vmem:[%s9 + $0x8] sm:$0xff]
  %v665 = vcombine.high %v661, %v661
  %v666 = vcombine.high %v662, %v662
  %v669 = vmul.f32 %v660, %v661
  %v670 = vmul.f32 %v659, %v665
  %v671 = vmul.f32 %v658, %v662
  %v672 = vmul.f32 %v657, %v666
  %v673 = vadd.f32 %v669, 0.0
  %v674 = vadd.f32 %v670, 0.0
  %v675 = vadd.f32 %v671, 0.0
  %v676 = vadd.f32 %v672, 0.0
  %677 = vrot.lane.b32.xlu0 %v638, 50
  %v678 = vpop.permute.xlu0 %677
  %679 = vrot.lane.b32.xlu0 %v642, 50
  %v680 = vpop.permute.xlu0 %679
  %681 = vrot.lane.b32.xlu0 %v639, 50
  %v682 = vpop.permute.xlu0 %681
  %683 = vrot.lane.b32.xlu0 %v643, 50
  %v684 = vpop.permute.xlu0 %683
  %vm685 = vcmp.lt.s32.totalorder %v655, 50
  %v686 = vsel %vm685, %v682, %v684
  %v687 = vsel %vm685, %v680, %v682
  %v688 = vsel %vm685, %v678, %v680
  %v689 = vsel %vm685, %v684, %v678
  %s690 = scalar_lea.vmem %s9, 16
  %v691 = vld [vmem:[%s690] sm:$0xff]
  %v692 = vld [vmem:[%s690 + $0x8] sm:$0xff]
  %v695 = vcombine.high %v691, %v691
  %v696 = vcombine.high %v692, %v692
  %v699 = vmul.f32 %v689, %v691
  %v700 = vmul.f32 %v688, %v695
  %v701 = vmul.f32 %v687, %v692
  %v702 = vmul.f32 %v686, %v696
  %v703 = vadd.f32 %v699, 0.0
  %v704 = vadd.f32 %v700, 0.0
  %v705 = vadd.f32 %v701, 0.0
  %v706 = vadd.f32 %v702, 0.0
  %707 = vrot.lane.b32.xlu0 %v638, 49
  %v708 = vpop.permute.xlu0 %707
  %709 = vrot.lane.b32.xlu0 %v642, 49
  %v710 = vpop.permute.xlu0 %709
  %711 = vrot.lane.b32.xlu0 %v639, 49
  %v712 = vpop.permute.xlu0 %711
  %713 = vrot.lane.b32.xlu0 %v643, 49
  %v714 = vpop.permute.xlu0 %713
  %vm715 = vcmp.lt.s32.totalorder %v655, 49
  %v716 = vsel %vm715, %v712, %v714
  %v717 = vsel %vm715, %v710, %v712
  %v718 = vsel %vm715, %v708, %v710
  %v719 = vsel %vm715, %v714, %v708
  %s720 = scalar_lea.vmem %s9, 32
  %v721 = vld [vmem:[%s720] sm:$0xff]
  %v722 = vld [vmem:[%s720 + $0x8] sm:$0xff]
  %v725 = vcombine.high %v721, %v721
  %v726 = vcombine.high %v722, %v722
  %v729 = vmul.f32 %v719, %v721
  %v730 = vmul.f32 %v718, %v725
  %v731 = vmul.f32 %v717, %v722
  %v732 = vmul.f32 %v716, %v726
  %v733 = vadd.f32 %v729, 0.0
  %v734 = vadd.f32 %v730, 0.0
  %v735 = vadd.f32 %v731, 0.0
  %v736 = vadd.f32 %v732, 0.0
  %737 = vrot.lane.b32.xlu0 %v638, 48
  %v738 = vpop.permute.xlu0 %737
  %739 = vrot.lane.b32.xlu0 %v642, 48
  %v740 = vpop.permute.xlu0 %739
  %741 = vrot.lane.b32.xlu0 %v639, 48
  %v742 = vpop.permute.xlu0 %741
  %743 = vrot.lane.b32.xlu0 %v643, 48
  %v744 = vpop.permute.xlu0 %743
  %vm745 = vcmp.lt.s32.totalorder %v655, 48
  %v746 = vsel %vm745, %v742, %v744
  %v747 = vsel %vm745, %v740, %v742
  %v748 = vsel %vm745, %v738, %v740
  %v749 = vsel %vm745, %v744, %v738
  %s750 = scalar_lea.vmem %s9, 48
  %v751 = vld [vmem:[%s750] sm:$0xff]
  %v752 = vld [vmem:[%s750 + $0x8] sm:$0xff]
  %v755 = vcombine.high %v751, %v751
  %v756 = vcombine.high %v752, %v752
  %v759 = vmul.f32 %v749, %v751
  %v760 = vmul.f32 %v748, %v755
  %v761 = vmul.f32 %v747, %v752
  %v762 = vmul.f32 %v746, %v756
  %v763 = vadd.f32 %v759, 0.0
  %v764 = vadd.f32 %v760, 0.0
  %v765 = vadd.f32 %v761, 0.0
  %v766 = vadd.f32 %v762, 0.0
  %767 = vrot.lane.b32.xlu0 %v638, 47
  %v768 = vpop.permute.xlu0 %767
  %769 = vrot.lane.b32.xlu0 %v642, 47
  %v770 = vpop.permute.xlu0 %769
  %771 = vrot.lane.b32.xlu0 %v639, 47
  %v772 = vpop.permute.xlu0 %771
  %773 = vrot.lane.b32.xlu0 %v643, 47
  %v774 = vpop.permute.xlu0 %773
  %vm775 = vcmp.lt.s32.totalorder %v655, 47
  %v776 = vsel %vm775, %v772, %v774
  %v777 = vsel %vm775, %v770, %v772
  %v778 = vsel %vm775, %v768, %v770
  %v779 = vsel %vm775, %v774, %v768
  %s780 = scalar_lea.vmem %s9, 64
  %v781 = vld [vmem:[%s780] sm:$0xff]
  %v782 = vld [vmem:[%s780 + $0x8] sm:$0xff]
  %v785 = vcombine.high %v781, %v781
  %v786 = vcombine.high %v782, %v782
  %v789 = vmul.f32 %v779, %v781
  %v790 = vmul.f32 %v778, %v785
  %v791 = vmul.f32 %v777, %v782
  %v792 = vmul.f32 %v776, %v786
  %v793 = vadd.f32 %v673, %v789
  %v794 = vadd.f32 %v674, %v790
  %v795 = vadd.f32 %v675, %v791
  %v796 = vadd.f32 %v676, %v792
  %797 = vrot.lane.b32.xlu0 %v638, 46
  %v798 = vpop.permute.xlu0 %797
  %799 = vrot.lane.b32.xlu0 %v642, 46
  %v800 = vpop.permute.xlu0 %799
  %801 = vrot.lane.b32.xlu0 %v639, 46
  %v802 = vpop.permute.xlu0 %801
  %803 = vrot.lane.b32.xlu0 %v643, 46
  %v804 = vpop.permute.xlu0 %803
  %vm805 = vcmp.lt.s32.totalorder %v655, 46
  %v806 = vsel %vm805, %v802, %v804
  %v807 = vsel %vm805, %v800, %v802
  %v808 = vsel %vm805, %v798, %v800
  %v809 = vsel %vm805, %v804, %v798
  %s810 = scalar_lea.vmem %s9, 80
  %v811 = vld [vmem:[%s810] sm:$0xff]
  %v812 = vld [vmem:[%s810 + $0x8] sm:$0xff]
  %v815 = vcombine.high %v811, %v811
  %v816 = vcombine.high %v812, %v812
  %v819 = vmul.f32 %v809, %v811
  %v820 = vmul.f32 %v808, %v815
  %v821 = vmul.f32 %v807, %v812
  %v822 = vmul.f32 %v806, %v816
  %v823 = vadd.f32 %v703, %v819
  %v824 = vadd.f32 %v704, %v820
  %v825 = vadd.f32 %v705, %v821
  %v826 = vadd.f32 %v706, %v822
  %827 = vrot.lane.b32.xlu0 %v638, 45
  %v828 = vpop.permute.xlu0 %827
  %829 = vrot.lane.b32.xlu0 %v642, 45
  %v830 = vpop.permute.xlu0 %829
  %831 = vrot.lane.b32.xlu0 %v639, 45
  %v832 = vpop.permute.xlu0 %831
  %833 = vrot.lane.b32.xlu0 %v643, 45
  %v834 = vpop.permute.xlu0 %833
  %vm835 = vcmp.lt.s32.totalorder %v655, 45
  %v836 = vsel %vm835, %v832, %v834
  %v837 = vsel %vm835, %v830, %v832
  %v838 = vsel %vm835, %v828, %v830
  %v839 = vsel %vm835, %v834, %v828
  %s840 = scalar_lea.vmem %s9, 96
  %v841 = vld [vmem:[%s840] sm:$0xff]
  %v842 = vld [vmem:[%s840 + $0x8] sm:$0xff]
  %v845 = vcombine.high %v841, %v841
  %v846 = vcombine.high %v842, %v842
  %v849 = vmul.f32 %v839, %v841
  %v850 = vmul.f32 %v838, %v845
  %v851 = vmul.f32 %v837, %v842
  %v852 = vmul.f32 %v836, %v846
  %v853 = vadd.f32 %v733, %v849
  %v854 = vadd.f32 %v734, %v850
  %v855 = vadd.f32 %v735, %v851
  %v856 = vadd.f32 %v736, %v852
  %857 = vrot.lane.b32.xlu0 %v638, 35
  %v858 = vpop.permute.xlu0 %857
  %859 = vrot.lane.b32.xlu0 %v642, 35
  %v860 = vpop.permute.xlu0 %859
  %861 = vrot.lane.b32.xlu0 %v639, 35
  %v862 = vpop.permute.xlu0 %861
  %863 = vrot.lane.b32.xlu0 %v643, 35
  %v864 = vpop.permute.xlu0 %863
  %vm865 = vcmp.lt.s32.totalorder %v655, 35
  %v866 = vsel %vm865, %v862, %v864
  %v867 = vsel %vm865, %v860, %v862
  %v868 = vsel %vm865, %v858, %v860
  %v869 = vsel %vm865, %v864, %v858
  %s870 = scalar_lea.vmem %s9, 112
  %v871 = vld [vmem:[%s870] sm:$0xff]
  %v872 = vld [vmem:[%s870 + $0x8] sm:$0xff]
  %v875 = vcombine.high %v871, %v871
  %v876 = vcombine.high %v872, %v872
  %v879 = vmul.f32 %v869, %v871
  %v880 = vmul.f32 %v868, %v875
  %v881 = vmul.f32 %v867, %v872
  %v882 = vmul.f32 %v866, %v876
  %v883 = vadd.f32 %v763, %v879
  %v884 = vadd.f32 %v764, %v880
  %v885 = vadd.f32 %v765, %v881
  %v886 = vadd.f32 %v766, %v882
  %887 = vrot.lane.b32.xlu0 %v638, 34
  %v888 = vpop.permute.xlu0 %887
  %889 = vrot.lane.b32.xlu0 %v642, 34
  %v890 = vpop.permute.xlu0 %889
  %891 = vrot.lane.b32.xlu0 %v639, 34
  %v892 = vpop.permute.xlu0 %891
  %893 = vrot.lane.b32.xlu0 %v643, 34
  %v894 = vpop.permute.xlu0 %893
  %vm895 = vcmp.lt.s32.totalorder %v655, 34
  %v896 = vsel %vm895, %v892, %v894
  %v897 = vsel %vm895, %v890, %v892
  %v898 = vsel %vm895, %v888, %v890
  %v899 = vsel %vm895, %v894, %v888
  %s900 = scalar_lea.vmem %s9, 128
  %v901 = vld [vmem:[%s900] sm:$0xff]
  %v902 = vld [vmem:[%s900 + $0x8] sm:$0xff]
  %v905 = vcombine.high %v901, %v901
  %v906 = vcombine.high %v902, %v902
  %v909 = vmul.f32 %v899, %v901
  %v910 = vmul.f32 %v898, %v905
  %v911 = vmul.f32 %v897, %v902
  %v912 = vmul.f32 %v896, %v906
  %v913 = vadd.f32 %v793, %v909
  %v914 = vadd.f32 %v794, %v910
  %v915 = vadd.f32 %v795, %v911
  %v916 = vadd.f32 %v796, %v912
  %917 = vrot.lane.b32.xlu0 %v638, 33
  %v918 = vpop.permute.xlu0 %917
  %919 = vrot.lane.b32.xlu0 %v642, 33
  %v920 = vpop.permute.xlu0 %919
  %921 = vrot.lane.b32.xlu0 %v639, 33
  %v922 = vpop.permute.xlu0 %921
  %923 = vrot.lane.b32.xlu0 %v643, 33
  %v924 = vpop.permute.xlu0 %923
  %vm925 = vcmp.lt.s32.totalorder %v655, 33
  %v926 = vsel %vm925, %v922, %v924
  %v927 = vsel %vm925, %v920, %v922
  %v928 = vsel %vm925, %v918, %v920
  %v929 = vsel %vm925, %v924, %v918
  %s930 = scalar_lea.vmem %s9, 144
  %v931 = vld [vmem:[%s930] sm:$0xff]
  %v932 = vld [vmem:[%s930 + $0x8] sm:$0xff]
  %v935 = vcombine.high %v931, %v931
  %v936 = vcombine.high %v932, %v932
  %v939 = vmul.f32 %v929, %v931
  %v940 = vmul.f32 %v928, %v935
  %v941 = vmul.f32 %v927, %v932
  %v942 = vmul.f32 %v926, %v936
  %v943 = vadd.f32 %v823, %v939
  %v944 = vadd.f32 %v824, %v940
  %v945 = vadd.f32 %v825, %v941
  %v946 = vadd.f32 %v826, %v942
  %947 = vrot.lane.b32.xlu0 %v638, 32
  %v948 = vpop.permute.xlu0 %947
  %949 = vrot.lane.b32.xlu0 %v642, 32
  %v950 = vpop.permute.xlu0 %949
  %951 = vrot.lane.b32.xlu0 %v639, 32
  %v952 = vpop.permute.xlu0 %951
  %953 = vrot.lane.b32.xlu0 %v643, 32
  %v954 = vpop.permute.xlu0 %953
  %vm955 = vcmp.lt.s32.totalorder %v655, 32
  %v956 = vsel %vm955, %v952, %v954
  %v957 = vsel %vm955, %v950, %v952
  %v958 = vsel %vm955, %v948, %v950
  %v959 = vsel %vm955, %v954, %v948
  %s960 = scalar_lea.vmem %s9, 160
  %v961 = vld [vmem:[%s960] sm:$0xff]
  %v962 = vld [vmem:[%s960 + $0x8] sm:$0xff]
  %v965 = vcombine.high %v961, %v961
  %v966 = vcombine.high %v962, %v962
  %v969 = vmul.f32 %v959, %v961
  %v970 = vmul.f32 %v958, %v965
  %v971 = vmul.f32 %v957, %v962
  %v972 = vmul.f32 %v956, %v966
  %v973 = vadd.f32 %v853, %v969
  %v974 = vadd.f32 %v854, %v970
  %v975 = vadd.f32 %v855, %v971
  %v976 = vadd.f32 %v856, %v972
  %977 = vrot.lane.b32.xlu0 %v638, 31
  %v978 = vpop.permute.xlu0 %977
  %979 = vrot.lane.b32.xlu0 %v642, 31
  %v980 = vpop.permute.xlu0 %979
  %981 = vrot.lane.b32.xlu0 %v639, 31
  %v982 = vpop.permute.xlu0 %981
  %983 = vrot.lane.b32.xlu0 %v643, 31
  %v984 = vpop.permute.xlu0 %983
  %vm985 = vcmp.lt.s32.totalorder %v655, 31
  %v986 = vsel %vm985, %v982, %v984
  %v987 = vsel %vm985, %v980, %v982
  %v988 = vsel %vm985, %v978, %v980
  %v989 = vsel %vm985, %v984, %v978
  %s990 = scalar_lea.vmem %s9, 176
  %v991 = vld [vmem:[%s990] sm:$0xff]
  %v992 = vld [vmem:[%s990 + $0x8] sm:$0xff]
  %v995 = vcombine.high %v991, %v991
  %v996 = vcombine.high %v992, %v992
  %v999 = vmul.f32 %v989, %v991
  %v1000 = vmul.f32 %v988, %v995
  %v1001 = vmul.f32 %v987, %v992
  %v1002 = vmul.f32 %v986, %v996
  %v1003 = vadd.f32 %v883, %v999
  %v1004 = vadd.f32 %v884, %v1000
  %v1005 = vadd.f32 %v885, %v1001
  %v1006 = vadd.f32 %v886, %v1002
  %1007 = vrot.lane.b32.xlu0 %v638, 30
  %v1008 = vpop.permute.xlu0 %1007
  %1009 = vrot.lane.b32.xlu0 %v642, 30
  %v1010 = vpop.permute.xlu0 %1009
  %1011 = vrot.lane.b32.xlu0 %v639, 30
  %v1012 = vpop.permute.xlu0 %1011
  %1013 = vrot.lane.b32.xlu0 %v643, 30
  %v1014 = vpop.permute.xlu0 %1013
  %vm1015 = vcmp.lt.s32.totalorder %v655, 30
  %v1016 = vsel %vm1015, %v1012, %v1014
  %v1017 = vsel %vm1015, %v1010, %v1012
  %v1018 = vsel %vm1015, %v1008, %v1010
  %v1019 = vsel %vm1015, %v1014, %v1008
  %s1020 = scalar_lea.vmem %s9, 192
  %v1021 = vld [vmem:[%s1020] sm:$0xff]
  %v1022 = vld [vmem:[%s1020 + $0x8] sm:$0xff]
  %v1025 = vcombine.high %v1021, %v1021
  %v1026 = vcombine.high %v1022, %v1022
  %v1029 = vmul.f32 %v1019, %v1021
  %v1030 = vmul.f32 %v1018, %v1025
  %v1031 = vmul.f32 %v1017, %v1022
  %v1032 = vmul.f32 %v1016, %v1026
  %v1033 = vadd.f32 %v913, %v1029
  %v1034 = vadd.f32 %v914, %v1030
  %v1035 = vadd.f32 %v915, %v1031
  %v1036 = vadd.f32 %v916, %v1032
  %1037 = vrot.lane.b32.xlu0 %v638, 29
  %v1038 = vpop.permute.xlu0 %1037
  %1039 = vrot.lane.b32.xlu0 %v642, 29
  %v1040 = vpop.permute.xlu0 %1039
  %1041 = vrot.lane.b32.xlu0 %v639, 29
  %v1042 = vpop.permute.xlu0 %1041
  %1043 = vrot.lane.b32.xlu0 %v643, 29
  %v1044 = vpop.permute.xlu0 %1043
  %vm1045 = vcmp.lt.s32.totalorder %v655, 29
  %v1046 = vsel %vm1045, %v1042, %v1044
  %v1047 = vsel %vm1045, %v1040, %v1042
  %v1048 = vsel %vm1045, %v1038, %v1040
  %v1049 = vsel %vm1045, %v1044, %v1038
  %s1050 = scalar_lea.vmem %s9, 208
  %v1051 = vld [vmem:[%s1050] sm:$0xff]
  %v1052 = vld [vmem:[%s1050 + $0x8] sm:$0xff]
  %v1055 = vcombine.high %v1051, %v1051
  %v1056 = vcombine.high %v1052, %v1052
  %v1059 = vmul.f32 %v1049, %v1051
  %v1060 = vmul.f32 %v1048, %v1055
  %v1061 = vmul.f32 %v1047, %v1052
  %v1062 = vmul.f32 %v1046, %v1056
  %v1063 = vadd.f32 %v943, %v1059
  %v1064 = vadd.f32 %v944, %v1060
  %v1065 = vadd.f32 %v945, %v1061
  %v1066 = vadd.f32 %v946, %v1062
  %1067 = vrot.lane.b32.xlu0 %v638, 19
  %v1068 = vpop.permute.xlu0 %1067
  %1069 = vrot.lane.b32.xlu0 %v642, 19
  %v1070 = vpop.permute.xlu0 %1069
  %1071 = vrot.lane.b32.xlu0 %v639, 19
  %v1072 = vpop.permute.xlu0 %1071
  %1073 = vrot.lane.b32.xlu0 %v643, 19
  %v1074 = vpop.permute.xlu0 %1073
  %vm1075 = vcmp.lt.s32.totalorder %v655, 19
  %v1076 = vsel %vm1075, %v1072, %v1074
  %v1077 = vsel %vm1075, %v1070, %v1072
  %v1078 = vsel %vm1075, %v1068, %v1070
  %v1079 = vsel %vm1075, %v1074, %v1068
  %s1080 = scalar_lea.vmem %s9, 224
  %v1081 = vld [vmem:[%s1080] sm:$0xff]
  %v1082 = vld [vmem:[%s1080 + $0x8] sm:$0xff]
  %v1085 = vcombine.high %v1081, %v1081
  %v1086 = vcombine.high %v1082, %v1082
  %v1089 = vmul.f32 %v1079, %v1081
  %v1090 = vmul.f32 %v1078, %v1085
  %v1091 = vmul.f32 %v1077, %v1082
  %v1092 = vmul.f32 %v1076, %v1086
  %v1093 = vadd.f32 %v973, %v1089
  %v1094 = vadd.f32 %v974, %v1090
  %v1095 = vadd.f32 %v975, %v1091
  %v1096 = vadd.f32 %v976, %v1092
  %1097 = vrot.lane.b32.xlu0 %v638, 18
  %v1098 = vpop.permute.xlu0 %1097
  %1099 = vrot.lane.b32.xlu0 %v642, 18
  %v1100 = vpop.permute.xlu0 %1099
  %1101 = vrot.lane.b32.xlu0 %v639, 18
  %v1102 = vpop.permute.xlu0 %1101
  %1103 = vrot.lane.b32.xlu0 %v643, 18
  %v1104 = vpop.permute.xlu0 %1103
  %vm1105 = vcmp.lt.s32.totalorder %v655, 18
  %v1106 = vsel %vm1105, %v1102, %v1104
  %v1107 = vsel %vm1105, %v1100, %v1102
  %v1108 = vsel %vm1105, %v1098, %v1100
  %v1109 = vsel %vm1105, %v1104, %v1098
  %s1110 = scalar_lea.vmem %s9, 240
  %v1111 = vld [vmem:[%s1110] sm:$0xff]
  %v1112 = vld [vmem:[%s1110 + $0x8] sm:$0xff]
  %v1115 = vcombine.high %v1111, %v1111
  %v1116 = vcombine.high %v1112, %v1112
  %v1119 = vmul.f32 %v1109, %v1111
  %v1120 = vmul.f32 %v1108, %v1115
  %v1121 = vmul.f32 %v1107, %v1112
  %v1122 = vmul.f32 %v1106, %v1116
  %v1123 = vadd.f32 %v1003, %v1119
  %v1124 = vadd.f32 %v1004, %v1120
  %v1125 = vadd.f32 %v1005, %v1121
  %v1126 = vadd.f32 %v1006, %v1122
  %1127 = vrot.lane.b32.xlu0 %v638, 17
  %v1128 = vpop.permute.xlu0 %1127
  %1129 = vrot.lane.b32.xlu0 %v642, 17
  %v1130 = vpop.permute.xlu0 %1129
  %1131 = vrot.lane.b32.xlu0 %v639, 17
  %v1132 = vpop.permute.xlu0 %1131
  %1133 = vrot.lane.b32.xlu0 %v643, 17
  %v1134 = vpop.permute.xlu0 %1133
  %vm1135 = vcmp.lt.s32.totalorder %v655, 17
  %v1136 = vsel %vm1135, %v1132, %v1134
  %v1137 = vsel %vm1135, %v1130, %v1132
  %v1138 = vsel %vm1135, %v1128, %v1130
  %v1139 = vsel %vm1135, %v1134, %v1128
  %s1140 = scalar_lea.vmem %s9, 256
  %v1141 = vld [vmem:[%s1140] sm:$0xff]
  %v1142 = vld [vmem:[%s1140 + $0x8] sm:$0xff]
  %v1145 = vcombine.high %v1141, %v1141
  %v1146 = vcombine.high %v1142, %v1142
  %v1149 = vmul.f32 %v1139, %v1141
  %v1150 = vmul.f32 %v1138, %v1145
  %v1151 = vmul.f32 %v1137, %v1142
  %v1152 = vmul.f32 %v1136, %v1146
  %v1153 = vadd.f32 %v1033, %v1149
  %v1154 = vadd.f32 %v1034, %v1150
  %v1155 = vadd.f32 %v1035, %v1151
  %v1156 = vadd.f32 %v1036, %v1152
  %1157 = vrot.lane.b32.xlu0 %v638, 16
  %v1158 = vpop.permute.xlu0 %1157
  %1159 = vrot.lane.b32.xlu0 %v642, 16
  %v1160 = vpop.permute.xlu0 %1159
  %1161 = vrot.lane.b32.xlu0 %v639, 16
  %v1162 = vpop.permute.xlu0 %1161
  %1163 = vrot.lane.b32.xlu0 %v643, 16
  %v1164 = vpop.permute.xlu0 %1163
  %vm1165 = vcmp.lt.s32.totalorder %v655, 16
  %v1166 = vsel %vm1165, %v1162, %v1164
  %v1167 = vsel %vm1165, %v1160, %v1162
  %v1168 = vsel %vm1165, %v1158, %v1160
  %v1169 = vsel %vm1165, %v1164, %v1158
  %s1170 = scalar_lea.vmem %s9, 272
  %v1171 = vld [vmem:[%s1170] sm:$0xff]
  %v1172 = vld [vmem:[%s1170 + $0x8] sm:$0xff]
  %v1175 = vcombine.high %v1171, %v1171
  %v1176 = vcombine.high %v1172, %v1172
  %v1179 = vmul.f32 %v1169, %v1171
  %v1180 = vmul.f32 %v1168, %v1175
  %v1181 = vmul.f32 %v1167, %v1172
  %v1182 = vmul.f32 %v1166, %v1176
  %v1183 = vadd.f32 %v1063, %v1179
  %v1184 = vadd.f32 %v1064, %v1180
  %v1185 = vadd.f32 %v1065, %v1181
  %v1186 = vadd.f32 %v1066, %v1182
  %1187 = vrot.lane.b32.xlu0 %v638, 15
  %v1188 = vpop.permute.xlu0 %1187
  %1189 = vrot.lane.b32.xlu0 %v642, 15
  %v1190 = vpop.permute.xlu0 %1189
  %1191 = vrot.lane.b32.xlu0 %v639, 15
  %v1192 = vpop.permute.xlu0 %1191
  %1193 = vrot.lane.b32.xlu0 %v643, 15
  %v1194 = vpop.permute.xlu0 %1193
  %vm1195 = vcmp.lt.s32.totalorder %v655, 15
  %v1196 = vsel %vm1195, %v1192, %v1194
  %v1197 = vsel %vm1195, %v1190, %v1192
  %v1198 = vsel %vm1195, %v1188, %v1190
  %v1199 = vsel %vm1195, %v1194, %v1188
  %s1200 = scalar_lea.vmem %s9, 288
  %v1201 = vld [vmem:[%s1200] sm:$0xff]
  %v1202 = vld [vmem:[%s1200 + $0x8] sm:$0xff]
  %v1205 = vcombine.high %v1201, %v1201
  %v1206 = vcombine.high %v1202, %v1202
  %v1209 = vmul.f32 %v1199, %v1201
  %v1210 = vmul.f32 %v1198, %v1205
  %v1211 = vmul.f32 %v1197, %v1202
  %v1212 = vmul.f32 %v1196, %v1206
  %v1213 = vadd.f32 %v1093, %v1209
  %v1214 = vadd.f32 %v1094, %v1210
  %v1215 = vadd.f32 %v1095, %v1211
  %v1216 = vadd.f32 %v1096, %v1212
  %1217 = vrot.lane.b32.xlu0 %v638, 14
  %v1218 = vpop.permute.xlu0 %1217
  %1219 = vrot.lane.b32.xlu0 %v642, 14
  %v1220 = vpop.permute.xlu0 %1219
  %1221 = vrot.lane.b32.xlu0 %v639, 14
  %v1222 = vpop.permute.xlu0 %1221
  %1223 = vrot.lane.b32.xlu0 %v643, 14
  %v1224 = vpop.permute.xlu0 %1223
  %vm1225 = vcmp.lt.s32.totalorder %v655, 14
  %v1226 = vsel %vm1225, %v1222, %v1224
  %v1227 = vsel %vm1225, %v1220, %v1222
  %v1228 = vsel %vm1225, %v1218, %v1220
  %v1229 = vsel %vm1225, %v1224, %v1218
  %s1230 = scalar_lea.vmem %s9, 304
  %v1231 = vld [vmem:[%s1230] sm:$0xff]
  %v1232 = vld [vmem:[%s1230 + $0x8] sm:$0xff]
  %v1235 = vcombine.high %v1231, %v1231
  %v1236 = vcombine.high %v1232, %v1232
  %v1239 = vmul.f32 %v1229, %v1231
  %v1240 = vmul.f32 %v1228, %v1235
  %v1241 = vmul.f32 %v1227, %v1232
  %v1242 = vmul.f32 %v1226, %v1236
  %v1243 = vadd.f32 %v1123, %v1239
  %v1244 = vadd.f32 %v1124, %v1240
  %v1245 = vadd.f32 %v1125, %v1241
  %v1246 = vadd.f32 %v1126, %v1242
  %1247 = vrot.lane.b32.xlu0 %v638, 13
  %v1248 = vpop.permute.xlu0 %1247
  %1249 = vrot.lane.b32.xlu0 %v642, 13
  %v1250 = vpop.permute.xlu0 %1249
  %1251 = vrot.lane.b32.xlu0 %v639, 13
  %v1252 = vpop.permute.xlu0 %1251
  %1253 = vrot.lane.b32.xlu0 %v643, 13
  %v1254 = vpop.permute.xlu0 %1253
  %vm1255 = vcmp.lt.s32.totalorder %v655, 13
  %v1256 = vsel %vm1255, %v1252, %v1254
  %v1257 = vsel %vm1255, %v1250, %v1252
  %v1258 = vsel %vm1255, %v1248, %v1250
  %v1259 = vsel %vm1255, %v1254, %v1248
  %s1260 = scalar_lea.vmem %s9, 320
  %v1261 = vld [vmem:[%s1260] sm:$0xff]
  %v1262 = vld [vmem:[%s1260 + $0x8] sm:$0xff]
  %v1265 = vcombine.high %v1261, %v1261
  %v1266 = vcombine.high %v1262, %v1262
  %v1269 = vmul.f32 %v1259, %v1261
  %v1270 = vmul.f32 %v1258, %v1265
  %v1271 = vmul.f32 %v1257, %v1262
  %v1272 = vmul.f32 %v1256, %v1266
  %v1273 = vadd.f32 %v1153, %v1269
  %v1274 = vadd.f32 %v1154, %v1270
  %v1275 = vadd.f32 %v1155, %v1271
  %v1276 = vadd.f32 %v1156, %v1272
  %1277 = vrot.lane.b32.xlu0 %v638, 3
  %v1278 = vpop.permute.xlu0 %1277
  %1279 = vrot.lane.b32.xlu0 %v642, 3
  %v1280 = vpop.permute.xlu0 %1279
  %1281 = vrot.lane.b32.xlu0 %v639, 3
  %v1282 = vpop.permute.xlu0 %1281
  %1283 = vrot.lane.b32.xlu0 %v643, 3
  %v1284 = vpop.permute.xlu0 %1283
  %vm1285 = vcmp.lt.s32.totalorder %v655, 3
  %v1286 = vsel %vm1285, %v1282, %v1284
  %v1287 = vsel %vm1285, %v1280, %v1282
  %v1288 = vsel %vm1285, %v1278, %v1280
  %v1289 = vsel %vm1285, %v1284, %v1278
  %s1290 = scalar_lea.vmem %s9, 336
  %v1291 = vld [vmem:[%s1290] sm:$0xff]
  %v1292 = vld [vmem:[%s1290 + $0x8] sm:$0xff]
  %v1295 = vcombine.high %v1291, %v1291
  %v1296 = vcombine.high %v1292, %v1292
  %v1299 = vmul.f32 %v1289, %v1291
  %v1300 = vmul.f32 %v1288, %v1295
  %v1301 = vmul.f32 %v1287, %v1292
  %v1302 = vmul.f32 %v1286, %v1296
  %v1303 = vadd.f32 %v1183, %v1299
  %v1304 = vadd.f32 %v1184, %v1300
  %v1305 = vadd.f32 %v1185, %v1301
  %v1306 = vadd.f32 %v1186, %v1302
  %1307 = vrot.lane.b32.xlu0 %v638, 2
  %v1308 = vpop.permute.xlu0 %1307
  %1309 = vrot.lane.b32.xlu0 %v642, 2
  %v1310 = vpop.permute.xlu0 %1309
  %1311 = vrot.lane.b32.xlu0 %v639, 2
  %v1312 = vpop.permute.xlu0 %1311
  %1313 = vrot.lane.b32.xlu0 %v643, 2
  %v1314 = vpop.permute.xlu0 %1313
  %vm1315 = vcmp.lt.s32.totalorder %v655, 2
  %v1316 = vsel %vm1315, %v1312, %v1314
  %v1317 = vsel %vm1315, %v1310, %v1312
  %v1318 = vsel %vm1315, %v1308, %v1310
  %v1319 = vsel %vm1315, %v1314, %v1308
  %s1320 = scalar_lea.vmem %s9, 352
  %v1321 = vld [vmem:[%s1320] sm:$0xff]
  %v1322 = vld [vmem:[%s1320 + $0x8] sm:$0xff]
  %v1325 = vcombine.high %v1321, %v1321
  %v1326 = vcombine.high %v1322, %v1322
  %v1329 = vmul.f32 %v1319, %v1321
  %v1330 = vmul.f32 %v1318, %v1325
  %v1331 = vmul.f32 %v1317, %v1322
  %v1332 = vmul.f32 %v1316, %v1326
  %v1333 = vadd.f32 %v1213, %v1329
  %v1334 = vadd.f32 %v1214, %v1330
  %v1335 = vadd.f32 %v1215, %v1331
  %v1336 = vadd.f32 %v1216, %v1332
  %1337 = vrot.lane.b32.xlu0 %v638, 1
  %v1338 = vpop.permute.xlu0 %1337
  %1339 = vrot.lane.b32.xlu0 %v642, 1
  %v1340 = vpop.permute.xlu0 %1339
  %1341 = vrot.lane.b32.xlu0 %v639, 1
  %v1342 = vpop.permute.xlu0 %1341
  %1343 = vrot.lane.b32.xlu0 %v643, 1
  %v1344 = vpop.permute.xlu0 %1343
  %vm1345 = vcmp.lt.s32.totalorder %v655, 1
  %v1346 = vsel %vm1345, %v1342, %v1344
  %v1347 = vsel %vm1345, %v1340, %v1342
  %v1348 = vsel %vm1345, %v1338, %v1340
  %v1349 = vsel %vm1345, %v1344, %v1338
  %s1350 = scalar_lea.vmem %s9, 368
  %v1351 = vld [vmem:[%s1350] sm:$0xff]
  %v1352 = vld [vmem:[%s1350 + $0x8] sm:$0xff]
  %v1355 = vcombine.high %v1351, %v1351
  %v1356 = vcombine.high %v1352, %v1352
  %v1359 = vmul.f32 %v1349, %v1351
  %v1360 = vmul.f32 %v1348, %v1355
  %v1361 = vmul.f32 %v1347, %v1352
  %v1362 = vmul.f32 %v1346, %v1356
  %v1363 = vadd.f32 %v1243, %v1359
  %v1364 = vadd.f32 %v1244, %v1360
  %v1365 = vadd.f32 %v1245, %v1361
  %v1366 = vadd.f32 %v1246, %v1362
  %s1367 = scalar_lea.vmem %s9, 384
  %v1368 = vld [vmem:[%s1367] sm:$0xff]
  %v1369 = vld [vmem:[%s1367 + $0x8] sm:$0xff]
  %v1370 = vmul.f32 %v638, %v1368
  %v1371 = vmul.f32 %v639, %v1369
  %v1374 = vcombine.high %v1370, %v1370
  %v1375 = vcombine.high %v1371, %v1371
  %v1378 = vadd.f32 %v1273, %v1370
  %v1379 = vadd.f32 %v1274, %v1374
  %v1380 = vadd.f32 %v1275, %v1371
  %v1381 = vadd.f32 %v1276, %v1375
  %1382 = vrot.lane.b32.xlu0 %v638, 127
  %v1383 = vpop.permute.xlu0 %1382
  %1384 = vrot.lane.b32.xlu0 %v642, 127
  %v1385 = vpop.permute.xlu0 %1384
  %1386 = vrot.lane.b32.xlu0 %v639, 127
  %v1387 = vpop.permute.xlu0 %1386
  %1388 = vrot.lane.b32.xlu0 %v643, 127
  %v1389 = vpop.permute.xlu0 %1388
  %vm1390 = vcmp.lt.s32.totalorder %v655, 127
  %v1391 = vsel %vm1390, %v1387, %v1389
  %v1392 = vsel %vm1390, %v1385, %v1387
  %v1393 = vsel %vm1390, %v1383, %v1385
  %v1394 = vsel %vm1390, %v1389, %v1383
  %s1395 = scalar_lea.vmem %s9, 400
  %v1396 = vld [vmem:[%s1395] sm:$0xff]
  %v1397 = vld [vmem:[%s1395 + $0x8] sm:$0xff]
  %v1400 = vcombine.high %v1396, %v1396
  %v1401 = vcombine.high %v1397, %v1397
  %v1404 = vmul.f32 %v1393, %v1396
  %v1405 = vmul.f32 %v1392, %v1400
  %v1406 = vmul.f32 %v1391, %v1397
  %v1407 = vmul.f32 %v1394, %v1401
  %v1408 = vadd.f32 %v1303, %v1404
  %v1409 = vadd.f32 %v1304, %v1405
  %v1410 = vadd.f32 %v1305, %v1406
  %v1411 = vadd.f32 %v1306, %v1407
  %1412 = vrot.lane.b32.xlu0 %v638, 126
  %v1413 = vpop.permute.xlu0 %1412
  %1414 = vrot.lane.b32.xlu0 %v642, 126
  %v1415 = vpop.permute.xlu0 %1414
  %1416 = vrot.lane.b32.xlu0 %v639, 126
  %v1417 = vpop.permute.xlu0 %1416
  %1418 = vrot.lane.b32.xlu0 %v643, 126
  %v1419 = vpop.permute.xlu0 %1418
  %vm1420 = vcmp.lt.s32.totalorder %v655, 126
  %v1421 = vsel %vm1420, %v1417, %v1419
  %v1422 = vsel %vm1420, %v1415, %v1417
  %v1423 = vsel %vm1420, %v1413, %v1415
  %v1424 = vsel %vm1420, %v1419, %v1413
  %s1425 = scalar_lea.vmem %s9, 416
  %v1426 = vld [vmem:[%s1425] sm:$0xff]
  %v1427 = vld [vmem:[%s1425 + $0x8] sm:$0xff]
  %v1430 = vcombine.high %v1426, %v1426
  %v1431 = vcombine.high %v1427, %v1427
  %v1434 = vmul.f32 %v1423, %v1426
  %v1435 = vmul.f32 %v1422, %v1430
  %v1436 = vmul.f32 %v1421, %v1427
  %v1437 = vmul.f32 %v1424, %v1431
  %v1438 = vadd.f32 %v1333, %v1434
  %v1439 = vadd.f32 %v1334, %v1435
  %v1440 = vadd.f32 %v1335, %v1436
  %v1441 = vadd.f32 %v1336, %v1437
  %1442 = vrot.lane.b32.xlu0 %v638, 125
  %v1443 = vpop.permute.xlu0 %1442
  %1444 = vrot.lane.b32.xlu0 %v642, 125
  %v1445 = vpop.permute.xlu0 %1444
  %1446 = vrot.lane.b32.xlu0 %v639, 125
  %v1447 = vpop.permute.xlu0 %1446
  %1448 = vrot.lane.b32.xlu0 %v643, 125
  %v1449 = vpop.permute.xlu0 %1448
  %vm1450 = vcmp.lt.s32.totalorder %v655, 125
  %v1451 = vsel %vm1450, %v1447, %v1449
  %v1452 = vsel %vm1450, %v1445, %v1447
  %v1453 = vsel %vm1450, %v1443, %v1445
  %v1454 = vsel %vm1450, %v1449, %v1443
  %s1455 = scalar_lea.vmem %s9, 432
  %v1456 = vld [vmem:[%s1455] sm:$0xff]
  %v1457 = vld [vmem:[%s1455 + $0x8] sm:$0xff]
  %v1460 = vcombine.high %v1456, %v1456
  %v1461 = vcombine.high %v1457, %v1457
  %v1464 = vmul.f32 %v1453, %v1456
  %v1465 = vmul.f32 %v1452, %v1460
  %v1466 = vmul.f32 %v1451, %v1457
  %v1467 = vmul.f32 %v1454, %v1461
  %v1468 = vadd.f32 %v1363, %v1464
  %v1469 = vadd.f32 %v1364, %v1465
  %v1470 = vadd.f32 %v1365, %v1466
  %v1471 = vadd.f32 %v1366, %v1467
  %1472 = vrot.lane.b32.xlu0 %v638, 115
  %v1473 = vpop.permute.xlu0 %1472
  %1474 = vrot.lane.b32.xlu0 %v642, 115
  %v1475 = vpop.permute.xlu0 %1474
  %1476 = vrot.lane.b32.xlu0 %v639, 115
  %v1477 = vpop.permute.xlu0 %1476
  %1478 = vrot.lane.b32.xlu0 %v643, 115
  %v1479 = vpop.permute.xlu0 %1478
  %vm1480 = vcmp.lt.s32.totalorder %v655, 115
  %v1481 = vsel %vm1480, %v1477, %v1479
  %v1482 = vsel %vm1480, %v1475, %v1477
  %v1483 = vsel %vm1480, %v1473, %v1475
  %v1484 = vsel %vm1480, %v1479, %v1473
  %s1485 = scalar_lea.vmem %s9, 448
  %v1486 = vld [vmem:[%s1485] sm:$0xff]
  %v1487 = vld [vmem:[%s1485 + $0x8] sm:$0xff]
  %v1490 = vcombine.high %v1486, %v1486
  %v1491 = vcombine.high %v1487, %v1487
  %v1494 = vmul.f32 %v1483, %v1486
  %v1495 = vmul.f32 %v1482, %v1490
  %v1496 = vmul.f32 %v1481, %v1487
  %v1497 = vmul.f32 %v1484, %v1491
  %v1498 = vadd.f32 %v1378, %v1494
  %v1499 = vadd.f32 %v1379, %v1495
  %v1500 = vadd.f32 %v1380, %v1496
  %v1501 = vadd.f32 %v1381, %v1497
  %1502 = vrot.lane.b32.xlu0 %v638, 114
  %v1503 = vpop.permute.xlu0 %1502
  %1504 = vrot.lane.b32.xlu0 %v642, 114
  %v1505 = vpop.permute.xlu0 %1504
  %1506 = vrot.lane.b32.xlu0 %v639, 114
  %v1507 = vpop.permute.xlu0 %1506
  %1508 = vrot.lane.b32.xlu0 %v643, 114
  %v1509 = vpop.permute.xlu0 %1508
  %vm1510 = vcmp.lt.s32.totalorder %v655, 114
  %v1511 = vsel %vm1510, %v1507, %v1509
  %v1512 = vsel %vm1510, %v1505, %v1507
  %v1513 = vsel %vm1510, %v1503, %v1505
  %v1514 = vsel %vm1510, %v1509, %v1503
  %s1515 = scalar_lea.vmem %s9, 464
  %v1516 = vld [vmem:[%s1515] sm:$0xff]
  %v1517 = vld [vmem:[%s1515 + $0x8] sm:$0xff]
  %v1520 = vcombine.high %v1516, %v1516
  %v1521 = vcombine.high %v1517, %v1517
  %v1524 = vmul.f32 %v1513, %v1516
  %v1525 = vmul.f32 %v1512, %v1520
  %v1526 = vmul.f32 %v1511, %v1517
  %v1527 = vmul.f32 %v1514, %v1521
  %v1528 = vadd.f32 %v1408, %v1524
  %v1529 = vadd.f32 %v1409, %v1525
  %v1530 = vadd.f32 %v1410, %v1526
  %v1531 = vadd.f32 %v1411, %v1527
  %1532 = vrot.lane.b32.xlu0 %v638, 113
  %v1533 = vpop.permute.xlu0 %1532
  %1534 = vrot.lane.b32.xlu0 %v642, 113
  %v1535 = vpop.permute.xlu0 %1534
  %1536 = vrot.lane.b32.xlu0 %v639, 113
  %v1537 = vpop.permute.xlu0 %1536
  %1538 = vrot.lane.b32.xlu0 %v643, 113
  %v1539 = vpop.permute.xlu0 %1538
  %vm1540 = vcmp.lt.s32.totalorder %v655, 113
  %v1541 = vsel %vm1540, %v1537, %v1539
  %v1542 = vsel %vm1540, %v1535, %v1537
  %v1543 = vsel %vm1540, %v1533, %v1535
  %v1544 = vsel %vm1540, %v1539, %v1533
  %s1545 = scalar_lea.vmem %s9, 480
  %v1546 = vld [vmem:[%s1545] sm:$0xff]
  %v1547 = vld [vmem:[%s1545 + $0x8] sm:$0xff]
  %v1550 = vcombine.high %v1546, %v1546
  %v1551 = vcombine.high %v1547, %v1547
  %v1554 = vmul.f32 %v1543, %v1546
  %v1555 = vmul.f32 %v1542, %v1550
  %v1556 = vmul.f32 %v1541, %v1547
  %v1557 = vmul.f32 %v1544, %v1551
  %v1558 = vadd.f32 %v1438, %v1554
  %v1559 = vadd.f32 %v1439, %v1555
  %v1560 = vadd.f32 %v1440, %v1556
  %v1561 = vadd.f32 %v1441, %v1557
  %1562 = vrot.lane.b32.xlu0 %v638, 112
  %v1563 = vpop.permute.xlu0 %1562
  %1564 = vrot.lane.b32.xlu0 %v642, 112
  %v1565 = vpop.permute.xlu0 %1564
  %1566 = vrot.lane.b32.xlu0 %v639, 112
  %v1567 = vpop.permute.xlu0 %1566
  %1568 = vrot.lane.b32.xlu0 %v643, 112
  %v1569 = vpop.permute.xlu0 %1568
  %vm1570 = vcmp.lt.s32.totalorder %v655, 112
  %v1571 = vsel %vm1570, %v1567, %v1569
  %v1572 = vsel %vm1570, %v1565, %v1567
  %v1573 = vsel %vm1570, %v1563, %v1565
  %v1574 = vsel %vm1570, %v1569, %v1563
  %s1575 = scalar_lea.vmem %s9, 496
  %v1576 = vld [vmem:[%s1575] sm:$0xff]
  %v1577 = vld [vmem:[%s1575 + $0x8] sm:$0xff]
  %v1580 = vcombine.high %v1576, %v1576
  %v1581 = vcombine.high %v1577, %v1577
  %v1584 = vmul.f32 %v1573, %v1576
  %v1585 = vmul.f32 %v1572, %v1580
  %v1586 = vmul.f32 %v1571, %v1577
  %v1587 = vmul.f32 %v1574, %v1581
  %v1588 = vadd.f32 %v1468, %v1584
  %v1589 = vadd.f32 %v1469, %v1585
  %v1590 = vadd.f32 %v1470, %v1586
  %v1591 = vadd.f32 %v1471, %v1587
  %1592 = vrot.lane.b32.xlu0 %v638, 111
  %v1593 = vpop.permute.xlu0 %1592
  %1594 = vrot.lane.b32.xlu0 %v642, 111
  %v1595 = vpop.permute.xlu0 %1594
  %1596 = vrot.lane.b32.xlu0 %v639, 111
  %v1597 = vpop.permute.xlu0 %1596
  %1598 = vrot.lane.b32.xlu0 %v643, 111
  %v1599 = vpop.permute.xlu0 %1598
  %vm1600 = vcmp.lt.s32.totalorder %v655, 111
  %v1601 = vsel %vm1600, %v1597, %v1599
  %v1602 = vsel %vm1600, %v1595, %v1597
  %v1603 = vsel %vm1600, %v1593, %v1595
  %v1604 = vsel %vm1600, %v1599, %v1593
  %s1605 = scalar_lea.vmem %s9, 512
  %v1606 = vld [vmem:[%s1605] sm:$0xff]
  %v1607 = vld [vmem:[%s1605 + $0x8] sm:$0xff]
  %v1610 = vcombine.high %v1606, %v1606
  %v1611 = vcombine.high %v1607, %v1607
  %v1614 = vmul.f32 %v1603, %v1606
  %v1615 = vmul.f32 %v1602, %v1610
  %v1616 = vmul.f32 %v1601, %v1607
  %v1617 = vmul.f32 %v1604, %v1611
  %v1618 = vadd.f32 %v1498, %v1614
  %v1619 = vadd.f32 %v1499, %v1615
  %v1620 = vadd.f32 %v1500, %v1616
  %v1621 = vadd.f32 %v1501, %v1617
  %1622 = vrot.lane.b32.xlu0 %v638, 110
  %v1623 = vpop.permute.xlu0 %1622
  %1624 = vrot.lane.b32.xlu0 %v642, 110
  %v1625 = vpop.permute.xlu0 %1624
  %1626 = vrot.lane.b32.xlu0 %v639, 110
  %v1627 = vpop.permute.xlu0 %1626
  %1628 = vrot.lane.b32.xlu0 %v643, 110
  %v1629 = vpop.permute.xlu0 %1628
  %vm1630 = vcmp.lt.s32.totalorder %v655, 110
  %v1631 = vsel %vm1630, %v1627, %v1629
  %v1632 = vsel %vm1630, %v1625, %v1627
  %v1633 = vsel %vm1630, %v1623, %v1625
  %v1634 = vsel %vm1630, %v1629, %v1623
  %s1635 = scalar_lea.vmem %s9, 528
  %v1636 = vld [vmem:[%s1635] sm:$0xff]
  %v1637 = vld [vmem:[%s1635 + $0x8] sm:$0xff]
  %v1640 = vcombine.high %v1636, %v1636
  %v1641 = vcombine.high %v1637, %v1637
  %v1644 = vmul.f32 %v1633, %v1636
  %v1645 = vmul.f32 %v1632, %v1640
  %v1646 = vmul.f32 %v1631, %v1637
  %v1647 = vmul.f32 %v1634, %v1641
  %v1648 = vadd.f32 %v1528, %v1644
  %v1649 = vadd.f32 %v1529, %v1645
  %v1650 = vadd.f32 %v1530, %v1646
  %v1651 = vadd.f32 %v1531, %v1647
  %1652 = vrot.lane.b32.xlu0 %v638, 109
  %v1653 = vpop.permute.xlu0 %1652
  %1654 = vrot.lane.b32.xlu0 %v642, 109
  %v1655 = vpop.permute.xlu0 %1654
  %1656 = vrot.lane.b32.xlu0 %v639, 109
  %v1657 = vpop.permute.xlu0 %1656
  %1658 = vrot.lane.b32.xlu0 %v643, 109
  %v1659 = vpop.permute.xlu0 %1658
  %vm1660 = vcmp.lt.s32.totalorder %v655, 109
  %v1661 = vsel %vm1660, %v1657, %v1659
  %v1662 = vsel %vm1660, %v1655, %v1657
  %v1663 = vsel %vm1660, %v1653, %v1655
  %v1664 = vsel %vm1660, %v1659, %v1653
  %s1665 = scalar_lea.vmem %s9, 544
  %v1666 = vld [vmem:[%s1665] sm:$0xff]
  %v1667 = vld [vmem:[%s1665 + $0x8] sm:$0xff]
  %v1670 = vcombine.high %v1666, %v1666
  %v1671 = vcombine.high %v1667, %v1667
  %v1674 = vmul.f32 %v1663, %v1666
  %v1675 = vmul.f32 %v1662, %v1670
  %v1676 = vmul.f32 %v1661, %v1667
  %v1677 = vmul.f32 %v1664, %v1671
  %v1678 = vadd.f32 %v1558, %v1674
  %v1679 = vadd.f32 %v1559, %v1675
  %v1680 = vadd.f32 %v1560, %v1676
  %v1681 = vadd.f32 %v1561, %v1677
  %1682 = vrot.lane.b32.xlu0 %v638, 99
  %v1683 = vpop.permute.xlu0 %1682
  %1684 = vrot.lane.b32.xlu0 %v642, 99
  %v1685 = vpop.permute.xlu0 %1684
  %1686 = vrot.lane.b32.xlu0 %v639, 99
  %v1687 = vpop.permute.xlu0 %1686
  %1688 = vrot.lane.b32.xlu0 %v643, 99
  %v1689 = vpop.permute.xlu0 %1688
  %vm1690 = vcmp.lt.s32.totalorder %v655, 99
  %v1691 = vsel %vm1690, %v1687, %v1689
  %v1692 = vsel %vm1690, %v1685, %v1687
  %v1693 = vsel %vm1690, %v1683, %v1685
  %v1694 = vsel %vm1690, %v1689, %v1683
  %s1695 = scalar_lea.vmem %s9, 560
  %v1696 = vld [vmem:[%s1695] sm:$0xff]
  %v1697 = vld [vmem:[%s1695 + $0x8] sm:$0xff]
  %v1700 = vcombine.high %v1696, %v1696
  %v1701 = vcombine.high %v1697, %v1697
  %v1704 = vmul.f32 %v1693, %v1696
  %v1705 = vmul.f32 %v1692, %v1700
  %v1706 = vmul.f32 %v1691, %v1697
  %v1707 = vmul.f32 %v1694, %v1701
  %v1708 = vadd.f32 %v1588, %v1704
  %v1709 = vadd.f32 %v1589, %v1705
  %v1710 = vadd.f32 %v1590, %v1706
  %v1711 = vadd.f32 %v1591, %v1707
  %1712 = vrot.lane.b32.xlu0 %v638, 98
  %v1713 = vpop.permute.xlu0 %1712
  %1714 = vrot.lane.b32.xlu0 %v642, 98
  %v1715 = vpop.permute.xlu0 %1714
  %1716 = vrot.lane.b32.xlu0 %v639, 98
  %v1717 = vpop.permute.xlu0 %1716
  %1718 = vrot.lane.b32.xlu0 %v643, 98
  %v1719 = vpop.permute.xlu0 %1718
  %vm1720 = vcmp.lt.s32.totalorder %v655, 98
  %v1721 = vsel %vm1720, %v1717, %v1719
  %v1722 = vsel %vm1720, %v1715, %v1717
  %v1723 = vsel %vm1720, %v1713, %v1715
  %v1724 = vsel %vm1720, %v1719, %v1713
  %s1725 = scalar_lea.vmem %s9, 576
  %v1726 = vld [vmem:[%s1725] sm:$0xff]
  %v1727 = vld [vmem:[%s1725 + $0x8] sm:$0xff]
  %v1730 = vcombine.high %v1726, %v1726
  %v1731 = vcombine.high %v1727, %v1727
  %v1734 = vmul.f32 %v1723, %v1726
  %v1735 = vmul.f32 %v1722, %v1730
  %v1736 = vmul.f32 %v1721, %v1727
  %v1737 = vmul.f32 %v1724, %v1731
  %v1738 = vadd.f32 %v1618, %v1734
  %v1739 = vadd.f32 %v1619, %v1735
  %v1740 = vadd.f32 %v1620, %v1736
  %v1741 = vadd.f32 %v1621, %v1737
  %1742 = vrot.lane.b32.xlu0 %v638, 97
  %v1743 = vpop.permute.xlu0 %1742
  %1744 = vrot.lane.b32.xlu0 %v642, 97
  %v1745 = vpop.permute.xlu0 %1744
  %1746 = vrot.lane.b32.xlu0 %v639, 97
  %v1747 = vpop.permute.xlu0 %1746
  %1748 = vrot.lane.b32.xlu0 %v643, 97
  %v1749 = vpop.permute.xlu0 %1748
  %vm1750 = vcmp.lt.s32.totalorder %v655, 97
  %v1751 = vsel %vm1750, %v1747, %v1749
  %v1752 = vsel %vm1750, %v1745, %v1747
  %v1753 = vsel %vm1750, %v1743, %v1745
  %v1754 = vsel %vm1750, %v1749, %v1743
  %s1755 = scalar_lea.vmem %s9, 592
  %v1756 = vld [vmem:[%s1755] sm:$0xff]
  %v1757 = vld [vmem:[%s1755 + $0x8] sm:$0xff]
  %v1760 = vcombine.high %v1756, %v1756
  %v1761 = vcombine.high %v1757, %v1757
  %v1764 = vmul.f32 %v1753, %v1756
  %v1765 = vmul.f32 %v1752, %v1760
  %v1766 = vmul.f32 %v1751, %v1757
  %v1767 = vmul.f32 %v1754, %v1761
  %v1768 = vadd.f32 %v1648, %v1764
  %v1769 = vadd.f32 %v1649, %v1765
  %v1770 = vadd.f32 %v1650, %v1766
  %v1771 = vadd.f32 %v1651, %v1767
  %1772 = vrot.lane.b32.xlu0 %v638, 96
  %v1773 = vpop.permute.xlu0 %1772
  %1774 = vrot.lane.b32.xlu0 %v642, 96
  %v1775 = vpop.permute.xlu0 %1774
  %1776 = vrot.lane.b32.xlu0 %v639, 96
  %v1777 = vpop.permute.xlu0 %1776
  %1778 = vrot.lane.b32.xlu0 %v643, 96
  %v1779 = vpop.permute.xlu0 %1778
  %vm1780 = vcmp.lt.s32.totalorder %v655, 96
  %v1781 = vsel %vm1780, %v1777, %v1779
  %v1782 = vsel %vm1780, %v1775, %v1777
  %v1783 = vsel %vm1780, %v1773, %v1775
  %v1784 = vsel %vm1780, %v1779, %v1773
  %s1785 = scalar_lea.vmem %s9, 608
  %v1786 = vld [vmem:[%s1785] sm:$0xff]
  %v1787 = vld [vmem:[%s1785 + $0x8] sm:$0xff]
  %v1790 = vcombine.high %v1786, %v1786
  %v1791 = vcombine.high %v1787, %v1787
  %v1794 = vmul.f32 %v1783, %v1786
  %v1795 = vmul.f32 %v1782, %v1790
  %v1796 = vmul.f32 %v1781, %v1787
  %v1797 = vmul.f32 %v1784, %v1791
  %v1798 = vadd.f32 %v1678, %v1794
  %v1799 = vadd.f32 %v1679, %v1795
  %v1800 = vadd.f32 %v1680, %v1796
  %v1801 = vadd.f32 %v1681, %v1797
  %1802 = vrot.lane.b32.xlu0 %v638, 95
  %v1803 = vpop.permute.xlu0 %1802
  %1804 = vrot.lane.b32.xlu0 %v642, 95
  %v1805 = vpop.permute.xlu0 %1804
  %1806 = vrot.lane.b32.xlu0 %v639, 95
  %v1807 = vpop.permute.xlu0 %1806
  %1808 = vrot.lane.b32.xlu0 %v643, 95
  %v1809 = vpop.permute.xlu0 %1808
  %vm1810 = vcmp.lt.s32.totalorder %v655, 95
  %v1811 = vsel %vm1810, %v1807, %v1809
  %v1812 = vsel %vm1810, %v1805, %v1807
  %v1813 = vsel %vm1810, %v1803, %v1805
  %v1814 = vsel %vm1810, %v1809, %v1803
  %s1815 = scalar_lea.vmem %s9, 624
  %v1816 = vld [vmem:[%s1815] sm:$0xff]
  %v1817 = vld [vmem:[%s1815 + $0x8] sm:$0xff]
  %v1820 = vcombine.high %v1816, %v1816
  %v1821 = vcombine.high %v1817, %v1817
  %v1824 = vmul.f32 %v1813, %v1816
  %v1825 = vmul.f32 %v1812, %v1820
  %v1826 = vmul.f32 %v1811, %v1817
  %v1827 = vmul.f32 %v1814, %v1821
  %v1828 = vadd.f32 %v1708, %v1824
  %v1829 = vadd.f32 %v1709, %v1825
  %v1830 = vadd.f32 %v1710, %v1826
  %v1831 = vadd.f32 %v1711, %v1827
  %1832 = vrot.lane.b32.xlu0 %v638, 94
  %v1833 = vpop.permute.xlu0 %1832
  %1834 = vrot.lane.b32.xlu0 %v642, 94
  %v1835 = vpop.permute.xlu0 %1834
  %1836 = vrot.lane.b32.xlu0 %v639, 94
  %v1837 = vpop.permute.xlu0 %1836
  %1838 = vrot.lane.b32.xlu0 %v643, 94
  %v1839 = vpop.permute.xlu0 %1838
  %vm1840 = vcmp.lt.s32.totalorder %v655, 94
  %v1841 = vsel %vm1840, %v1837, %v1839
  %v1842 = vsel %vm1840, %v1835, %v1837
  %v1843 = vsel %vm1840, %v1833, %v1835
  %v1844 = vsel %vm1840, %v1839, %v1833
  %s1845 = scalar_lea.vmem %s9, 640
  %v1846 = vld [vmem:[%s1845] sm:$0xff]
  %v1847 = vld [vmem:[%s1845 + $0x8] sm:$0xff]
  %v1850 = vcombine.high %v1846, %v1846
  %v1851 = vcombine.high %v1847, %v1847
  %v1854 = vmul.f32 %v1843, %v1846
  %v1855 = vmul.f32 %v1842, %v1850
  %v1856 = vmul.f32 %v1841, %v1847
  %v1857 = vmul.f32 %v1844, %v1851
  %v1858 = vadd.f32 %v1738, %v1854
  %v1859 = vadd.f32 %v1739, %v1855
  %v1860 = vadd.f32 %v1740, %v1856
  %v1861 = vadd.f32 %v1741, %v1857
  %1862 = vrot.lane.b32.xlu0 %v638, 93
  %v1863 = vpop.permute.xlu0 %1862
  %1864 = vrot.lane.b32.xlu0 %v642, 93
  %v1865 = vpop.permute.xlu0 %1864
  %1866 = vrot.lane.b32.xlu0 %v639, 93
  %v1867 = vpop.permute.xlu0 %1866
  %1868 = vrot.lane.b32.xlu0 %v643, 93
  %v1869 = vpop.permute.xlu0 %1868
  %vm1870 = vcmp.lt.s32.totalorder %v655, 93
  %v1871 = vsel %vm1870, %v1867, %v1869
  %v1872 = vsel %vm1870, %v1865, %v1867
  %v1873 = vsel %vm1870, %v1863, %v1865
  %v1874 = vsel %vm1870, %v1869, %v1863
  %s1875 = scalar_lea.vmem %s9, 656
  %v1876 = vld [vmem:[%s1875] sm:$0xff]
  %v1877 = vld [vmem:[%s1875 + $0x8] sm:$0xff]
  %v1880 = vcombine.high %v1876, %v1876
  %v1881 = vcombine.high %v1877, %v1877
  %v1884 = vmul.f32 %v1873, %v1876
  %v1885 = vmul.f32 %v1872, %v1880
  %v1886 = vmul.f32 %v1871, %v1877
  %v1887 = vmul.f32 %v1874, %v1881
  %v1888 = vadd.f32 %v1768, %v1884
  %v1889 = vadd.f32 %v1769, %v1885
  %v1890 = vadd.f32 %v1770, %v1886
  %v1891 = vadd.f32 %v1771, %v1887
  %1892 = vrot.lane.b32.xlu0 %v638, 83
  %v1893 = vpop.permute.xlu0 %1892
  %1894 = vrot.lane.b32.xlu0 %v642, 83
  %v1895 = vpop.permute.xlu0 %1894
  %1896 = vrot.lane.b32.xlu0 %v639, 83
  %v1897 = vpop.permute.xlu0 %1896
  %1898 = vrot.lane.b32.xlu0 %v643, 83
  %v1899 = vpop.permute.xlu0 %1898
  %vm1900 = vcmp.lt.s32.totalorder %v655, 83
  %v1901 = vsel %vm1900, %v1897, %v1899
  %v1902 = vsel %vm1900, %v1895, %v1897
  %v1903 = vsel %vm1900, %v1893, %v1895
  %v1904 = vsel %vm1900, %v1899, %v1893
  %s1905 = scalar_lea.vmem %s9, 672
  %v1906 = vld [vmem:[%s1905] sm:$0xff]
  %v1907 = vld [vmem:[%s1905 + $0x8] sm:$0xff]
  %v1910 = vcombine.high %v1906, %v1906
  %v1911 = vcombine.high %v1907, %v1907
  %v1914 = vmul.f32 %v1903, %v1906
  %v1915 = vmul.f32 %v1902, %v1910
  %v1916 = vmul.f32 %v1901, %v1907
  %v1917 = vmul.f32 %v1904, %v1911
  %v1918 = vadd.f32 %v1798, %v1914
  %v1919 = vadd.f32 %v1799, %v1915
  %v1920 = vadd.f32 %v1800, %v1916
  %v1921 = vadd.f32 %v1801, %v1917
  %1922 = vrot.lane.b32.xlu0 %v638, 82
  %v1923 = vpop.permute.xlu0 %1922
  %1924 = vrot.lane.b32.xlu0 %v642, 82
  %v1925 = vpop.permute.xlu0 %1924
  %1926 = vrot.lane.b32.xlu0 %v639, 82
  %v1927 = vpop.permute.xlu0 %1926
  %1928 = vrot.lane.b32.xlu0 %v643, 82
  %v1929 = vpop.permute.xlu0 %1928
  %vm1930 = vcmp.lt.s32.totalorder %v655, 82
  %v1931 = vsel %vm1930, %v1927, %v1929
  %v1932 = vsel %vm1930, %v1925, %v1927
  %v1933 = vsel %vm1930, %v1923, %v1925
  %v1934 = vsel %vm1930, %v1929, %v1923
  %s1935 = scalar_lea.vmem %s9, 688
  %v1936 = vld [vmem:[%s1935] sm:$0xff]
  %v1937 = vld [vmem:[%s1935 + $0x8] sm:$0xff]
  %v1940 = vcombine.high %v1936, %v1936
  %v1941 = vcombine.high %v1937, %v1937
  %v1944 = vmul.f32 %v1933, %v1936
  %v1945 = vmul.f32 %v1932, %v1940
  %v1946 = vmul.f32 %v1931, %v1937
  %v1947 = vmul.f32 %v1934, %v1941
  %v1948 = vadd.f32 %v1828, %v1944
  %v1949 = vadd.f32 %v1829, %v1945
  %v1950 = vadd.f32 %v1830, %v1946
  %v1951 = vadd.f32 %v1831, %v1947
  %1952 = vrot.lane.b32.xlu0 %v638, 81
  %v1953 = vpop.permute.xlu0 %1952
  %1954 = vrot.lane.b32.xlu0 %v642, 81
  %v1955 = vpop.permute.xlu0 %1954
  %1956 = vrot.lane.b32.xlu0 %v639, 81
  %v1957 = vpop.permute.xlu0 %1956
  %1958 = vrot.lane.b32.xlu0 %v643, 81
  %v1959 = vpop.permute.xlu0 %1958
  %vm1960 = vcmp.lt.s32.totalorder %v655, 81
  %v1961 = vsel %vm1960, %v1957, %v1959
  %v1962 = vsel %vm1960, %v1955, %v1957
  %v1963 = vsel %vm1960, %v1953, %v1955
  %v1964 = vsel %vm1960, %v1959, %v1953
  %s1965 = scalar_lea.vmem %s9, 704
  %v1966 = vld [vmem:[%s1965] sm:$0xff]
  %v1967 = vld [vmem:[%s1965 + $0x8] sm:$0xff]
  %v1970 = vcombine.high %v1966, %v1966
  %v1971 = vcombine.high %v1967, %v1967
  %v1974 = vmul.f32 %v1963, %v1966
  %v1975 = vmul.f32 %v1962, %v1970
  %v1976 = vmul.f32 %v1961, %v1967
  %v1977 = vmul.f32 %v1964, %v1971
  %v1978 = vadd.f32 %v1858, %v1974
  %v1979 = vadd.f32 %v1859, %v1975
  %v1980 = vadd.f32 %v1860, %v1976
  %v1981 = vadd.f32 %v1861, %v1977
  %1982 = vrot.lane.b32.xlu0 %v638, 80
  %v1983 = vpop.permute.xlu0 %1982
  %1984 = vrot.lane.b32.xlu0 %v642, 80
  %v1985 = vpop.permute.xlu0 %1984
  %1986 = vrot.lane.b32.xlu0 %v639, 80
  %v1987 = vpop.permute.xlu0 %1986
  %1988 = vrot.lane.b32.xlu0 %v643, 80
  %v1989 = vpop.permute.xlu0 %1988
  %vm1990 = vcmp.lt.s32.totalorder %v655, 80
  %v1991 = vsel %vm1990, %v1987, %v1989
  %v1992 = vsel %vm1990, %v1985, %v1987
  %v1993 = vsel %vm1990, %v1983, %v1985
  %v1994 = vsel %vm1990, %v1989, %v1983
  %s1995 = scalar_lea.vmem %s9, 720
  %v1996 = vld [vmem:[%s1995] sm:$0xff]
  %v1997 = vld [vmem:[%s1995 + $0x8] sm:$0xff]
  %v2000 = vcombine.high %v1996, %v1996
  %v2001 = vcombine.high %v1997, %v1997
  %v2004 = vmul.f32 %v1993, %v1996
  %v2005 = vmul.f32 %v1992, %v2000
  %v2006 = vmul.f32 %v1991, %v1997
  %v2007 = vmul.f32 %v1994, %v2001
  %v2008 = vadd.f32 %v1888, %v2004
  %v2009 = vadd.f32 %v1889, %v2005
  %v2010 = vadd.f32 %v1890, %v2006
  %v2011 = vadd.f32 %v1891, %v2007
  %2012 = vrot.lane.b32.xlu0 %v638, 79
  %v2013 = vpop.permute.xlu0 %2012
  %2014 = vrot.lane.b32.xlu0 %v642, 79
  %v2015 = vpop.permute.xlu0 %2014
  %2016 = vrot.lane.b32.xlu0 %v639, 79
  %v2017 = vpop.permute.xlu0 %2016
  %2018 = vrot.lane.b32.xlu0 %v643, 79
  %v2019 = vpop.permute.xlu0 %2018
  %vm2020 = vcmp.lt.s32.totalorder %v655, 79
  %v2021 = vsel %vm2020, %v2017, %v2019
  %v2022 = vsel %vm2020, %v2015, %v2017
  %v2023 = vsel %vm2020, %v2013, %v2015
  %v2024 = vsel %vm2020, %v2019, %v2013
  %s2025 = scalar_lea.vmem %s9, 736
  %v2026 = vld [vmem:[%s2025] sm:$0xff]
  %v2027 = vld [vmem:[%s2025 + $0x8] sm:$0xff]
  %v2030 = vcombine.high %v2026, %v2026
  %v2031 = vcombine.high %v2027, %v2027
  %v2034 = vmul.f32 %v2023, %v2026
  %v2035 = vmul.f32 %v2022, %v2030
  %v2036 = vmul.f32 %v2021, %v2027
  %v2037 = vmul.f32 %v2024, %v2031
  %v2038 = vadd.f32 %v1918, %v2034
  %v2039 = vadd.f32 %v1919, %v2035
  %v2040 = vadd.f32 %v1920, %v2036
  %v2041 = vadd.f32 %v1921, %v2037
  %2042 = vrot.lane.b32.xlu0 %v638, 78
  %v2043 = vpop.permute.xlu0 %2042
  %2044 = vrot.lane.b32.xlu0 %v642, 78
  %v2045 = vpop.permute.xlu0 %2044
  %2046 = vrot.lane.b32.xlu0 %v639, 78
  %v2047 = vpop.permute.xlu0 %2046
  %2048 = vrot.lane.b32.xlu0 %v643, 78
  %v2049 = vpop.permute.xlu0 %2048
  %vm2050 = vcmp.lt.s32.totalorder %v655, 78
  %v2051 = vsel %vm2050, %v2047, %v2049
  %v2052 = vsel %vm2050, %v2045, %v2047
  %v2053 = vsel %vm2050, %v2043, %v2045
  %v2054 = vsel %vm2050, %v2049, %v2043
  %s2055 = scalar_lea.vmem %s9, 752
  %v2056 = vld [vmem:[%s2055] sm:$0xff]
  %v2057 = vld [vmem:[%s2055 + $0x8] sm:$0xff]
  %v2060 = vcombine.high %v2056, %v2056
  %v2061 = vcombine.high %v2057, %v2057
  %v2064 = vmul.f32 %v2053, %v2056
  %v2065 = vmul.f32 %v2052, %v2060
  %v2066 = vmul.f32 %v2051, %v2057
  %v2067 = vmul.f32 %v2054, %v2061
  %v2068 = vadd.f32 %v1948, %v2064
  %v2069 = vadd.f32 %v1949, %v2065
  %v2070 = vadd.f32 %v1950, %v2066
  %v2071 = vadd.f32 %v1951, %v2067
  %2072 = vrot.lane.b32.xlu0 %v638, 77
  %v2073 = vpop.permute.xlu0 %2072
  %2074 = vrot.lane.b32.xlu0 %v642, 77
  %v2075 = vpop.permute.xlu0 %2074
  %2076 = vrot.lane.b32.xlu0 %v639, 77
  %v2077 = vpop.permute.xlu0 %2076
  %2078 = vrot.lane.b32.xlu0 %v643, 77
  %v2079 = vpop.permute.xlu0 %2078
  %vm2080 = vcmp.lt.s32.totalorder %v655, 77
  %v2081 = vsel %vm2080, %v2077, %v2079
  %v2082 = vsel %vm2080, %v2075, %v2077
  %v2083 = vsel %vm2080, %v2073, %v2075
  %v2084 = vsel %vm2080, %v2079, %v2073
  %s2085 = scalar_lea.vmem %s9, 768
  %v2086 = vld [vmem:[%s2085] sm:$0xff]
  %v2087 = vld [vmem:[%s2085 + $0x8] sm:$0xff]
  %v2090 = vcombine.high %v2086, %v2086
  %v2091 = vcombine.high %v2087, %v2087
  %v2094 = vmul.f32 %v2083, %v2086
  %v2095 = vmul.f32 %v2082, %v2090
  %v2096 = vmul.f32 %v2081, %v2087
  %v2097 = vmul.f32 %v2084, %v2091
  %v2098 = vadd.f32 %v1978, %v2094
  %v2099 = vadd.f32 %v1979, %v2095
  %v2100 = vadd.f32 %v1980, %v2096
  %v2101 = vadd.f32 %v1981, %v2097
  %v2102 = vadd.f32 %v2098, %v2008
  %v2103 = vadd.f32 %v2099, %v2009
  %v2104 = vadd.f32 %v2100, %v2010
  %v2105 = vadd.f32 %v2101, %v2011
  %v2106 = vadd.f32 %v2038, %v2068
  %v2107 = vadd.f32 %v2039, %v2069
  %v2108 = vadd.f32 %v2040, %v2070
  %v2109 = vadd.f32 %v2041, %v2071
  %v2110 = vadd.f32 %v2102, %v2106
  %v2111 = vadd.f32 %v2103, %v2107
  %v2112 = vadd.f32 %v2104, %v2108
  %v2113 = vadd.f32 %v2105, %v2109
  %v2118 = vrot.slane %v2110, 1
  %v2119 = vrot.slane %v2111, 1
  %v2120 = vrot.slane %v2112, 1
  %v2121 = vrot.slane %v2113, 1
  %v2126 = vadd.f32 %v2110, %v2118
  %v2127 = vadd.f32 %v2111, %v2119
  %v2128 = vadd.f32 %v2112, %v2120
  %v2129 = vadd.f32 %v2113, %v2121
  %v2130 = vxor.u32 %v2126, 2147483648
  %v2131 = vxor.u32 %v2127, 2147483648
  %v2132 = vxor.u32 %v2128, 2147483648
  %v2133 = vxor.u32 %v2129, 2147483648
  %v2134 = vmul.f32 %v2130, 1.442695
  %v2135 = vpow.pop %v2134
  %v2136 = vmul.f32 %v2131, 1.442695
  %v2137 = vpow.pop %v2136
  %v2138 = vmul.f32 %v2132, 1.442695
  %v2139 = vpow.pop %v2138
  %v2140 = vmul.f32 %v2133, 1.442695
  %v2141 = vpow.pop %v2140
  %v2142 = vadd.f32 %v2135, 1.0
  %v2143 = vadd.f32 %v2137, 1.0
  %v2144 = vadd.f32 %v2139, 1.0
  %v2145 = vadd.f32 %v2141, 1.0
  %v2146 = vrcp.pop %v2142
  %v2147 = vmul.f32 1.0, %v2146
  %v2148 = vrcp.pop %v2143
  %v2149 = vmul.f32 1.0, %v2148
  %v2150 = vrcp.pop %v2144
  %v2151 = vmul.f32 1.0, %v2150
  %v2152 = vrcp.pop %v2145
  %v2153 = vmul.f32 1.0, %v2152
  %v2154 = vmul.f32 %v217, %v387
  %v2155 = vmul.f32 %v218, %v388
  %v2156 = vmul.f32 %v219, %v389
  %v2157 = vmul.f32 %v220, %v390
  %v2158 = vsel %vm66, %v2154, 0.0
  %v2159 = vrot.slane %v2158, 4
  %v2160 = vadd.f32 %v2158, %v2159
  %v2161 = vrot.slane %v2160, 2
  %v2162 = vadd.f32 %v2160, %v2161
  %v2163 = vrot.slane %v2162, 1
  %v2164 = vadd.f32 %v2162, %v2163
  %v2165 = vsel %vm66, %v2155, 0.0
  %v2166 = vrot.slane %v2165, 4
  %v2167 = vadd.f32 %v2165, %v2166
  %v2168 = vrot.slane %v2167, 2
  %v2169 = vadd.f32 %v2167, %v2168
  %v2170 = vrot.slane %v2169, 1
  %v2171 = vadd.f32 %v2169, %v2170
  %v2172 = vsel %vm66, %v2156, 0.0
  %v2173 = vrot.slane %v2172, 4
  %v2174 = vadd.f32 %v2172, %v2173
  %v2175 = vrot.slane %v2174, 2
  %v2176 = vadd.f32 %v2174, %v2175
  %v2177 = vrot.slane %v2176, 1
  %v2178 = vadd.f32 %v2176, %v2177
  %v2179 = vsel %vm66, %v2157, 0.0
  %v2180 = vrot.slane %v2179, 4
  %v2181 = vadd.f32 %v2179, %v2180
  %v2182 = vrot.slane %v2181, 2
  %v2183 = vadd.f32 %v2181, %v2182
  %v2184 = vrot.slane %v2183, 1
  %v2185 = vadd.f32 %v2183, %v2184
  %v2186 = vmul.f32 %v217, %v217
  %v2187 = vmul.f32 %v218, %v218
  %v2188 = vmul.f32 %v219, %v219
  %v2189 = vmul.f32 %v220, %v220
  %v2190 = vsel %vm66, %v2186, 0.0
  %v2191 = vrot.slane %v2190, 4
  %v2192 = vadd.f32 %v2190, %v2191
  %v2193 = vrot.slane %v2192, 2
  %v2194 = vadd.f32 %v2192, %v2193
  %v2195 = vrot.slane %v2194, 1
  %v2196 = vadd.f32 %v2194, %v2195
  %v2197 = vsel %vm66, %v2187, 0.0
  %v2198 = vrot.slane %v2197, 4
  %v2199 = vadd.f32 %v2197, %v2198
  %v2200 = vrot.slane %v2199, 2
  %v2201 = vadd.f32 %v2199, %v2200
  %v2202 = vrot.slane %v2201, 1
  %v2203 = vadd.f32 %v2201, %v2202
  %v2204 = vsel %vm66, %v2188, 0.0
  %v2205 = vrot.slane %v2204, 4
  %v2206 = vadd.f32 %v2204, %v2205
  %v2207 = vrot.slane %v2206, 2
  %v2208 = vadd.f32 %v2206, %v2207
  %v2209 = vrot.slane %v2208, 1
  %v2210 = vadd.f32 %v2208, %v2209
  %v2211 = vsel %vm66, %v2189, 0.0
  %v2212 = vrot.slane %v2211, 4
  %v2213 = vadd.f32 %v2211, %v2212
  %v2214 = vrot.slane %v2213, 2
  %v2215 = vadd.f32 %v2213, %v2214
  %v2216 = vrot.slane %v2215, 1
  %v2217 = vadd.f32 %v2215, %v2216
  %v2218 = vmul.f32 %v387, %v387
  %v2219 = vmul.f32 %v388, %v388
  %v2220 = vmul.f32 %v389, %v389
  %v2221 = vmul.f32 %v390, %v390
  %v2222 = vsel %vm66, %v2218, 0.0
  %v2223 = vrot.slane %v2222, 4
  %v2224 = vadd.f32 %v2222, %v2223
  %v2225 = vrot.slane %v2224, 2
  %v2226 = vadd.f32 %v2224, %v2225
  %v2227 = vrot.slane %v2226, 1
  %v2228 = vadd.f32 %v2226, %v2227
  %v2229 = vsel %vm66, %v2219, 0.0
  %v2230 = vrot.slane %v2229, 4
  %v2231 = vadd.f32 %v2229, %v2230
  %v2232 = vrot.slane %v2231, 2
  %v2233 = vadd.f32 %v2231, %v2232
  %v2234 = vrot.slane %v2233, 1
  %v2235 = vadd.f32 %v2233, %v2234
  %v2236 = vsel %vm66, %v2220, 0.0
  %v2237 = vrot.slane %v2236, 4
  %v2238 = vadd.f32 %v2236, %v2237
  %v2239 = vrot.slane %v2238, 2
  %v2240 = vadd.f32 %v2238, %v2239
  %v2241 = vrot.slane %v2240, 1
  %v2242 = vadd.f32 %v2240, %v2241
  %v2243 = vsel %vm66, %v2221, 0.0
  %v2244 = vrot.slane %v2243, 4
  %v2245 = vadd.f32 %v2243, %v2244
  %v2246 = vrot.slane %v2245, 2
  %v2247 = vadd.f32 %v2245, %v2246
  %v2248 = vrot.slane %v2247, 1
  %v2249 = vadd.f32 %v2247, %v2248
  %v2250 = vmax.f32 %v2196, 1e-16
  %v2251 = vmax.f32 %v2203, 1e-16
  %v2252 = vmax.f32 %v2210, 1e-16
  %v2253 = vmax.f32 %v2217, 1e-16
  %v2254 = vmax.f32 %v2228, 1e-16
  %v2255 = vmax.f32 %v2235, 1e-16
  %v2256 = vmax.f32 %v2242, 1e-16
  %v2257 = vmax.f32 %v2249, 1e-16
  %v2258 = vmul.f32 %v2250, %v2254
  %v2259 = vmul.f32 %v2251, %v2255
  %v2260 = vmul.f32 %v2252, %v2256
  %v2261 = vmul.f32 %v2253, %v2257
  %v2262 = vrsqrt.pop %v2258
  %v2263 = vrsqrt.pop %v2259
  %v2264 = vrsqrt.pop %v2260
  %v2265 = vrsqrt.pop %v2261
  %v2266 = vmul.f32 %v2164, %v2262
  %v2267 = vmul.f32 %v2171, %v2263
  %v2268 = vmul.f32 %v2178, %v2264
  %v2269 = vmul.f32 %v2185, %v2265
  %v2270 = vmax.f32 %v2266, 0.4
  %v2271 = vmax.f32 %v2267, 0.4
  %v2272 = vmax.f32 %v2268, 0.4
  %v2273 = vmax.f32 %v2269, 0.4
  %vm2274 = vcmp.gt.f32.partialorder %v2147, 0.5
  %vm2275 = vcmp.gt.f32.partialorder %v2149, 0.5
  %vm2276 = vcmp.gt.f32.partialorder %v2151, 0.5
  %vm2277 = vcmp.gt.f32.partialorder %v2153, 0.5
  %v2278 = vsel %vm2274, 1, 0
  %v2279 = vsel %vm2275, 1, 0
  %v2280 = vsel %vm2276, 1, 0
  %v2281 = vsel %vm2277, 1, 0
  %v2282 = vrot.slane %v2278, 2
  %v2283 = vrot.slane %v2279, 2
  %v2284 = vrot.slane %v2280, 2
  %v2285 = vrot.slane %v2281, 2
  %vm2286 = vcmp.ne.s32.totalorder %v2282, 0
  %vm2287 = vcmp.ne.s32.totalorder %v2283, 0
  %vm2288 = vcmp.ne.s32.totalorder %v2284, 0
  %vm2289 = vcmp.ne.s32.totalorder %v2285, 0
  %vm2290 = vmand %vm2274, %vm2286
  %vm2291 = vmand %vm2275, %vm2287
  %vm2292 = vmand %vm2276, %vm2288
  %vm2293 = vmand %vm2277, %vm2289
  %v2294 = vmul.f32 %v2270, 2.0
  %v2295 = vmul.f32 %v2271, 2.0
  %v2296 = vmul.f32 %v2272, 2.0
  %v2297 = vmul.f32 %v2273, 2.0
  %vm2298 = vmor %vm2274, %vm2286
  %vm2299 = vmor %vm2275, %vm2287
  %vm2300 = vmor %vm2276, %vm2288
  %vm2301 = vmor %vm2277, %vm2289
  %v2302 = vsub.f32 1.0, %v2270
  %v2303 = vsub.f32 1.0, %v2271
  %v2304 = vsub.f32 1.0, %v2272
  %v2305 = vsub.f32 1.0, %v2273
  %v2306 = vmul.f32 %v2302, 0.4
  %v2307 = vmul.f32 %v2303, 0.4
  %v2308 = vmul.f32 %v2304, 0.4
  %v2309 = vmul.f32 %v2305, 0.4
  %v2310 = vsel %vm2298, 0.4, %v2306
  %v2311 = vsel %vm2299, 0.4, %v2307
  %v2312 = vsel %vm2300, 0.4, %v2308
  %v2313 = vsel %vm2301, 0.4, %v2309
  %v2314 = vsel %vm2290, %v2294, %v2310
  %v2315 = vsel %vm2291, %v2295, %v2311
  %v2316 = vsel %vm2292, %v2296, %v2312
  %v2317 = vsel %vm2293, %v2297, %v2313
  %v2322 = vrot.slane %v2147, 2
  %v2323 = vrot.slane %v2149, 2
  %v2324 = vrot.slane %v2151, 2
  %v2325 = vrot.slane %v2153, 2
  %v2330 = vadd.f32 %v2147, %v2322
  %v2331 = vadd.f32 %v2149, %v2323
  %v2332 = vadd.f32 %v2151, %v2324
  %v2333 = vadd.f32 %v2153, %v2325
  %v2334 = vmul.f32 %v2330, 0.5
  %v2335 = vmul.f32 %v2331, 0.5
  %v2336 = vmul.f32 %v2332, 0.5
  %v2337 = vmul.f32 %v2333, 0.5
  %v2338 = vmul.f32 %v2334, %v2314
  %v2339 = vmul.f32 %v2335, %v2315
  %v2340 = vmul.f32 %v2336, %v2316
  %v2341 = vmul.f32 %v2337, %v2317
  %v2346 = vcombine.low %v2338, %v2339
  %v2347 = vcombine.low %v2340, %v2341
  %v2349 = vunpack.c.l.s4 1966171168
  %v2350 = vunpack.c.0.s8 %v2349
  %v2351 = vlaneseq
  %v2352 = vshrl.u32 %v2351, 7
  %v2353 = vsub.s32 %v2350, %v2352
  %v2354 = vrot.slane %v2346, %v2353
  %v2356 = vunpack.c.l.s4 1966171168
  %v2357 = vunpack.c.0.s8 %v2356
  %v2358 = vlaneseq
  %v2359 = vshrl.u32 %v2358, 7
  %v2360 = vsub.s32 %v2357, %v2359
  %v2361 = vrot.slane %v2347, %v2360
  %v2362 = vcombine.low %v2354, %v2361
  %v2364 = vunpack.c.l.s4 1966171168
  %v2365 = vunpack.c.0.s8 %v2364
  %v2366 = vlaneseq
  %v2367 = vshrl.u32 %v2366, 7
  %v2368 = vsub.s32 %v2365, %v2367
  %v2369 = vrot.slane %v2362, %v2368
  %2371 = vst.msk [vmem:[%s13] sm:$0xf] %vm455, %v2369
  %v2372 = vlaneseq
  %v2373 = vshrl.u32 %v2372, 7
  %v2374 = vsub.s32 0, %v2373
  %v2375 = vrot.slane %v2338, %v2374
  %v2376 = vlaneseq
  %v2377 = vshrl.u32 %v2376, 7
  %v2378 = vsub.s32 0, %v2377
  %v2379 = vrot.slane %v2339, %v2378
  %v2380 = vlaneseq
  %v2381 = vshrl.u32 %v2380, 7
  %v2382 = vsub.s32 0, %v2381
  %v2383 = vrot.slane %v2340, %v2382
  %v2384 = vlaneseq
  %v2385 = vshrl.u32 %v2384, 7
  %v2386 = vsub.s32 0, %v2385
  %v2387 = vrot.slane %v2341, %v2386
  %v2388 = vmul.f32 %v387, %v2375
  %v2389 = vmul.f32 %v388, %v2379
  %v2390 = vmul.f32 %v389, %v2383
  %v2391 = vmul.f32 %v390, %v2387
  %v2392 = vld [vmem:[%s7] sm:$0xf]
  %v2393 = vld [vmem:[%s8] sm:$0xf]
  %2395 = vset.pattern.permute.xlu0 0
  %2396 = vperm.xlu0 %2395, %v2393
  %v2397 = vpop.permute.xlu0 %2396
  %v2400 = vsel %vm62, %v2392, 0
  %v2403 = vsel %vm66, %v2388, 0
  %v2406 = vsel %vm66, %v2389, 0
  %v2409 = vsel %vm66, %v2390, 0
  %v2412 = vsel %vm66, %v2391, 0
  %2414 = vmatprep.subr.mxu0 %v2406
  %2415 = vmatpush1.msra.mxu0 %v2403
  %2416 = vmatprep.subr.mxu0 0.0
  %2417 = vmatpush1.msra.mxu0 0.0
  %2418 = vmatprep.subr.mxu0 0.0
  %2419 = vmatpush1.msra.mxu0 0.0
  %2420 = vmatprep.subr.mxu0 0.0
  %2421 = vmatpush1.msra.mxu0 0.0
  %2422 = vmatprep.subr.mxu0 0.0
  %2423 = vmatpush1.msra.mxu0 0.0
  %2424 = vmatprep.subr.mxu0 0.0
  %2425 = vmatpush1.msra.mxu0 0.0
  %2426 = vmatprep.subr.mxu0 0.0
  %2427 = vmatpush1.msra.mxu0 0.0
  %2428 = vmatprep.subr.mxu0 0.0
  %2429 = vmatpush1.msra.mxu0 0.0
  %2430 = vmatprep.subr.mxu0 0.0
  %2431 = vmatpush1.msra.mxu0 0.0
  %2432 = vmatprep.subr.mxu0 0.0
  %2433 = vmatpush1.msra.mxu0 0.0
  %2434 = vmatprep.subr.mxu0 0.0
  %2435 = vmatpush1.msra.mxu0 0.0
  %2436 = vmatprep.subr.mxu0 0.0
  %2437 = vmatpush1.msra.mxu0 0.0
  %2438 = vmatprep.subr.mxu0 0.0
  %2439 = vmatpush1.msra.mxu0 0.0
  %2440 = vmatprep.subr.mxu0 0.0
  %2441 = vmatpush1.msra.mxu0 0.0
  %2442 = vmatprep.subr.mxu0 0.0
  %2443 = vmatpush1.msra.mxu0 0.0
  %2444 = vmatprep.subr.mxu0 0.0
  %2445 = vmatpush1.msra.mxu0 0.0
  %2446 = vmatprep.subr.mxu0 0.0
  %2447 = vmatpush1.msra.mxu0 0.0
  %2448 = vmatprep.subr.mxu0 0.0
  %2449 = vmatpush1.msra.mxu0 0.0
  %2450 = vmatprep.subr.mxu0 0.0
  %2451 = vmatpush1.msra.mxu0 0.0
  %2452 = vmatprep.subr.mxu0 0.0
  %2453 = vmatpush1.msra.mxu0 0.0
  %2454 = vmatprep.subr.mxu0 0.0
  %2455 = vmatpush1.msra.mxu0 0.0
  %2456 = vmatprep.subr.mxu0 0.0
  %2457 = vmatpush1.msra.mxu0 0.0
  %2458 = vmatprep.subr.mxu0 0.0
  %2459 = vmatpush1.msra.mxu0 0.0
  %2460 = vmatprep.subr.mxu0 0.0
  %2461 = vmatpush1.msra.mxu0 0.0
  %2462 = vmatprep.subr.mxu0 0.0
  %2463 = vmatpush1.msra.mxu0 0.0
  %2464 = vmatprep.subr.mxu0 0.0
  %2465 = vmatpush1.msra.mxu0 0.0
  %2466 = vmatprep.subr.mxu0 0.0
  %2467 = vmatpush1.msra.mxu0 0.0
  %2468 = vmatprep.subr.mxu0 0.0
  %2469 = vmatpush1.msra.mxu0 0.0
  %2470 = vmatprep.subr.mxu0 0.0
  %2471 = vmatpush1.msra.mxu0 0.0
  %2472 = vmatprep.subr.mxu0 0.0
  %2473 = vmatpush1.msra.mxu0 0.0
  %2474 = vmatprep.subr.mxu0 0.0
  %2475 = vmatpush1.msra.mxu0 0.0
  %2476 = vmatprep.subr.mxu0 0.0
  %2477 = vmatpush1.msra.mxu0 0.0
  %2478 = vmatprep.mubr.f32.mxu0 0.0
  %2479 = vmatmul.mubr.f32.gmra.mrb[0].mxu0 %v2400
  %v2480 = vpop.f32.mrb[0].mxu0
  %v2481 = vadd.f32 %v2397, %v2480
  %v2482 = vpop.f32.mrb[0].mxu0
  %v2483 = vadd.f32 %v2397, %v2482
  %2484 = vdwg.mxu0
  %2485 = vmatprep.subr.mxu0 %v2412
  %2486 = vmatpush1.msra.mxu0 %v2409
  %2487 = vmatprep.subr.mxu0 0.0
  %2488 = vmatpush1.msra.mxu0 0.0
  %2489 = vmatprep.subr.mxu0 0.0
  %2490 = vmatpush1.msra.mxu0 0.0
  %2491 = vmatprep.subr.mxu0 0.0
  %2492 = vmatpush1.msra.mxu0 0.0
  %2493 = vmatprep.subr.mxu0 0.0
  %2494 = vmatpush1.msra.mxu0 0.0
  %2495 = vmatprep.subr.mxu0 0.0
  %2496 = vmatpush1.msra.mxu0 0.0
  %2497 = vmatprep.subr.mxu0 0.0
  %2498 = vmatpush1.msra.mxu0 0.0
  %2499 = vmatprep.subr.mxu0 0.0
  %2500 = vmatpush1.msra.mxu0 0.0
  %2501 = vmatprep.subr.mxu0 0.0
  %2502 = vmatpush1.msra.mxu0 0.0
  %2503 = vmatprep.subr.mxu0 0.0
  %2504 = vmatpush1.msra.mxu0 0.0
  %2505 = vmatprep.subr.mxu0 0.0
  %2506 = vmatpush1.msra.mxu0 0.0
  %2507 = vmatprep.subr.mxu0 0.0
  %2508 = vmatpush1.msra.mxu0 0.0
  %2509 = vmatprep.subr.mxu0 0.0
  %2510 = vmatpush1.msra.mxu0 0.0
  %2511 = vmatprep.subr.mxu0 0.0
  %2512 = vmatpush1.msra.mxu0 0.0
  %2513 = vmatprep.subr.mxu0 0.0
  %2514 = vmatpush1.msra.mxu0 0.0
  %2515 = vmatprep.subr.mxu0 0.0
  %2516 = vmatpush1.msra.mxu0 0.0
  %2517 = vmatprep.subr.mxu0 0.0
  %2518 = vmatpush1.msra.mxu0 0.0
  %2519 = vmatprep.subr.mxu0 0.0
  %2520 = vmatpush1.msra.mxu0 0.0
  %2521 = vmatprep.subr.mxu0 0.0
  %2522 = vmatpush1.msra.mxu0 0.0
  %2523 = vmatprep.subr.mxu0 0.0
  %2524 = vmatpush1.msra.mxu0 0.0
  %2525 = vmatprep.subr.mxu0 0.0
  %2526 = vmatpush1.msra.mxu0 0.0
  %2527 = vmatprep.subr.mxu0 0.0
  %2528 = vmatpush1.msra.mxu0 0.0
  %2529 = vmatprep.subr.mxu0 0.0
  %2530 = vmatpush1.msra.mxu0 0.0
  %2531 = vmatprep.subr.mxu0 0.0
  %2532 = vmatpush1.msra.mxu0 0.0
  %2533 = vmatprep.subr.mxu0 0.0
  %2534 = vmatpush1.msra.mxu0 0.0
  %2535 = vmatprep.subr.mxu0 0.0
  %2536 = vmatpush1.msra.mxu0 0.0
  %2537 = vmatprep.subr.mxu0 0.0
  %2538 = vmatpush1.msra.mxu0 0.0
  %2539 = vmatprep.subr.mxu0 0.0
  %2540 = vmatpush1.msra.mxu0 0.0
  %2541 = vmatprep.subr.mxu0 0.0
  %2542 = vmatpush1.msra.mxu0 0.0
  %2543 = vmatprep.subr.mxu0 0.0
  %2544 = vmatpush1.msra.mxu0 0.0
  %2545 = vmatprep.subr.mxu0 0.0
  %2546 = vmatpush1.msra.mxu0 0.0
  %2547 = vmatprep.subr.mxu0 0.0
  %2548 = vmatpush1.msra.mxu0 0.0
  %2549 = vmatprep.mubr.f32.mxu0 0.0
  %2550 = vmatmul.mubr.f32.gmra.mrb[0].mxu0 %v2400
  %v2551 = vpop.f32.mrb[0].mxu0
  %v2552 = vadd.f32 %v2397, %v2551
  %v2553 = vpop.f32.mrb[0].mxu0
  %v2554 = vadd.f32 %v2397, %v2553
  %2555 = vdwg.mxu0
  %v2556 = vmax.f32 %v2481, 0.0
  %v2557 = vmax.f32 %v2483, 0.0
  %v2558 = vmax.f32 %v2552, 0.0
  %v2559 = vmax.f32 %v2554, 0.0
  %v2560 = vsel %vm66, %v2556, 0.0
  %v2561 = vsel %vm66, %v2557, 0.0
  %v2562 = vadd.f32 %v2560, %v2561
  %v2563 = vsel %vm66, %v2558, 0.0
  %v2564 = vadd.f32 %v2562, %v2563
  %v2565 = vsel %vm66, %v2559, 0.0
  %v2566 = vadd.f32 %v2564, %v2565
  %2567 = vadd.xlane.f32.xlu0 %v2566
  %v2568 = vpop.xlane.xlu0 %2567
  %v2569 = vmul.f32 %v2568, 0.001953125
  %v2570 = vsub.f32 %v2556, %v2569
  %v2571 = vsub.f32 %v2557, %v2569
  %v2572 = vsub.f32 %v2558, %v2569
  %v2573 = vsub.f32 %v2559, %v2569
  %v2574 = vmul.f32 %v2570, %v2570
  %v2575 = vmul.f32 %v2571, %v2571
  %v2576 = vmul.f32 %v2572, %v2572
  %v2577 = vmul.f32 %v2573, %v2573
  %v2578 = vsel %vm66, %v2574, 0.0
  %v2579 = vsel %vm66, %v2575, 0.0
  %v2580 = vadd.f32 %v2578, %v2579
  %v2581 = vsel %vm66, %v2576, 0.0
  %v2582 = vadd.f32 %v2580, %v2581
  %v2583 = vsel %vm66, %v2577, 0.0
  %v2584 = vadd.f32 %v2582, %v2583
  %2585 = vadd.xlane.f32.xlu0 %v2584
  %v2586 = vpop.xlane.xlu0 %2585
  %v2587 = vmul.f32 %v2586, 0.001953125
  %v2588 = vld [vmem:[%s10] sm:$0xf]
  %v2589 = vadd.f32 %v2587, 1e-05
  %v2590 = vrsqrt.pop %v2589
  %v2591 = vmul.f32 %v2588, %v2590
  %2593 = vset.pattern.permute.xlu0 0
  %2594 = vperm.xlu0 %2593, %v2591
  %v2595 = vpop.permute.xlu0 %2594
  %v2597 = vmul.f32 %v2570, %v2595
  %v2598 = vmul.f32 %v2571, %v2595
  %v2599 = vmul.f32 %v2572, %v2595
  %v2600 = vmul.f32 %v2573, %v2595
  %v2601 = vld [vmem:[%s11] sm:$0xf]
  %2603 = vset.pattern.permute.xlu0 0
  %2604 = vperm.xlu0 %2603, %v2601
  %v2605 = vpop.permute.xlu0 %2604
  %v2607 = vadd.f32 %v2597, %v2605
  %v2608 = vadd.f32 %v2598, %v2605
  %v2609 = vadd.f32 %v2599, %v2605
  %v2610 = vadd.f32 %v2600, %v2605
  %v2615 = vcombine.low %v2607, %v2608
  %v2616 = vcombine.low %v2609, %v2610
  %2619 = vst [vmem:[%s12] sm:$0xff] %v2615
  %2620 = vst [vmem:[%s12 + $0x8] sm:$0xff] %v2616
  // Predicated region
  $region50: #{sca_forward.1} parent=0 // pred_check
    _
  $region51: #{sca_forward.1} parent=0 // pred_check_branch
    %2622 = sbr.rel (0) target = $region53
  $region52: #{sca_forward.1} parent=0 // pred_region
    _
  $region53: #{sca_forward.1} parent=0 // pred_fallthru
    _
  // Predicated region
  $region54: #{sca_forward.1} parent=0 // pred_check
    _
  $region55: #{sca_forward.1} parent=0 // pred_check_branch
    %2624 = sbr.rel (0) target = $region57
  $region56: #{sca_forward.1} parent=0 // pred_region
    _
  $region57: #{sca_forward.1} parent=0 // pred_fallthru
    _
  // Predicated region
  $region58: #{sca_forward.1} parent=0 // pred_check
    _
  $region59: #{sca_forward.1} parent=0 // pred_check_branch
    %2626 = sbr.rel (0) target = $region61
  $region60: #{sca_forward.1} parent=0 // pred_region
    _
  $region61: #{sca_forward.1} parent=0 // pred_fallthru
    _
  // Predicated region
  $region62: #{sca_forward.1} parent=0 // pred_check
    _
  $region63: #{sca_forward.1} parent=0 // pred_check_branch
    %2628 = sbr.rel (0) target = $region65
  $region64: #{sca_forward.1} parent=0 // pred_region
    _
  $region65: #{sca_forward.1} parent=0 // pred_fallthru
    _

</llo_original>
